<compile_context>
chip_gen: v5e
topology: v5e:2x2
jax: 0.10.0
libtpu: 0.0.40
codegen_flags: <defaults>
</compile_context>

<pallas_src>
import functools

import jax
import jax.numpy as jnp
from jax.experimental import pallas as pl
from jax.experimental.pallas import tpu as pltpu


# ----------------------------- Pallas kernel --------------------------------

def _bottleneck_kernel(xp_ref, mask_ref, w1_ref, b1_ref, w2_ref, b2_ref,
                       w3_ref, b3_ref, ws_ref, bs_ref, o_ref, h1_scr,
                       *, Wp, M2, Cmid, stride):
    f32 = jnp.float32
    bf16 = jnp.bfloat16

    # ---- stage 1: 1x1 conv (BN scale folded into w1) + bias + ReLU ---------
    xp = xp_ref[0]                                              # (P, Cin) bf16
    h1 = jnp.dot(xp, w1_ref[...], preferred_element_type=f32)   # (P, Cmid) f32
    h1 = jnp.maximum(h1 + b1_ref[...], 0.0)
    # zero the spatial-padding border so the 3x3 conv sees true zero padding
    h1 = h1 * mask_ref[...]
    h1_scr[...] = h1                                            # f32 in VMEM

    # ---- stage 2: 3x3 conv (stride, pad=1) as 9 shifted-slab matmuls -------
    # Output index j enumerates (Ho, Wp); input row of tap (ky,kx) for output
    # j is stride*j + ky*Wp + kx (junk columns are discarded by the wrapper).
    acc = jnp.zeros((M2, Cmid), f32)
    for ky in range(3):
        for kx in range(3):
            off = ky * Wp + kx
            if stride == 1:
                tap = h1_scr[pl.ds(off, M2), :]
            else:
                tap = h1_scr[pl.ds(off, M2, stride), :]
            acc = acc + jnp.dot(tap.astype(bf16), w2_ref[ky * 3 + kx],
                                preferred_element_type=f32)
    h2 = jnp.maximum(acc + b2_ref[...], 0.0).astype(bf16)       # (M2, Cmid)

    # ---- stage 3: 1x1 expand + fused shortcut 1x1(stride) + residual ReLU --
    out = jnp.dot(h2, w3_ref[...], preferred_element_type=f32) + b3_ref[...]
    if stride == 1:
        # cast up before the unaligned row slice (safest lowering path), then
        # back to bf16 for the MXU; numerically exact round trip.
        xs = xp.astype(f32)[Wp + 1:Wp + 1 + M2, :].astype(bf16)
    else:
        xs = xp_ref[0, pl.ds(Wp + 1, M2, stride), :]            # bf16 strided
    out = out + jnp.dot(xs, ws_ref[...], preferred_element_type=f32) + bs_ref[...]
    o_ref[0] = jnp.maximum(out, 0.0).astype(o_ref.dtype)


# ------------------------------ JAX wrapper ----------------------------------

def _fold_bn(gamma, beta, mean, var, eps=1e-5):
    # TODO(synk): BatchNorm is folded with running statistics (inference/eval
    # semantics); training-mode batch-statistic normalization is not implemented.
    scale = gamma / jnp.sqrt(var + eps)
    bias = beta - mean * scale
    return scale, bias


def bottleneck_forward(params, x_nchw, stride):
    """BottleNeck forward; x is NCHW (PyTorch layout), output is NCHW."""
    assert 1 <= stride <= 3
    n, cin, h, w = x_nchw.shape
    x = jnp.transpose(x_nchw, (0, 2, 3, 1))                     # NHWC f32

    # ---- fold BN scale into conv weights (bf16); keep biases f32 ----------
    s1, b1 = _fold_bn(*params["bn1"])
    w1 = params["w1"]                                           # (Cmid, Cin, 1, 1)
    cmid = w1.shape[0]
    w1m = (jnp.transpose(w1[:, :, 0, 0], (1, 0)) * s1[None, :]).astype(jnp.bfloat16)

    s2, b2 = _fold_bn(*params["bn2"])
    w2 = params["w2"]                                           # (Cmid, Cmid, 3, 3)
    w2m = (jnp.transpose(w2, (2, 3, 1, 0)).reshape(9, cmid, cmid)
           * s2[None, None, :]).astype(jnp.bfloat16)            # (9, Cin, Cout)

    s3, b3 = _fold_bn(*params["bn3"])
    w3 = params["w3"]                                           # (Cexp, Cmid, 1, 1)
    cexp = w3.shape[0]
    w3m = (jnp.transpose(w3[:, :, 0, 0], (1, 0)) * s3[None, :]).astype(jnp.bfloat16)

    ss, bs = _fold_bn(*params["bns"])
    ws = params["ws"]                                           # (Cexp, Cin, 1, 1)
    wsm = (jnp.transpose(ws[:, :, 0, 0], (1, 0)) * ss[None, :]).astype(jnp.bfloat16)

    b1m = b1.reshape(1, cmid).astype(jnp.float32)
    b2m = b2.reshape(1, cmid).astype(jnp.float32)
    b3m = b3.reshape(1, cexp).astype(jnp.float32)
    bsm = bs.reshape(1, cexp).astype(jnp.float32)

    # ---- pad spatially (top=1, left=1, right=1, bottom=3) and flatten ------
    # The extra bottom rows keep every tap slice in-bounds for stride<=3.
    hp, wp = h + 4, w + 2
    xp = jnp.pad(x.astype(jnp.bfloat16), ((0, 0), (1, 3), (1, 1), (0, 0)))
    p = hp * wp
    xp2 = xp.reshape(n, p, cin)                                 # (N, P, Cin) bf16

    ho = (h + 2 - 3) // stride + 1
    wo = (w + 2 - 3) // stride + 1
    m2 = ho * wp                       # output rows incl. junk columns [wo, wp)

    # interior mask of the padded grid (zeros the stage-1 border)
    idx = jnp.arange(p)
    yy, xx = idx // wp, idx % wp
    mask = (((yy >= 1) & (yy <= h) & (xx >= 1) & (xx <= w))
            .astype(jnp.float32).reshape(p, 1))

    kernel = functools.partial(_bottleneck_kernel, Wp=wp, M2=m2, Cmid=cmid,
                               stride=stride)

    flops = 2 * n * (p * cin * cmid + 9 * m2 * cmid * cmid
                     + m2 * cmid * cexp + m2 * cin * cexp)
    bytes_accessed = (xp2.size * 2 + mask.size * 4 + n * m2 * cexp * 4
                      + (w1m.size + w2m.size + w3m.size + wsm.size) * 2
                      + (b1m.size + b2m.size + b3m.size + bsm.size) * 4)

    out2 = pl.pallas_call(
        kernel,
        out_shape=jax.ShapeDtypeStruct((n, m2, cexp), jnp.float32),
        grid=(n,),
        in_specs=[
            pl.BlockSpec((1, p, cin), lambda i: (i, 0, 0)),      # padded x
            pl.BlockSpec((p, 1), lambda i: (0, 0)),              # border mask
            pl.BlockSpec((cin, cmid), lambda i: (0, 0)),         # w1 (BN folded)
            pl.BlockSpec((1, cmid), lambda i: (0, 0)),           # b1
            pl.BlockSpec((9, cmid, cmid), lambda i: (0, 0, 0)),  # w2 taps
            pl.BlockSpec((1, cmid), lambda i: (0, 0)),           # b2
            pl.BlockSpec((cmid, cexp), lambda i: (0, 0)),        # w3
            pl.BlockSpec((1, cexp), lambda i: (0, 0)),           # b3
            pl.BlockSpec((cin, cexp), lambda i: (0, 0)),         # shortcut w
            pl.BlockSpec((1, cexp), lambda i: (0, 0)),           # shortcut b
        ],
        out_specs=pl.BlockSpec((1, m2, cexp), lambda i: (i, 0, 0)),
        scratch_shapes=[pltpu.VMEM((p, cmid), jnp.float32)],     # padded h1
        compiler_params=pltpu.CompilerParams(
            dimension_semantics=("parallel",),                   # batch across TCs
            vmem_limit_bytes=48 * 1024 * 1024),                  # headroom < 64 MiB (v7x)
        cost_estimate=pl.CostEstimate(flops=flops, transcendentals=0,
                                      bytes_accessed=bytes_accessed),
    )(xp2, mask, w1m, b1m, w2m, b2m, w3m, b3m, wsm, bsm)

    out = out2.reshape(n, ho, wp, cexp)[:, :, :wo, :]            # drop junk cols
    return jnp.transpose(out, (0, 3, 1, 2))                      # -> NCHW


# ------------------------ deterministic parameters ---------------------------

def init_params(key, in_channels, out_channels, expansion=4):
    cexp = out_channels * expansion
    ks = jax.random.split(key, 8)

    def bn(k, c):
        k1, k2, k3, k4 = jax.random.split(k, 4)
        gamma = 1.0 + 0.1 * jax.random.normal(k1, (c,), jnp.float32)
        beta = 0.1 * jax.random.normal(k2, (c,), jnp.float32)
        mean = 0.1 * jax.random.normal(k3, (c,), jnp.float32)
        var = 1.0 + 0.1 * jnp.abs(jax.random.normal(k4, (c,), jnp.float32))
        return (gamma, beta, mean, var)

    return {
        "w1": 0.1 * jax.random.normal(ks[0], (out_channels, in_channels, 1, 1), jnp.float32),
        "bn1": bn(ks[1], out_channels),
        "w2": 0.1 * jax.random.normal(ks[2], (out_channels, out_channels, 3, 3), jnp.float32),
        "bn2": bn(ks[3], out_channels),
        "w3": 0.1 * jax.random.normal(ks[4], (cexp, out_channels, 1, 1), jnp.float32),
        "bn3": bn(ks[5], cexp),
        "ws": 0.1 * jax.random.normal(ks[6], (cexp, in_channels, 1, 1), jnp.float32),
        "bns": bn(ks[7], cexp),
    }


# ------------------------- pure-JAX reference check --------------------------

def _conv_ref(x_nhwc, w_oihw, stride, padding):
    return jax.lax.conv_general_dilated(
        x_nhwc, jnp.transpose(w_oihw, (2, 3, 1, 0)),
        (stride, stride), padding,
        dimension_numbers=("NHWC", "HWIO", "NHWC"),
        precision=jax.lax.Precision.HIGHEST)


def bottleneck_ref(params, x_nchw, stride):
    x = jnp.transpose(x_nchw, (0, 2, 3, 1)).astype(jnp.float32)
    s1, b1 = _fold_bn(*params["bn1"])
    h1 = jnp.maximum(_conv_ref(x, params["w1"], 1, "VALID") * s1 + b1, 0.0)
    s2, b2 = _fold_bn(*params["bn2"])
    h2 = jnp.maximum(
        _conv_ref(h1, params["w2"], stride, [(1, 1), (1, 1)]) * s2 + b2, 0.0)
    s3, b3 = _fold_bn(*params["bn3"])
    h3 = _conv_ref(h2, params["w3"], 1, "VALID") * s3 + b3
    ss, bs = _fold_bn(*params["bns"])
    sc = _conv_ref(x, params["ws"], stride, "VALID") * ss + bs
    out = jnp.maximum(h3 + sc, 0.0)
    return jnp.transpose(out, (0, 3, 1, 2))


# ---------------------------------- main --------------------------------------

if __name__ == "__main__":
    key = jax.random.PRNGKey(0)
    k_x, k_p = jax.random.split(key)

    N, IN_C, OUT_C, H, W, STRIDE = 2, 32, 16, 16, 16, 1   # expanded channels = 64

    x = jax.random.normal(k_x, (N, IN_C, H, W), jnp.float32)   # NCHW like PyTorch
    params = init_params(k_p, IN_C, OUT_C)

    fwd = jax.jit(bottleneck_forward, static_argnums=(2,))
    out = jax.block_until_ready(fwd(params, x, STRIDE))

    ref = jax.block_until_ready(bottleneck_ref(params, x, STRIDE))
    assert out.shape == (N, OUT_C * 4, H // STRIDE, W // STRIDE), out.shape
    max_err = float(jnp.max(jnp.abs(out - ref)))
    assert jnp.allclose(out, ref, rtol=2e-2, atol=2e-2), max_err   # bf16 MXU tolerance

    print("KERNEL_OK")
</pallas_src>

<mosaic_0001>
module attributes {stable_mosaic.version = 11 : i64} {
  func.func @_bottleneck_kernel(%arg0: i32, %arg1: memref<1x360x32xbf16, #tpu.memory_space<vmem>>, %arg2: memref<360x1xf32, #tpu.memory_space<vmem>>, %arg3: memref<32x16xbf16, #tpu.memory_space<vmem>>, %arg4: memref<1x16xf32, #tpu.memory_space<vmem>>, %arg5: memref<9x16x16xbf16, #tpu.memory_space<vmem>>, %arg6: memref<1x16xf32, #tpu.memory_space<vmem>>, %arg7: memref<16x64xbf16, #tpu.memory_space<vmem>>, %arg8: memref<1x64xf32, #tpu.memory_space<vmem>>, %arg9: memref<32x64xbf16, #tpu.memory_space<vmem>>, %arg10: memref<1x64xf32, #tpu.memory_space<vmem>>, %arg11: memref<1x288x64xf32, #tpu.memory_space<vmem>>, %arg12: memref<360x16xf32, #tpu.memory_space<vmem>>) attributes {dimension_semantics = [#tpu.dimension_semantics<parallel>], iteration_bounds = array<i64: 2>, scalar_prefetch = 0 : i64, scratch_operands = 1 : i64, tpu.core_type = #tpu.core_type<tc>, window_params = [{transform_indices = @transform_0, window_bounds = array<i64: 1, 360, 32>}, {pipeline_mode = #tpu.pipeline_mode<synchronous>, transform_indices = @transform_1, window_bounds = array<i64: 360, 1>}, {pipeline_mode = #tpu.pipeline_mode<synchronous>, transform_indices = @transform_2, window_bounds = array<i64: 32, 16>}, {pipeline_mode = #tpu.pipeline_mode<synchronous>, transform_indices = @transform_3, window_bounds = array<i64: 1, 16>}, {pipeline_mode = #tpu.pipeline_mode<synchronous>, transform_indices = @transform_4, window_bounds = array<i64: 9, 16, 16>}, {pipeline_mode = #tpu.pipeline_mode<synchronous>, transform_indices = @transform_5, window_bounds = array<i64: 1, 16>}, {pipeline_mode = #tpu.pipeline_mode<synchronous>, transform_indices = @transform_6, window_bounds = array<i64: 16, 64>}, {pipeline_mode = #tpu.pipeline_mode<synchronous>, transform_indices = @transform_7, window_bounds = array<i64: 1, 64>}, {pipeline_mode = #tpu.pipeline_mode<synchronous>, transform_indices = @transform_8, window_bounds = array<i64: 32, 64>}, {pipeline_mode = #tpu.pipeline_mode<synchronous>, transform_indices = @transform_9, window_bounds = array<i64: 1, 64>}, {transform_indices = @transform_10, window_bounds = array<i64: 1, 288, 64>}]} {
    %c0 = arith.constant 0 : index
    %c0_0 = arith.constant 0 : index
    %c0_1 = arith.constant 0 : index
    %0 = vector.load %arg1[%c0, %c0_0, %c0_1] : memref<1x360x32xbf16, #tpu.memory_space<vmem>>, vector<1x360x32xbf16>
    %1 = vector.shape_cast %0 : vector<1x360x32xbf16> to vector<360x32xbf16>
    %c0_2 = arith.constant 0 : index
    %c0_3 = arith.constant 0 : index
    %2 = vector.load %arg3[%c0_2, %c0_3] : memref<32x16xbf16, #tpu.memory_space<vmem>>, vector<32x16xbf16>
    %cst = arith.constant dense<0.000000e+00> : vector<360x16xf32>
    %3 = tpu.matmul %1, %2, %cst {dimension_numbers = #tpu.dot_dimension_numbers<[1], [0], [0], [1], [0, 0, 1, 1], [], []>} : vector<360x32xbf16>, vector<32x16xbf16>, vector<360x16xf32> -> vector<360x16xf32>
    %c0_4 = arith.constant 0 : index
    %c0_5 = arith.constant 0 : index
    %4 = vector.load %arg4[%c0_4, %c0_5] : memref<1x16xf32, #tpu.memory_space<vmem>>, vector<1x16xf32>
    %5 = vector.broadcast %4 : vector<1x16xf32> to vector<360x16xf32>
    %6 = arith.addf %3, %5 : vector<360x16xf32>
    %cst_6 = arith.constant 0.000000e+00 : f32
    %7 = vector.broadcast %cst_6 : f32 to vector<360x16xf32>
    %8 = arith.maximumf %6, %7 : vector<360x16xf32>
    %c0_7 = arith.constant 0 : index
    %c0_8 = arith.constant 0 : index
    %9 = vector.load %arg2[%c0_7, %c0_8] : memref<360x1xf32, #tpu.memory_space<vmem>>, vector<360x1xf32>
    %10 = vector.broadcast %9 : vector<360x1xf32> to vector<360x16xf32>
    %11 = arith.mulf %8, %10 : vector<360x16xf32>
    %c0_9 = arith.constant 0 : index
    %c0_10 = arith.constant 0 : index
    %12 = vector.load %arg12[%c0_9, %c0_10] : memref<360x16xf32, #tpu.memory_space<vmem>>, vector<360x16xf32>
    tpu.vector_store %arg12[%c0_9, %c0_10], %11 {strides = array<i32>} : memref<360x16xf32, #tpu.memory_space<vmem>>, vector<360x16xf32>,
    %cst_11 = arith.constant 0.000000e+00 : f32
    %13 = vector.broadcast %cst_11 : f32 to vector<288x16xf32>
    %c0_12 = arith.constant 0 : index
    %c0_13 = arith.constant 0 : index
    %14 = vector.load %arg12[%c0_12, %c0_13] : memref<360x16xf32, #tpu.memory_space<vmem>>, vector<288x16xf32>
    %15 = arith.truncf %14 : vector<288x16xf32> to vector<288x16xbf16>
    %c0_14 = arith.constant 0 : index
    %c0_15 = arith.constant 0 : index
    %c0_16 = arith.constant 0 : index
    %16 = vector.load %arg5[%c0_14, %c0_15, %c0_16] : memref<9x16x16xbf16, #tpu.memory_space<vmem>>, vector<1x16x16xbf16>
    %17 = vector.shape_cast %16 : vector<1x16x16xbf16> to vector<16x16xbf16>
    %cst_17 = arith.constant dense<0.000000e+00> : vector<288x16xf32>
    %18 = tpu.matmul %15, %17, %cst_17 {dimension_numbers = #tpu.dot_dimension_numbers<[1], [0], [0], [1], [0, 0, 1, 1], [], []>} : vector<288x16xbf16>, vector<16x16xbf16>, vector<288x16xf32> -> vector<288x16xf32>
    %19 = arith.addf %13, %18 : vector<288x16xf32>
    %c1 = arith.constant 1 : index
    %c0_18 = arith.constant 0 : index
    %20 = vector.load %arg12[%c1, %c0_18] : memref<360x16xf32, #tpu.memory_space<vmem>>, vector<288x16xf32>
    %21 = arith.truncf %20 : vector<288x16xf32> to vector<288x16xbf16>
    %c1_19 = arith.constant 1 : index
    %c0_20 = arith.constant 0 : index
    %c0_21 = arith.constant 0 : index
    %22 = vector.load %arg5[%c1_19, %c0_20, %c0_21] : memref<9x16x16xbf16, #tpu.memory_space<vmem>>, vector<1x16x16xbf16>
    %23 = vector.shape_cast %22 : vector<1x16x16xbf16> to vector<16x16xbf16>
    %cst_22 = arith.constant dense<0.000000e+00> : vector<288x16xf32>
    %24 = tpu.matmul %21, %23, %cst_22 {dimension_numbers = #tpu.dot_dimension_numbers<[1], [0], [0], [1], [0, 0, 1, 1], [], []>} : vector<288x16xbf16>, vector<16x16xbf16>, vector<288x16xf32> -> vector<288x16xf32>
    %25 = arith.addf %19, %24 : vector<288x16xf32>
    %c2 = arith.constant 2 : index
    %c0_23 = arith.constant 0 : index
    %26 = vector.load %arg12[%c2, %c0_23] : memref<360x16xf32, #tpu.memory_space<vmem>>, vector<288x16xf32>
    %27 = arith.truncf %26 : vector<288x16xf32> to vector<288x16xbf16>
    %c2_24 = arith.constant 2 : index
    %c0_25 = arith.constant 0 : index
    %c0_26 = arith.constant 0 : index
    %28 = vector.load %arg5[%c2_24, %c0_25, %c0_26] : memref<9x16x16xbf16, #tpu.memory_space<vmem>>, vector<1x16x16xbf16>
    %29 = vector.shape_cast %28 : vector<1x16x16xbf16> to vector<16x16xbf16>
    %cst_27 = arith.constant dense<0.000000e+00> : vector<288x16xf32>
    %30 = tpu.matmul %27, %29, %cst_27 {dimension_numbers = #tpu.dot_dimension_numbers<[1], [0], [0], [1], [0, 0, 1, 1], [], []>} : vector<288x16xbf16>, vector<16x16xbf16>, vector<288x16xf32> -> vector<288x16xf32>
    %31 = arith.addf %25, %30 : vector<288x16xf32>
    %c18 = arith.constant 18 : index
    %c0_28 = arith.constant 0 : index
    %32 = vector.load %arg12[%c18, %c0_28] : memref<360x16xf32, #tpu.memory_space<vmem>>, vector<288x16xf32>
    %33 = arith.truncf %32 : vector<288x16xf32> to vector<288x16xbf16>
    %c3 = arith.constant 3 : index
    %c0_29 = arith.constant 0 : index
    %c0_30 = arith.constant 0 : index
    %34 = vector.load %arg5[%c3, %c0_29, %c0_30] : memref<9x16x16xbf16, #tpu.memory_space<vmem>>, vector<1x16x16xbf16>
    %35 = vector.shape_cast %34 : vector<1x16x16xbf16> to vector<16x16xbf16>
    %cst_31 = arith.constant dense<0.000000e+00> : vector<288x16xf32>
    %36 = tpu.matmul %33, %35, %cst_31 {dimension_numbers = #tpu.dot_dimension_numbers<[1], [0], [0], [1], [0, 0, 1, 1], [], []>} : vector<288x16xbf16>, vector<16x16xbf16>, vector<288x16xf32> -> vector<288x16xf32>
    %37 = arith.addf %31, %36 : vector<288x16xf32>
    %c19 = arith.constant 19 : index
    %c0_32 = arith.constant 0 : index
    %38 = vector.load %arg12[%c19, %c0_32] : memref<360x16xf32, #tpu.memory_space<vmem>>, vector<288x16xf32>
    %39 = arith.truncf %38 : vector<288x16xf32> to vector<288x16xbf16>
    %c4 = arith.constant 4 : index
    %c0_33 = arith.constant 0 : index
    %c0_34 = arith.constant 0 : index
    %40 = vector.load %arg5[%c4, %c0_33, %c0_34] : memref<9x16x16xbf16, #tpu.memory_space<vmem>>, vector<1x16x16xbf16>
    %41 = vector.shape_cast %40 : vector<1x16x16xbf16> to vector<16x16xbf16>
    %cst_35 = arith.constant dense<0.000000e+00> : vector<288x16xf32>
    %42 = tpu.matmul %39, %41, %cst_35 {dimension_numbers = #tpu.dot_dimension_numbers<[1], [0], [0], [1], [0, 0, 1, 1], [], []>} : vector<288x16xbf16>, vector<16x16xbf16>, vector<288x16xf32> -> vector<288x16xf32>
    %43 = arith.addf %37, %42 : vector<288x16xf32>
    %c20 = arith.constant 20 : index
    %c0_36 = arith.constant 0 : index
    %44 = vector.load %arg12[%c20, %c0_36] : memref<360x16xf32, #tpu.memory_space<vmem>>, vector<288x16xf32>
    %45 = arith.truncf %44 : vector<288x16xf32> to vector<288x16xbf16>
    %c5 = arith.constant 5 : index
    %c0_37 = arith.constant 0 : index
    %c0_38 = arith.constant 0 : index
    %46 = vector.load %arg5[%c5, %c0_37, %c0_38] : memref<9x16x16xbf16, #tpu.memory_space<vmem>>, vector<1x16x16xbf16>
    %47 = vector.shape_cast %46 : vector<1x16x16xbf16> to vector<16x16xbf16>
    %cst_39 = arith.constant dense<0.000000e+00> : vector<288x16xf32>
    %48 = tpu.matmul %45, %47, %cst_39 {dimension_numbers = #tpu.dot_dimension_numbers<[1], [0], [0], [1], [0, 0, 1, 1], [], []>} : vector<288x16xbf16>, vector<16x16xbf16>, vector<288x16xf32> -> vector<288x16xf32>
    %49 = arith.addf %43, %48 : vector<288x16xf32>
    %c36 = arith.constant 36 : index
    %c0_40 = arith.constant 0 : index
    %50 = vector.load %arg12[%c36, %c0_40] : memref<360x16xf32, #tpu.memory_space<vmem>>, vector<288x16xf32>
    %51 = arith.truncf %50 : vector<288x16xf32> to vector<288x16xbf16>
    %c6 = arith.constant 6 : index
    %c0_41 = arith.constant 0 : index
    %c0_42 = arith.constant 0 : index
    %52 = vector.load %arg5[%c6, %c0_41, %c0_42] : memref<9x16x16xbf16, #tpu.memory_space<vmem>>, vector<1x16x16xbf16>
    %53 = vector.shape_cast %52 : vector<1x16x16xbf16> to vector<16x16xbf16>
    %cst_43 = arith.constant dense<0.000000e+00> : vector<288x16xf32>
    %54 = tpu.matmul %51, %53, %cst_43 {dimension_numbers = #tpu.dot_dimension_numbers<[1], [0], [0], [1], [0, 0, 1, 1], [], []>} : vector<288x16xbf16>, vector<16x16xbf16>, vector<288x16xf32> -> vector<288x16xf32>
    %55 = arith.addf %49, %54 : vector<288x16xf32>
    %c37 = arith.constant 37 : index
    %c0_44 = arith.constant 0 : index
    %56 = vector.load %arg12[%c37, %c0_44] : memref<360x16xf32, #tpu.memory_space<vmem>>, vector<288x16xf32>
    %57 = arith.truncf %56 : vector<288x16xf32> to vector<288x16xbf16>
    %c7 = arith.constant 7 : index
    %c0_45 = arith.constant 0 : index
    %c0_46 = arith.constant 0 : index
    %58 = vector.load %arg5[%c7, %c0_45, %c0_46] : memref<9x16x16xbf16, #tpu.memory_space<vmem>>, vector<1x16x16xbf16>
    %59 = vector.shape_cast %58 : vector<1x16x16xbf16> to vector<16x16xbf16>
    %cst_47 = arith.constant dense<0.000000e+00> : vector<288x16xf32>
    %60 = tpu.matmul %57, %59, %cst_47 {dimension_numbers = #tpu.dot_dimension_numbers<[1], [0], [0], [1], [0, 0, 1, 1], [], []>} : vector<288x16xbf16>, vector<16x16xbf16>, vector<288x16xf32> -> vector<288x16xf32>
    %61 = arith.addf %55, %60 : vector<288x16xf32>
    %c38 = arith.constant 38 : index
    %c0_48 = arith.constant 0 : index
    %62 = vector.load %arg12[%c38, %c0_48] : memref<360x16xf32, #tpu.memory_space<vmem>>, vector<288x16xf32>
    %63 = arith.truncf %62 : vector<288x16xf32> to vector<288x16xbf16>
    %c8 = arith.constant 8 : index
    %c0_49 = arith.constant 0 : index
    %c0_50 = arith.constant 0 : index
    %64 = vector.load %arg5[%c8, %c0_49, %c0_50] : memref<9x16x16xbf16, #tpu.memory_space<vmem>>, vector<1x16x16xbf16>
    %65 = vector.shape_cast %64 : vector<1x16x16xbf16> to vector<16x16xbf16>
    %cst_51 = arith.constant dense<0.000000e+00> : vector<288x16xf32>
    %66 = tpu.matmul %63, %65, %cst_51 {dimension_numbers = #tpu.dot_dimension_numbers<[1], [0], [0], [1], [0, 0, 1, 1], [], []>} : vector<288x16xbf16>, vector<16x16xbf16>, vector<288x16xf32> -> vector<288x16xf32>
    %67 = arith.addf %61, %66 : vector<288x16xf32>
    %c0_52 = arith.constant 0 : index
    %c0_53 = arith.constant 0 : index
    %68 = vector.load %arg6[%c0_52, %c0_53] : memref<1x16xf32, #tpu.memory_space<vmem>>, vector<1x16xf32>
    %69 = vector.broadcast %68 : vector<1x16xf32> to vector<288x16xf32>
    %70 = arith.addf %67, %69 : vector<288x16xf32>
    %cst_54 = arith.constant 0.000000e+00 : f32
    %71 = vector.broadcast %cst_54 : f32 to vector<288x16xf32>
    %72 = arith.maximumf %70, %71 : vector<288x16xf32>
    %73 = arith.truncf %72 : vector<288x16xf32> to vector<288x16xbf16>
    %c0_55 = arith.constant 0 : index
    %c0_56 = arith.constant 0 : index
    %74 = vector.load %arg7[%c0_55, %c0_56] : memref<16x64xbf16, #tpu.memory_space<vmem>>, vector<16x64xbf16>
    %cst_57 = arith.constant dense<0.000000e+00> : vector<288x64xf32>
    %75 = tpu.matmul %73, %74, %cst_57 {dimension_numbers = #tpu.dot_dimension_numbers<[1], [0], [0], [1], [0, 0, 1, 1], [], []>} : vector<288x16xbf16>, vector<16x64xbf16>, vector<288x64xf32> -> vector<288x64xf32>
    %c0_58 = arith.constant 0 : index
    %c0_59 = arith.constant 0 : index
    %76 = vector.load %arg8[%c0_58, %c0_59] : memref<1x64xf32, #tpu.memory_space<vmem>>, vector<1x64xf32>
    %77 = vector.broadcast %76 : vector<1x64xf32> to vector<288x64xf32>
    %78 = arith.addf %75, %77 : vector<288x64xf32>
    %79 = arith.extf %1 : vector<360x32xbf16> to vector<360x32xf32>
    %80 = vector.extract_strided_slice %79 {offsets = [19, 0], sizes = [288, 32], strides = [1, 1]} : vector<360x32xf32> to vector<288x32xf32>
    %81 = arith.truncf %80 : vector<288x32xf32> to vector<288x32xbf16>
    %c0_60 = arith.constant 0 : index
    %c0_61 = arith.constant 0 : index
    %82 = vector.load %arg9[%c0_60, %c0_61] : memref<32x64xbf16, #tpu.memory_space<vmem>>, vector<32x64xbf16>
    %cst_62 = arith.constant dense<0.000000e+00> : vector<288x64xf32>
    %83 = tpu.matmul %81, %82, %cst_62 {dimension_numbers = #tpu.dot_dimension_numbers<[1], [0], [0], [1], [0, 0, 1, 1], [], []>} : vector<288x32xbf16>, vector<32x64xbf16>, vector<288x64xf32> -> vector<288x64xf32>
    %84 = arith.addf %78, %83 : vector<288x64xf32>
    %c0_63 = arith.constant 0 : index
    %c0_64 = arith.constant 0 : index
    %85 = vector.load %arg10[%c0_63, %c0_64] : memref<1x64xf32, #tpu.memory_space<vmem>>, vector<1x64xf32>
    %86 = vector.broadcast %85 : vector<1x64xf32> to vector<288x64xf32>
    %87 = arith.addf %84, %86 : vector<288x64xf32>
    %cst_65 = arith.constant 0.000000e+00 : f32
    %88 = vector.broadcast %cst_65 : f32 to vector<288x64xf32>
    %89 = arith.maximumf %87, %88 : vector<288x64xf32>
    %c0_66 = arith.constant 0 : index
    %c0_67 = arith.constant 0 : index
    %c0_68 = arith.constant 0 : index
    %90 = vector.load %arg11[%c0_66, %c0_67, %c0_68] : memref<1x288x64xf32, #tpu.memory_space<vmem>>, vector<1x288x64xf32>
    %91 = vector.shape_cast %90 : vector<1x288x64xf32> to vector<288x64xf32>
    %92 = vector.shape_cast %89 : vector<288x64xf32> to vector<1x288x64xf32>
    tpu.vector_store %arg11[%c0_66, %c0_67, %c0_68], %92 {strides = array<i32>} : memref<1x288x64xf32, #tpu.memory_space<vmem>>, vector<1x288x64xf32>,
    return
  }
  func.func @transform_0(%arg0: i32) -> (i32, i32, i32) {
    %c0_i32 = arith.constant 0 : i32
    %c0_i32_0 = arith.constant 0 : i32
    %c0_i32_1 = arith.constant 0 : i32
    return %arg0, %c0_i32, %c0_i32_0 : i32, i32, i32
  }
  func.func @transform_1(%arg0: i32) -> (i32, i32) {
    %c0_i32 = arith.constant 0 : i32
    %c0_i32_0 = arith.constant 0 : i32
    %c0_i32_1 = arith.constant 0 : i32
    return %c0_i32, %c0_i32_0 : i32, i32
  }
  func.func @transform_2(%arg0: i32) -> (i32, i32) {
    %c0_i32 = arith.constant 0 : i32
    %c0_i32_0 = arith.constant 0 : i32
    %c0_i32_1 = arith.constant 0 : i32
    return %c0_i32, %c0_i32_0 : i32, i32
  }
  func.func @transform_3(%arg0: i32) -> (i32, i32) {
    %c0_i32 = arith.constant 0 : i32
    %c0_i32_0 = arith.constant 0 : i32
    %c0_i32_1 = arith.constant 0 : i32
    return %c0_i32, %c0_i32_0 : i32, i32
  }
  func.func @transform_4(%arg0: i32) -> (i32, i32, i32) {
    %c0_i32 = arith.constant 0 : i32
    %c0_i32_0 = arith.constant 0 : i32
    %c0_i32_1 = arith.constant 0 : i32
    %c0_i32_2 = arith.constant 0 : i32
    return %c0_i32, %c0_i32_0, %c0_i32_1 : i32, i32, i32
  }
  func.func @transform_5(%arg0: i32) -> (i32, i32) {
    %c0_i32 = arith.constant 0 : i32
    %c0_i32_0 = arith.constant 0 : i32
    %c0_i32_1 = arith.constant 0 : i32
    return %c0_i32, %c0_i32_0 : i32, i32
  }
  func.func @transform_6(%arg0: i32) -> (i32, i32) {
    %c0_i32 = arith.constant 0 : i32
    %c0_i32_0 = arith.constant 0 : i32
    %c0_i32_1 = arith.constant 0 : i32
    return %c0_i32, %c0_i32_0 : i32, i32
  }
  func.func @transform_7(%arg0: i32) -> (i32, i32) {
    %c0_i32 = arith.constant 0 : i32
    %c0_i32_0 = arith.constant 0 : i32
    %c0_i32_1 = arith.constant 0 : i32
    return %c0_i32, %c0_i32_0 : i32, i32
  }
  func.func @transform_8(%arg0: i32) -> (i32, i32) {
    %c0_i32 = arith.constant 0 : i32
    %c0_i32_0 = arith.constant 0 : i32
    %c0_i32_1 = arith.constant 0 : i32
    return %c0_i32, %c0_i32_0 : i32, i32
  }
  func.func @transform_9(%arg0: i32) -> (i32, i32) {
    %c0_i32 = arith.constant 0 : i32
    %c0_i32_0 = arith.constant 0 : i32
    %c0_i32_1 = arith.constant 0 : i32
    return %c0_i32, %c0_i32_0 : i32, i32
  }
  func.func @transform_10(%arg0: i32) -> (i32, i32, i32) {
    %c0_i32 = arith.constant 0 : i32
    %c0_i32_0 = arith.constant 0 : i32
    %c0_i32_1 = arith.constant 0 : i32
    return %arg0, %c0_i32, %c0_i32_0 : i32, i32, i32
  }
}

</mosaic_0001>

<llo_original>
// kernel: bottleneck_forward.1
$region0: #{bottleneck_forward.1}
  #allocation0 [shape = 'u32[]', space=smem, size = 0x4, offset = 0x4, fixed_abs, tag = 'smem constant byte address 0x4 - core index']
  #allocation1 [shape = 'u32[72,128]{1,0:T(1,128)}', space=vmem, size = 0x9000, scoped, tag = 'internal scratch']
  #allocation2 [shape = 'f32[360,16]{1,0:T(8,128)}', space=vmem, size = 0x2d000, scoped, tag = 'scratch operand']
  %s0 = inlined_call_operand.vmem [shape: bf16[2,360,32], index: 0, kind: input, shape index: {}]
  %s1 = inlined_call_operand.vmem [shape: f32[360,1], index: 1, kind: input, shape index: {}]
  %s2 = inlined_call_operand.vmem [shape: bf16[32,16], index: 2, kind: input, shape index: {}]
  %s3 = inlined_call_operand.vmem [shape: f32[1,16], index: 3, kind: input, shape index: {}]
  %s4 = inlined_call_operand.vmem [shape: bf16[9,16,16], index: 4, kind: input, shape index: {}]
  %s5 = inlined_call_operand.vmem [shape: f32[1,16], index: 5, kind: input, shape index: {}]
  %s6 = inlined_call_operand.vmem [shape: bf16[16,64], index: 6, kind: input, shape index: {}]
  %s7 = inlined_call_operand.vmem [shape: f32[1,64], index: 7, kind: input, shape index: {}]
  %s8 = inlined_call_operand.vmem [shape: bf16[32,64], index: 8, kind: input, shape index: {}]
  %s9 = inlined_call_operand.vmem [shape: f32[1,64], index: 9, kind: input, shape index: {}]
  %s10 = inlined_call_operand.vmem [shape: f32[2,288,64], index: 10, kind: output, shape index: {}]
  %s11 = sld [smem:[#allocation0]]
  $region73: #{bottleneck_forward.1} parent=0
    _
  %s13 = ssub.s32 1, %s11
  %s14 = scalar_select 0, %s13, %s11
  loop: start=0, step=1, limit=4
  $region2: #{bottleneck_forward.1} parent=0 // loop_pre_header
    _
  $region3: #{bottleneck_forward.1} parent=0 // loop_header
    %s16 = sphi 0, %s20
    %p17 = scmp.ge.s32.totalorder %s16, 4
    %s26 = sphi 0, %s28
    %s29 = sphi 0, %s26
    %s30 = sphi 0, %s29
    %s46 = sphi 0, %s30
    %s50 = sphi 0, %s50
    %s52 = sphi 0, %s50
    %s53 = sphi 0, %s52
    %s67 = sphi 0, %s53
    %s71 = sphi 0, %s71
    %s73 = sphi 0, %s71
    %s74 = sphi 0, %s73
    %s88 = sphi 0, %s74
    %s92 = sphi 0, %s92
    %s94 = sphi 0, %s92
    %s95 = sphi 0, %s94
    %s109 = sphi 0, %s95
    %s113 = sphi 0, %s113
    %s115 = sphi 0, %s113
    %s116 = sphi 0, %s115
    %s130 = sphi 0, %s116
    %s134 = sphi 0, %s134
    %s136 = sphi 0, %s134
    %s137 = sphi 0, %s136
    %s151 = sphi 0, %s137
    %s155 = sphi 0, %s155
    %s157 = sphi 0, %s155
    %s158 = sphi 0, %s157
    %s172 = sphi 0, %s158
    %s176 = sphi 0, %s176
    %s178 = sphi 0, %s176
    %s179 = sphi 0, %s178
    %s193 = sphi 0, %s179
    %s197 = sphi 0, %s197
    %s199 = sphi 0, %s197
    %s200 = sphi 0, %s199
    %s214 = sphi 0, %s200
    %s218 = sphi 0, %s218
    %s220 = sphi 0, %s218
    %s221 = sphi 0, %s220
    %s235 = sphi 0, %s221
    %s241 = sphi 0, %s243
    %s244 = sphi 0, %s241
    %s245 = sphi 0, %s244
    %s261 = sphi 0, %s245
  $region4: #{bottleneck_forward.1} parent=0 // loop_header_branch
    %19 = sbr.rel (%p17) target = $region8
  $region5: #{bottleneck_forward.1} parent=0 // loop_body
    %s21 = ssub.s32 %s16, 1
    %s22 = ssub.s32 %s16, 2
    %s23 = sadd.s32 %s16, 1
    %s24 = ssub.s32 %s16, %s23
    %p25 = scmp.eq.s32.totalorder %s24, 0
    %s27 = sadd.s32 %s26, 1
    %s28 = scalar_select %p25, %s26, %s27
    %p31 = pneg %p25
    %p32 = scmp.eq.s32.totalorder %s16, 1
    %p33 = por %p31, %p32
    %p34 = scmp.ne.s32.totalorder %s26, %s29
    %p35 = scmp.eq.s32.totalorder %s16, 0
    %p36 = por %p34, %p35
    %p37 = scmp.ne.s32.totalorder %s26, %s29
    %p38 = scmp.eq.s32.totalorder %s21, 1
    %p39 = por %p37, %p38
    %p40 = scmp.ne.s32.totalorder %s29, %s30
    %p41 = scmp.eq.s32.totalorder %s21, 0
    %p42 = por %p40, %p41
    %p43 = scmp.ne.s32.totalorder %s29, %s30
    %p44 = scmp.eq.s32.totalorder %s22, 1
    %p45 = por %p43, %p44
    %p47 = scmp.ne.s32.totalorder %s30, %s46
    %p48 = scmp.eq.s32.totalorder %s22, 0
    %p49 = por %p47, %p48
    %s51 = sadd.s32 %s50, 1
    %p54 = scmp.eq.s32.totalorder %s16, 1
    %p55 = scmp.ne.s32.totalorder %s50, %s52
    %p56 = scmp.eq.s32.totalorder %s16, 0
    %p57 = por %p55, %p56
    %p58 = scmp.ne.s32.totalorder %s50, %s52
    %p59 = scmp.eq.s32.totalorder %s21, 1
    %p60 = por %p58, %p59
    %p61 = scmp.ne.s32.totalorder %s52, %s53
    %p62 = scmp.eq.s32.totalorder %s21, 0
    %p63 = por %p61, %p62
    %p64 = scmp.ne.s32.totalorder %s52, %s53
    %p65 = scmp.eq.s32.totalorder %s22, 1
    %p66 = por %p64, %p65
    %p68 = scmp.ne.s32.totalorder %s53, %s67
    %p69 = scmp.eq.s32.totalorder %s22, 0
    %p70 = por %p68, %p69
    %s72 = sadd.s32 %s71, 1
    %p75 = scmp.eq.s32.totalorder %s16, 1
    %p76 = scmp.ne.s32.totalorder %s71, %s73
    %p77 = scmp.eq.s32.totalorder %s16, 0
    %p78 = por %p76, %p77
    %p79 = scmp.ne.s32.totalorder %s71, %s73
    %p80 = scmp.eq.s32.totalorder %s21, 1
    %p81 = por %p79, %p80
    %p82 = scmp.ne.s32.totalorder %s73, %s74
    %p83 = scmp.eq.s32.totalorder %s21, 0
    %p84 = por %p82, %p83
    %p85 = scmp.ne.s32.totalorder %s73, %s74
    %p86 = scmp.eq.s32.totalorder %s22, 1
    %p87 = por %p85, %p86
    %p89 = scmp.ne.s32.totalorder %s74, %s88
    %p90 = scmp.eq.s32.totalorder %s22, 0
    %p91 = por %p89, %p90
    %s93 = sadd.s32 %s92, 1
    %p96 = scmp.eq.s32.totalorder %s16, 1
    %p97 = scmp.ne.s32.totalorder %s92, %s94
    %p98 = scmp.eq.s32.totalorder %s16, 0
    %p99 = por %p97, %p98
    %p100 = scmp.ne.s32.totalorder %s92, %s94
    %p101 = scmp.eq.s32.totalorder %s21, 1
    %p102 = por %p100, %p101
    %p103 = scmp.ne.s32.totalorder %s94, %s95
    %p104 = scmp.eq.s32.totalorder %s21, 0
    %p105 = por %p103, %p104
    %p106 = scmp.ne.s32.totalorder %s94, %s95
    %p107 = scmp.eq.s32.totalorder %s22, 1
    %p108 = por %p106, %p107
    %p110 = scmp.ne.s32.totalorder %s95, %s109
    %p111 = scmp.eq.s32.totalorder %s22, 0
    %p112 = por %p110, %p111
    %s114 = sadd.s32 %s113, 1
    %p117 = scmp.eq.s32.totalorder %s16, 1
    %p118 = scmp.ne.s32.totalorder %s113, %s115
    %p119 = scmp.eq.s32.totalorder %s16, 0
    %p120 = por %p118, %p119
    %p121 = scmp.ne.s32.totalorder %s113, %s115
    %p122 = scmp.eq.s32.totalorder %s21, 1
    %p123 = por %p121, %p122
    %p124 = scmp.ne.s32.totalorder %s115, %s116
    %p125 = scmp.eq.s32.totalorder %s21, 0
    %p126 = por %p124, %p125
    %p127 = scmp.ne.s32.totalorder %s115, %s116
    %p128 = scmp.eq.s32.totalorder %s22, 1
    %p129 = por %p127, %p128
    %p131 = scmp.ne.s32.totalorder %s116, %s130
    %p132 = scmp.eq.s32.totalorder %s22, 0
    %p133 = por %p131, %p132
    %s135 = sadd.s32 %s134, 1
    %p138 = scmp.eq.s32.totalorder %s16, 1
    %p139 = scmp.ne.s32.totalorder %s134, %s136
    %p140 = scmp.eq.s32.totalorder %s16, 0
    %p141 = por %p139, %p140
    %p142 = scmp.ne.s32.totalorder %s134, %s136
    %p143 = scmp.eq.s32.totalorder %s21, 1
    %p144 = por %p142, %p143
    %p145 = scmp.ne.s32.totalorder %s136, %s137
    %p146 = scmp.eq.s32.totalorder %s21, 0
    %p147 = por %p145, %p146
    %p148 = scmp.ne.s32.totalorder %s136, %s137
    %p149 = scmp.eq.s32.totalorder %s22, 1
    %p150 = por %p148, %p149
    %p152 = scmp.ne.s32.totalorder %s137, %s151
    %p153 = scmp.eq.s32.totalorder %s22, 0
    %p154 = por %p152, %p153
    %s156 = sadd.s32 %s155, 1
    %p159 = scmp.eq.s32.totalorder %s16, 1
    %p160 = scmp.ne.s32.totalorder %s155, %s157
    %p161 = scmp.eq.s32.totalorder %s16, 0
    %p162 = por %p160, %p161
    %p163 = scmp.ne.s32.totalorder %s155, %s157
    %p164 = scmp.eq.s32.totalorder %s21, 1
    %p165 = por %p163, %p164
    %p166 = scmp.ne.s32.totalorder %s157, %s158
    %p167 = scmp.eq.s32.totalorder %s21, 0
    %p168 = por %p166, %p167
    %p169 = scmp.ne.s32.totalorder %s157, %s158
    %p170 = scmp.eq.s32.totalorder %s22, 1
    %p171 = por %p169, %p170
    %p173 = scmp.ne.s32.totalorder %s158, %s172
    %p174 = scmp.eq.s32.totalorder %s22, 0
    %p175 = por %p173, %p174
    %s177 = sadd.s32 %s176, 1
    %p180 = scmp.eq.s32.totalorder %s16, 1
    %p181 = scmp.ne.s32.totalorder %s176, %s178
    %p182 = scmp.eq.s32.totalorder %s16, 0
    %p183 = por %p181, %p182
    %p184 = scmp.ne.s32.totalorder %s176, %s178
    %p185 = scmp.eq.s32.totalorder %s21, 1
    %p186 = por %p184, %p185
    %p187 = scmp.ne.s32.totalorder %s178, %s179
    %p188 = scmp.eq.s32.totalorder %s21, 0
    %p189 = por %p187, %p188
    %p190 = scmp.ne.s32.totalorder %s178, %s179
    %p191 = scmp.eq.s32.totalorder %s22, 1
    %p192 = por %p190, %p191
    %p194 = scmp.ne.s32.totalorder %s179, %s193
    %p195 = scmp.eq.s32.totalorder %s22, 0
    %p196 = por %p194, %p195
    %s198 = sadd.s32 %s197, 1
    %p201 = scmp.eq.s32.totalorder %s16, 1
    %p202 = scmp.ne.s32.totalorder %s197, %s199
    %p203 = scmp.eq.s32.totalorder %s16, 0
    %p204 = por %p202, %p203
    %p205 = scmp.ne.s32.totalorder %s197, %s199
    %p206 = scmp.eq.s32.totalorder %s21, 1
    %p207 = por %p205, %p206
    %p208 = scmp.ne.s32.totalorder %s199, %s200
    %p209 = scmp.eq.s32.totalorder %s21, 0
    %p210 = por %p208, %p209
    %p211 = scmp.ne.s32.totalorder %s199, %s200
    %p212 = scmp.eq.s32.totalorder %s22, 1
    %p213 = por %p211, %p212
    %p215 = scmp.ne.s32.totalorder %s200, %s214
    %p216 = scmp.eq.s32.totalorder %s22, 0
    %p217 = por %p215, %p216
    %s219 = sadd.s32 %s218, 1
    %p222 = scmp.eq.s32.totalorder %s16, 1
    %p223 = scmp.ne.s32.totalorder %s218, %s220
    %p224 = scmp.eq.s32.totalorder %s16, 0
    %p225 = por %p223, %p224
    %p226 = scmp.ne.s32.totalorder %s218, %s220
    %p227 = scmp.eq.s32.totalorder %s21, 1
    %p228 = por %p226, %p227
    %p229 = scmp.ne.s32.totalorder %s220, %s221
    %p230 = scmp.eq.s32.totalorder %s21, 0
    %p231 = por %p229, %p230
    %p232 = scmp.ne.s32.totalorder %s220, %s221
    %p233 = scmp.eq.s32.totalorder %s22, 1
    %p234 = por %p232, %p233
    %p236 = scmp.ne.s32.totalorder %s221, %s235
    %p237 = scmp.eq.s32.totalorder %s22, 0
    %p238 = por %p236, %p237
    %s239 = ssub.s32 %s16, %s23
    %p240 = scmp.eq.s32.totalorder %s239, 0
    %s242 = sadd.s32 %s241, 1
    %s243 = scalar_select %p240, %s241, %s242
    %p246 = pneg %p240
    %p247 = scmp.eq.s32.totalorder %s16, 1
    %p248 = por %p246, %p247
    %p249 = scmp.ne.s32.totalorder %s241, %s244
    %p250 = scmp.eq.s32.totalorder %s16, 0
    %p251 = por %p249, %p250
    %p252 = scmp.ne.s32.totalorder %s241, %s244
    %p253 = scmp.eq.s32.totalorder %s21, 1
    %p254 = por %p252, %p253
    %p255 = scmp.ne.s32.totalorder %s244, %s245
    %p256 = scmp.eq.s32.totalorder %s21, 0
    %p257 = por %p255, %p256
    %p258 = scmp.ne.s32.totalorder %s244, %s245
    %p259 = scmp.eq.s32.totalorder %s22, 1
    %p260 = por %p258, %p259
    %p262 = scmp.ne.s32.totalorder %s245, %s261
    %p263 = scmp.eq.s32.totalorder %s22, 0
    %p264 = por %p262, %p263
    %p265 = scmp.le.s32.totalorder 1, %s16
    %p266 = scmp.lt.s32.totalorder %s16, 3
    %p267 = pnand %p265, %p266
    %p268 = pneg %p267
    // Predicated region
    $region9: #{bottleneck_forward.1} parent=5 // pred_check
      _
    $region10: #{bottleneck_forward.1} parent=5 // pred_check_branch
      %270 = sbr.rel (%p267) target = $region12
    $region11: #{bottleneck_forward.1} parent=5 // pred_region
      %s271 = ssub.s32 %s16, 1
      // Predicated region
      $region13: #{bottleneck_forward.1} parent=11 // pred_check
        %p272 = pneg %p63
      $region14: #{bottleneck_forward.1} parent=11 // pred_check_branch
        %274 = sbr.rel (%p272) target = $region16
      $region15: #{bottleneck_forward.1} parent=11 // pred_region
        _
      $region16: #{bottleneck_forward.1} parent=11 // pred_fallthru
        _
      // Predicated region
      $region17: #{bottleneck_forward.1} parent=11 // pred_check
        %p275 = pneg %p84
      $region18: #{bottleneck_forward.1} parent=11 // pred_check_branch
        %277 = sbr.rel (%p275) target = $region20
      $region19: #{bottleneck_forward.1} parent=11 // pred_region
        _
      $region20: #{bottleneck_forward.1} parent=11 // pred_fallthru
        _
      // Predicated region
      $region21: #{bottleneck_forward.1} parent=11 // pred_check
        %p278 = pneg %p105
      $region22: #{bottleneck_forward.1} parent=11 // pred_check_branch
        %280 = sbr.rel (%p278) target = $region24
      $region23: #{bottleneck_forward.1} parent=11 // pred_region
        _
      $region24: #{bottleneck_forward.1} parent=11 // pred_fallthru
        _
      // Predicated region
      $region25: #{bottleneck_forward.1} parent=11 // pred_check
        %p281 = pneg %p126
      $region26: #{bottleneck_forward.1} parent=11 // pred_check_branch
        %283 = sbr.rel (%p281) target = $region28
      $region27: #{bottleneck_forward.1} parent=11 // pred_region
        _
      $region28: #{bottleneck_forward.1} parent=11 // pred_fallthru
        _
      // Predicated region
      $region29: #{bottleneck_forward.1} parent=11 // pred_check
        %p284 = pneg %p147
      $region30: #{bottleneck_forward.1} parent=11 // pred_check_branch
        %286 = sbr.rel (%p284) target = $region32
      $region31: #{bottleneck_forward.1} parent=11 // pred_region
        _
      $region32: #{bottleneck_forward.1} parent=11 // pred_fallthru
        _
      // Predicated region
      $region33: #{bottleneck_forward.1} parent=11 // pred_check
        %p287 = pneg %p168
      $region34: #{bottleneck_forward.1} parent=11 // pred_check_branch
        %289 = sbr.rel (%p287) target = $region36
      $region35: #{bottleneck_forward.1} parent=11 // pred_region
        _
      $region36: #{bottleneck_forward.1} parent=11 // pred_fallthru
        _
      // Predicated region
      $region37: #{bottleneck_forward.1} parent=11 // pred_check
        %p290 = pneg %p189
      $region38: #{bottleneck_forward.1} parent=11 // pred_check_branch
        %292 = sbr.rel (%p290) target = $region40
      $region39: #{bottleneck_forward.1} parent=11 // pred_region
        _
      $region40: #{bottleneck_forward.1} parent=11 // pred_fallthru
        _
      // Predicated region
      $region41: #{bottleneck_forward.1} parent=11 // pred_check
        %p293 = pneg %p210
      $region42: #{bottleneck_forward.1} parent=11 // pred_check_branch
        %295 = sbr.rel (%p293) target = $region44
      $region43: #{bottleneck_forward.1} parent=11 // pred_region
        _
      $region44: #{bottleneck_forward.1} parent=11 // pred_fallthru
        _
      // Predicated region
      $region45: #{bottleneck_forward.1} parent=11 // pred_check
        %p296 = pneg %p231
      $region46: #{bottleneck_forward.1} parent=11 // pred_check_branch
        %298 = sbr.rel (%p296) target = $region48
      $region47: #{bottleneck_forward.1} parent=11 // pred_region
        _
      $region48: #{bottleneck_forward.1} parent=11 // pred_fallthru
        _
    $region12: #{bottleneck_forward.1} parent=5 // pred_fallthru
      _
    %p299 = scmp.lt.s32.totalorder %s16, 2
    // Predicated region
    $region49: #{bottleneck_forward.1} parent=5 // pred_check
      %p300 = pneg %p299
    $region50: #{bottleneck_forward.1} parent=5 // pred_check_branch
      %302 = sbr.rel (%p300) target = $region52
    $region51: #{bottleneck_forward.1} parent=5 // pred_region
      // Predicated region
      $region53: #{bottleneck_forward.1} parent=51 // pred_check
        %p303 = pneg %p36
      $region54: #{bottleneck_forward.1} parent=51 // pred_check_branch
        %305 = sbr.rel (%p303) target = $region56
      $region55: #{bottleneck_forward.1} parent=51 // pred_region
        %p306 = scmp.lt.s32.totalorder %s16, 1
        %s307 = scalar_select %p306, %s16, 1
        %s308 = smul.addr %s307, 45
        %s309 = smul.addr %s308, 4
        %s310 = scalar_lea.vmem %s0, %s309
      $region56: #{bottleneck_forward.1} parent=51 // pred_fallthru
        _
    $region52: #{bottleneck_forward.1} parent=5 // pred_fallthru
      _
    %p311 = scmp.le.s32.totalorder 1, %s16
    %p312 = scmp.lt.s32.totalorder %s16, 3
    %p313 = pnand %p311, %p312
    %p314 = pneg %p313
    // Predicated region
    $region57: #{bottleneck_forward.1} parent=5 // pred_check
      _
    $region58: #{bottleneck_forward.1} parent=5 // pred_check_branch
      %316 = sbr.rel (%p313) target = $region60
    $region59: #{bottleneck_forward.1} parent=5 // pred_region
      %s317 = ssub.s32 %s16, 1
      %p318 = scmp.lt.s32.totalorder %s21, 1
      %s319 = scalar_select %p318, %s21, 1
      %s320 = smul.addr %s319, 45
      %s321 = smul.addr %s320, 4
      %s322 = scalar_lea.vmem %s0, %s321
      %p323 = pneg %p42
      %p324 = pneg %p39
      %p325 = pneg %p63
      %p326 = pneg %p60
      %p327 = pneg %p84
      %p328 = pneg %p81
      %p329 = pneg %p105
      %p330 = pneg %p102
      %p331 = pneg %p126
      %p332 = pneg %p123
      %p333 = pneg %p147
      %p334 = pneg %p144
      %p335 = pneg %p168
      %p336 = pneg %p165
      %p337 = pneg %p189
      %p338 = pneg %p186
      %p339 = pneg %p210
      %p340 = pneg %p207
      %p341 = pneg %p231
      %p342 = pneg %p228
      %p343 = pneg %p257
      %p344 = pneg %p254
      %p345 = scmp.lt.s32.totalorder %s21, 1
      %s346 = scalar_select %p345, %s21, 1
      %s347 = smul.addr %s346, 36
      %s348 = smul.addr %s347, 8
      %s349 = scalar_lea.vmem %s10, %s348
      %p350 = scmp.lt.s32.totalorder %s21, 1
      %s351 = scalar_select %p350, %s21, 1
      %s352 = smul.addr %s351, 45
      %s353 = smul.addr %s352, 4
      %s354 = scalar_lea.vmem %s0, %s353
      %p355 = scmp.lt.s32.totalorder %s21, 1
      %s356 = scalar_select %p355, %s21, 1
      %s357 = smul.addr %s356, 36
      %s358 = smul.addr %s357, 8
      %s359 = scalar_lea.vmem %s10, %s358
      %v361 = vld [vmem:[%s354] sm:$0xf]
      %v362 = vld [vmem:[%s354 + $0x4] sm:$0xf]
      %v363 = vld [vmem:[%s354 + $0x8] sm:$0xf]
      %v364 = vld [vmem:[%s354 + $0xc] sm:$0xf]
      %v365 = vld [vmem:[%s354 + $0x10] sm:$0xf]
      %v366 = vld [vmem:[%s354 + $0x14] sm:$0xf]
      %v367 = vld [vmem:[%s354 + $0x18] sm:$0xf]
      %v368 = vld [vmem:[%s354 + $0x1c] sm:$0xf]
      %v369 = vld [vmem:[%s354 + $0x20] sm:$0xf]
      %v370 = vld [vmem:[%s354 + $0x24] sm:$0xf]
      %v371 = vld [vmem:[%s354 + $0x28] sm:$0xf]
      %v372 = vld [vmem:[%s354 + $0x2c] sm:$0xf]
      %v373 = vld [vmem:[%s354 + $0x30] sm:$0xf]
      %v374 = vld [vmem:[%s354 + $0x34] sm:$0xf]
      %v375 = vld [vmem:[%s354 + $0x38] sm:$0xf]
      %v376 = vld [vmem:[%s354 + $0x3c] sm:$0xf]
      %v377 = vld [vmem:[%s354 + $0x40] sm:$0xf]
      %v378 = vld [vmem:[%s354 + $0x44] sm:$0xf]
      %v379 = vld [vmem:[%s354 + $0x48] sm:$0xf]
      %v380 = vld [vmem:[%s354 + $0x4c] sm:$0xf]
      %v381 = vld [vmem:[%s354 + $0x50] sm:$0xf]
      %v382 = vld [vmem:[%s354 + $0x54] sm:$0xf]
      %v383 = vld [vmem:[%s354 + $0x58] sm:$0xf]
      %v384 = vld [vmem:[%s354 + $0x5c] sm:$0xf]
      %v385 = vld [vmem:[%s354 + $0x60] sm:$0xf]
      %v386 = vld [vmem:[%s354 + $0x64] sm:$0xf]
      %v387 = vld [vmem:[%s354 + $0x68] sm:$0xf]
      %v388 = vld [vmem:[%s354 + $0x6c] sm:$0xf]
      %v389 = vld [vmem:[%s354 + $0x70] sm:$0xf]
      %v390 = vld [vmem:[%s354 + $0x74] sm:$0xf]
      %v391 = vld [vmem:[%s354 + $0x78] sm:$0xf]
      %v392 = vld [vmem:[%s354 + $0x7c] sm:$0xf]
      %v393 = vld [vmem:[%s354 + $0x80] sm:$0xf]
      %v394 = vld [vmem:[%s354 + $0x84] sm:$0xf]
      %v395 = vld [vmem:[%s354 + $0x88] sm:$0xf]
      %v396 = vld [vmem:[%s354 + $0x8c] sm:$0xf]
      %v397 = vld [vmem:[%s354 + $0x90] sm:$0xf]
      %v398 = vld [vmem:[%s354 + $0x94] sm:$0xf]
      %v399 = vld [vmem:[%s354 + $0x98] sm:$0xf]
      %v400 = vld [vmem:[%s354 + $0x9c] sm:$0xf]
      %v401 = vld [vmem:[%s354 + $0xa0] sm:$0xf]
      %v402 = vld [vmem:[%s354 + $0xa4] sm:$0xf]
      %v403 = vld [vmem:[%s354 + $0xa8] sm:$0xf]
      %v404 = vld [vmem:[%s354 + $0xac] sm:$0xf]
      %v405 = vld [vmem:[%s354 + $0xb0] sm:$0xf]
      %v406 = vld [vmem:[%s2] sm:$0xf]
      %v407 = vld [vmem:[%s2 + $0x4] sm:$0xf]
      %v408 = vld [vmem:[%s2 + $0x8] sm:$0xf]
      %v409 = vld [vmem:[%s2 + $0xc] sm:$0xf]
      %v410 = vld [vmem:[%s3] sm:$0x1]
      %v412 = vperm.slane %v410, 0
      %v459 = vunpack.c.l.b16 %v361
      %v460 = vunpack.c.l.b16 %v362
      %v461 = vunpack.c.l.b16 %v363
      %v462 = vunpack.c.l.b16 %v364
      %v463 = vunpack.c.l.b16 %v365
      %v464 = vunpack.c.l.b16 %v366
      %v465 = vunpack.c.l.b16 %v367
      %v466 = vunpack.c.l.b16 %v368
      %v467 = vunpack.c.l.b16 %v369
      %v468 = vunpack.c.l.b16 %v370
      %v469 = vunpack.c.l.b16 %v371
      %v470 = vunpack.c.l.b16 %v372
      %v471 = vunpack.c.l.b16 %v373
      %v472 = vunpack.c.l.b16 %v374
      %v473 = vunpack.c.l.b16 %v375
      %v474 = vunpack.c.l.b16 %v376
      %v475 = vunpack.c.l.b16 %v377
      %v476 = vunpack.c.l.b16 %v378
      %v477 = vunpack.c.l.b16 %v379
      %v478 = vunpack.c.l.b16 %v380
      %v479 = vunpack.c.l.b16 %v381
      %v480 = vunpack.c.l.b16 %v382
      %v481 = vunpack.c.l.b16 %v383
      %v482 = vunpack.c.l.b16 %v384
      %v483 = vunpack.c.l.b16 %v385
      %v484 = vunpack.c.l.b16 %v386
      %v485 = vunpack.c.l.b16 %v387
      %v486 = vunpack.c.l.b16 %v388
      %v487 = vunpack.c.l.b16 %v389
      %v488 = vunpack.c.l.b16 %v390
      %v489 = vunpack.c.l.b16 %v391
      %v490 = vunpack.c.l.b16 %v392
      %v491 = vunpack.c.l.b16 %v393
      %v492 = vunpack.c.l.b16 %v394
      %v493 = vunpack.c.l.b16 %v395
      %v494 = vunpack.c.l.b16 %v396
      %v495 = vunpack.c.l.b16 %v397
      %v496 = vunpack.c.l.b16 %v398
      %v497 = vunpack.c.l.b16 %v399
      %v498 = vunpack.c.l.b16 %v400
      %v499 = vunpack.c.l.b16 %v401
      %v500 = vunpack.c.l.b16 %v402
      %v501 = vunpack.c.l.b16 %v403
      %v502 = vunpack.c.l.b16 %v404
      %v503 = vunpack.c.l.b16 %v405
      %v504 = vpack.c.b16 %v460, %v459
      %v505 = vpack.c.b16 %v462, %v461
      %v506 = vpack.c.b16 %v464, %v463
      %v507 = vpack.c.b16 %v466, %v465
      %v508 = vpack.c.b16 %v468, %v467
      %v509 = vpack.c.b16 %v470, %v469
      %v510 = vpack.c.b16 %v472, %v471
      %v511 = vpack.c.b16 %v474, %v473
      %v512 = vpack.c.b16 %v476, %v475
      %v513 = vpack.c.b16 %v478, %v477
      %v514 = vpack.c.b16 %v480, %v479
      %v515 = vpack.c.b16 %v482, %v481
      %v516 = vpack.c.b16 %v484, %v483
      %v517 = vpack.c.b16 %v486, %v485
      %v518 = vpack.c.b16 %v488, %v487
      %v519 = vpack.c.b16 %v490, %v489
      %v520 = vpack.c.b16 %v492, %v491
      %v521 = vpack.c.b16 %v494, %v493
      %v522 = vpack.c.b16 %v496, %v495
      %v523 = vpack.c.b16 %v498, %v497
      %v524 = vpack.c.b16 %v500, %v499
      %v525 = vpack.c.b16 %v502, %v501
      %v526 = vpack.c.b16 %v503, %v503
      %v531 = vunpack.c.l.b16 %v406
      %v532 = vunpack.c.l.b16 %v407
      %v533 = vunpack.c.l.b16 %v408
      %v534 = vunpack.c.l.b16 %v409
      %v535 = vpack.c.b16 %v532, %v531
      %v536 = vpack.c.b16 %v534, %v533
      %vm539 = vcmask 261120
      %v541 = vsel %vm539, %v504, 0
      %v544 = vsel %vm539, %v505, 0
      %v547 = vsel %vm539, %v506, 0
      %v550 = vsel %vm539, %v507, 0
      %v553 = vsel %vm539, %v508, 0
      %v556 = vsel %vm539, %v509, 0
      %v559 = vsel %vm539, %v510, 0
      %v562 = vsel %vm539, %v511, 0
      %v565 = vsel %vm539, %v512, 0
      %v568 = vsel %vm539, %v513, 0
      %v571 = vsel %vm539, %v514, 0
      %v574 = vsel %vm539, %v515, 0
      %v577 = vsel %vm539, %v516, 0
      %v580 = vsel %vm539, %v517, 0
      %v583 = vsel %vm539, %v518, 0
      %v586 = vsel %vm539, %v519, 0
      %v589 = vsel %vm539, %v520, 0
      %v592 = vsel %vm539, %v521, 0
      %v595 = vsel %vm539, %v522, 0
      %v598 = vsel %vm539, %v523, 0
      %v601 = vsel %vm539, %v524, 0
      %v604 = vsel %vm539, %v525, 0
      %v607 = vsel %vm539, %v526, 0
      %609 = vmatpush.bf16.msra.mxu0 0
      %610 = vmatpush.bf16.msra.mxu0 0
      %611 = vmatpush.bf16.msra.mxu0 0
      %612 = vmatpush.bf16.msra.mxu0 0
      %613 = vmatpush.bf16.msra.mxu0 0
      %614 = vmatpush.bf16.msra.mxu0 0
      %615 = vmatpush.bf16.msra.mxu0 %v536
      %616 = vmatpush.bf16.msra.mxu0 %v535
      %617 = vmatmul.bf16.gmra.mxu0 %v541
      %v618 = vpop.f32.mrf.mxu0
      %v619 = vadd.f32 %v412, %v618
      %v620 = vpop.f32.mrf.mxu0
      %v621 = vadd.f32 %v412, %v620
      %622 = vmatmul.bf16.gmra.mxu0 %v544
      %v623 = vpop.f32.mrf.mxu0
      %v624 = vadd.f32 %v412, %v623
      %v625 = vpop.f32.mrf.mxu0
      %v626 = vadd.f32 %v412, %v625
      %627 = vmatmul.bf16.gmra.mxu0 %v547
      %v628 = vpop.f32.mrf.mxu0
      %v629 = vadd.f32 %v412, %v628
      %v630 = vpop.f32.mrf.mxu0
      %v631 = vadd.f32 %v412, %v630
      %632 = vmatmul.bf16.gmra.mxu0 %v550
      %v633 = vpop.f32.mrf.mxu0
      %v634 = vadd.f32 %v412, %v633
      %v635 = vpop.f32.mrf.mxu0
      %v636 = vadd.f32 %v412, %v635
      %637 = vmatmul.bf16.gmra.mxu0 %v553
      %v638 = vpop.f32.mrf.mxu0
      %v639 = vadd.f32 %v412, %v638
      %v640 = vpop.f32.mrf.mxu0
      %v641 = vadd.f32 %v412, %v640
      %642 = vmatmul.bf16.gmra.mxu0 %v556
      %v643 = vpop.f32.mrf.mxu0
      %v644 = vadd.f32 %v412, %v643
      %v645 = vpop.f32.mrf.mxu0
      %v646 = vadd.f32 %v412, %v645
      %647 = vmatmul.bf16.gmra.mxu0 %v559
      %v648 = vpop.f32.mrf.mxu0
      %v649 = vadd.f32 %v412, %v648
      %v650 = vpop.f32.mrf.mxu0
      %v651 = vadd.f32 %v412, %v650
      %652 = vmatmul.bf16.gmra.mxu0 %v562
      %v653 = vpop.f32.mrf.mxu0
      %v654 = vadd.f32 %v412, %v653
      %v655 = vpop.f32.mrf.mxu0
      %v656 = vadd.f32 %v412, %v655
      %657 = vmatmul.bf16.gmra.mxu0 %v565
      %v658 = vpop.f32.mrf.mxu0
      %v659 = vadd.f32 %v412, %v658
      %v660 = vpop.f32.mrf.mxu0
      %v661 = vadd.f32 %v412, %v660
      %662 = vmatmul.bf16.gmra.mxu0 %v568
      %v663 = vpop.f32.mrf.mxu0
      %v664 = vadd.f32 %v412, %v663
      %v665 = vpop.f32.mrf.mxu0
      %v666 = vadd.f32 %v412, %v665
      %667 = vmatmul.bf16.gmra.mxu0 %v571
      %v668 = vpop.f32.mrf.mxu0
      %v669 = vadd.f32 %v412, %v668
      %v670 = vpop.f32.mrf.mxu0
      %v671 = vadd.f32 %v412, %v670
      %672 = vmatmul.bf16.gmra.mxu0 %v574
      %v673 = vpop.f32.mrf.mxu0
      %v674 = vadd.f32 %v412, %v673
      %v675 = vpop.f32.mrf.mxu0
      %v676 = vadd.f32 %v412, %v675
      %677 = vmatmul.bf16.gmra.mxu0 %v577
      %v678 = vpop.f32.mrf.mxu0
      %v679 = vadd.f32 %v412, %v678
      %v680 = vpop.f32.mrf.mxu0
      %v681 = vadd.f32 %v412, %v680
      %682 = vmatmul.bf16.gmra.mxu0 %v580
      %v683 = vpop.f32.mrf.mxu0
      %v684 = vadd.f32 %v412, %v683
      %v685 = vpop.f32.mrf.mxu0
      %v686 = vadd.f32 %v412, %v685
      %687 = vmatmul.bf16.gmra.mxu0 %v583
      %v688 = vpop.f32.mrf.mxu0
      %v689 = vadd.f32 %v412, %v688
      %v690 = vpop.f32.mrf.mxu0
      %v691 = vadd.f32 %v412, %v690
      %692 = vmatmul.bf16.gmra.mxu0 %v586
      %v693 = vpop.f32.mrf.mxu0
      %v694 = vadd.f32 %v412, %v693
      %v695 = vpop.f32.mrf.mxu0
      %v696 = vadd.f32 %v412, %v695
      %697 = vmatmul.bf16.gmra.mxu0 %v589
      %v698 = vpop.f32.mrf.mxu0
      %v699 = vadd.f32 %v412, %v698
      %v700 = vpop.f32.mrf.mxu0
      %v701 = vadd.f32 %v412, %v700
      %702 = vmatmul.bf16.gmra.mxu0 %v592
      %v703 = vpop.f32.mrf.mxu0
      %v704 = vadd.f32 %v412, %v703
      %v705 = vpop.f32.mrf.mxu0
      %v706 = vadd.f32 %v412, %v705
      %707 = vmatmul.bf16.gmra.mxu0 %v595
      %v708 = vpop.f32.mrf.mxu0
      %v709 = vadd.f32 %v412, %v708
      %v710 = vpop.f32.mrf.mxu0
      %v711 = vadd.f32 %v412, %v710
      %712 = vmatmul.bf16.gmra.mxu0 %v598
      %v713 = vpop.f32.mrf.mxu0
      %v714 = vadd.f32 %v412, %v713
      %v715 = vpop.f32.mrf.mxu0
      %v716 = vadd.f32 %v412, %v715
      %717 = vmatmul.bf16.gmra.mxu0 %v601
      %v718 = vpop.f32.mrf.mxu0
      %v719 = vadd.f32 %v412, %v718
      %v720 = vpop.f32.mrf.mxu0
      %v721 = vadd.f32 %v412, %v720
      %722 = vmatmul.bf16.gmra.mxu0 %v604
      %v723 = vpop.f32.mrf.mxu0
      %v724 = vadd.f32 %v412, %v723
      %v725 = vpop.f32.mrf.mxu0
      %v726 = vadd.f32 %v412, %v725
      %727 = vmatmul.bf16.gmra.mxu0 %v607
      %v728 = vpop.f32.mrf.mxu0
      %v729 = vadd.f32 %v412, %v728
      %v730 = vpop.f32.mrf.mxu0
      %731 = vdwg.mxu0
      %v732 = vmax.f32 %v619, 0.0
      %v733 = vmax.f32 %v621, 0.0
      %v734 = vmax.f32 %v624, 0.0
      %v735 = vmax.f32 %v626, 0.0
      %v736 = vmax.f32 %v629, 0.0
      %v737 = vmax.f32 %v631, 0.0
      %v738 = vmax.f32 %v634, 0.0
      %v739 = vmax.f32 %v636, 0.0
      %v740 = vmax.f32 %v639, 0.0
      %v741 = vmax.f32 %v641, 0.0
      %v742 = vmax.f32 %v644, 0.0
      %v743 = vmax.f32 %v646, 0.0
      %v744 = vmax.f32 %v649, 0.0
      %v745 = vmax.f32 %v651, 0.0
      %v746 = vmax.f32 %v654, 0.0
      %v747 = vmax.f32 %v656, 0.0
      %v748 = vmax.f32 %v659, 0.0
      %v749 = vmax.f32 %v661, 0.0
      %v750 = vmax.f32 %v664, 0.0
      %v751 = vmax.f32 %v666, 0.0
      %v752 = vmax.f32 %v669, 0.0
      %v753 = vmax.f32 %v671, 0.0
      %v754 = vmax.f32 %v674, 0.0
      %v755 = vmax.f32 %v676, 0.0
      %v756 = vmax.f32 %v679, 0.0
      %v757 = vmax.f32 %v681, 0.0
      %v758 = vmax.f32 %v684, 0.0
      %v759 = vmax.f32 %v686, 0.0
      %v760 = vmax.f32 %v689, 0.0
      %v761 = vmax.f32 %v691, 0.0
      %v762 = vmax.f32 %v694, 0.0
      %v763 = vmax.f32 %v696, 0.0
      %v764 = vmax.f32 %v699, 0.0
      %v765 = vmax.f32 %v701, 0.0
      %v766 = vmax.f32 %v704, 0.0
      %v767 = vmax.f32 %v706, 0.0
      %v768 = vmax.f32 %v709, 0.0
      %v769 = vmax.f32 %v711, 0.0
      %v770 = vmax.f32 %v714, 0.0
      %v771 = vmax.f32 %v716, 0.0
      %v772 = vmax.f32 %v719, 0.0
      %v773 = vmax.f32 %v721, 0.0
      %v774 = vmax.f32 %v724, 0.0
      %v775 = vmax.f32 %v726, 0.0
      %v776 = vmax.f32 %v729, 0.0
      %v777 = vld [vmem:[%s1] sm:$0xff]
      %v778 = vld [vmem:[%s1 + $0x8] sm:$0xff]
      %v779 = vld [vmem:[%s1 + $0x10] sm:$0xff]
      %v780 = vld [vmem:[%s1 + $0x18] sm:$0xff]
      %v781 = vld [vmem:[%s1 + $0x20] sm:$0xff]
      %v782 = vld [vmem:[%s1 + $0x28] sm:$0xff]
      %v783 = vld [vmem:[%s1 + $0x30] sm:$0xff]
      %v784 = vld [vmem:[%s1 + $0x38] sm:$0xff]
      %v785 = vld [vmem:[%s1 + $0x40] sm:$0xff]
      %v786 = vld [vmem:[%s1 + $0x48] sm:$0xff]
      %v787 = vld [vmem:[%s1 + $0x50] sm:$0xff]
      %v788 = vld [vmem:[%s1 + $0x58] sm:$0xff]
      %v789 = vld [vmem:[%s1 + $0x60] sm:$0xff]
      %v790 = vld [vmem:[%s1 + $0x68] sm:$0xff]
      %v791 = vld [vmem:[%s1 + $0x70] sm:$0xff]
      %v792 = vld [vmem:[%s1 + $0x78] sm:$0xff]
      %v793 = vld [vmem:[%s1 + $0x80] sm:$0xff]
      %v794 = vld [vmem:[%s1 + $0x88] sm:$0xff]
      %v795 = vld [vmem:[%s1 + $0x90] sm:$0xff]
      %v796 = vld [vmem:[%s1 + $0x98] sm:$0xff]
      %v797 = vld [vmem:[%s1 + $0xa0] sm:$0xff]
      %v798 = vld [vmem:[%s1 + $0xa8] sm:$0xff]
      %v799 = vld [vmem:[%s1 + $0xb0] sm:$0xff]
      %v800 = vld [vmem:[%s1 + $0xb8] sm:$0xff]
      %v801 = vld [vmem:[%s1 + $0xc0] sm:$0xff]
      %v802 = vld [vmem:[%s1 + $0xc8] sm:$0xff]
      %v803 = vld [vmem:[%s1 + $0xd0] sm:$0xff]
      %v804 = vld [vmem:[%s1 + $0xd8] sm:$0xff]
      %v805 = vld [vmem:[%s1 + $0xe0] sm:$0xff]
      %v806 = vld [vmem:[%s1 + $0xe8] sm:$0xff]
      %v807 = vld [vmem:[%s1 + $0xf0] sm:$0xff]
      %v808 = vld [vmem:[%s1 + $0xf8] sm:$0xff]
      %v809 = vld [vmem:[%s1 + $0x100] sm:$0xff]
      %v810 = vld [vmem:[%s1 + $0x108] sm:$0xff]
      %v811 = vld [vmem:[%s1 + $0x110] sm:$0xff]
      %v812 = vld [vmem:[%s1 + $0x118] sm:$0xff]
      %v813 = vld [vmem:[%s1 + $0x120] sm:$0xff]
      %v814 = vld [vmem:[%s1 + $0x128] sm:$0xff]
      %v815 = vld [vmem:[%s1 + $0x130] sm:$0xff]
      %v816 = vld [vmem:[%s1 + $0x138] sm:$0xff]
      %v817 = vld [vmem:[%s1 + $0x140] sm:$0xff]
      %v818 = vld [vmem:[%s1 + $0x148] sm:$0xff]
      %v819 = vld [vmem:[%s1 + $0x150] sm:$0xff]
      %v820 = vld [vmem:[%s1 + $0x158] sm:$0xff]
      %v821 = vld [vmem:[%s1 + $0x160] sm:$0xff]
      %823 = vset.pattern.permute.xlu0 0
      %824 = vperm.xlu0 %823, %v777
      %v825 = vpop.permute.xlu0 %824
      %828 = vset.pattern.permute.xlu0 0
      %829 = vperm.xlu0 %828, %v778
      %v830 = vpop.permute.xlu0 %829
      %833 = vset.pattern.permute.xlu0 0
      %834 = vperm.xlu0 %833, %v779
      %v835 = vpop.permute.xlu0 %834
      %838 = vset.pattern.permute.xlu0 0
      %839 = vperm.xlu0 %838, %v780
      %v840 = vpop.permute.xlu0 %839
      %843 = vset.pattern.permute.xlu0 0
      %844 = vperm.xlu0 %843, %v781
      %v845 = vpop.permute.xlu0 %844
      %848 = vset.pattern.permute.xlu0 0
      %849 = vperm.xlu0 %848, %v782
      %v850 = vpop.permute.xlu0 %849
      %853 = vset.pattern.permute.xlu0 0
      %854 = vperm.xlu0 %853, %v783
      %v855 = vpop.permute.xlu0 %854
      %858 = vset.pattern.permute.xlu0 0
      %859 = vperm.xlu0 %858, %v784
      %v860 = vpop.permute.xlu0 %859
      %863 = vset.pattern.permute.xlu0 0
      %864 = vperm.xlu0 %863, %v785
      %v865 = vpop.permute.xlu0 %864
      %868 = vset.pattern.permute.xlu0 0
      %869 = vperm.xlu0 %868, %v786
      %v870 = vpop.permute.xlu0 %869
      %873 = vset.pattern.permute.xlu0 0
      %874 = vperm.xlu0 %873, %v787
      %v875 = vpop.permute.xlu0 %874
      %878 = vset.pattern.permute.xlu0 0
      %879 = vperm.xlu0 %878, %v788
      %v880 = vpop.permute.xlu0 %879
      %883 = vset.pattern.permute.xlu0 0
      %884 = vperm.xlu0 %883, %v789
      %v885 = vpop.permute.xlu0 %884
      %888 = vset.pattern.permute.xlu0 0
      %889 = vperm.xlu0 %888, %v790
      %v890 = vpop.permute.xlu0 %889
      %893 = vset.pattern.permute.xlu0 0
      %894 = vperm.xlu0 %893, %v791
      %v895 = vpop.permute.xlu0 %894
      %898 = vset.pattern.permute.xlu0 0
      %899 = vperm.xlu0 %898, %v792
      %v900 = vpop.permute.xlu0 %899
      %903 = vset.pattern.permute.xlu0 0
      %904 = vperm.xlu0 %903, %v793
      %v905 = vpop.permute.xlu0 %904
      %908 = vset.pattern.permute.xlu0 0
      %909 = vperm.xlu0 %908, %v794
      %v910 = vpop.permute.xlu0 %909
      %913 = vset.pattern.permute.xlu0 0
      %914 = vperm.xlu0 %913, %v795
      %v915 = vpop.permute.xlu0 %914
      %918 = vset.pattern.permute.xlu0 0
      %919 = vperm.xlu0 %918, %v796
      %v920 = vpop.permute.xlu0 %919
      %923 = vset.pattern.permute.xlu0 0
      %924 = vperm.xlu0 %923, %v797
      %v925 = vpop.permute.xlu0 %924
      %928 = vset.pattern.permute.xlu0 0
      %929 = vperm.xlu0 %928, %v798
      %v930 = vpop.permute.xlu0 %929
      %933 = vset.pattern.permute.xlu0 0
      %934 = vperm.xlu0 %933, %v799
      %v935 = vpop.permute.xlu0 %934
      %938 = vset.pattern.permute.xlu0 0
      %939 = vperm.xlu0 %938, %v800
      %v940 = vpop.permute.xlu0 %939
      %943 = vset.pattern.permute.xlu0 0
      %944 = vperm.xlu0 %943, %v801
      %v945 = vpop.permute.xlu0 %944
      %948 = vset.pattern.permute.xlu0 0
      %949 = vperm.xlu0 %948, %v802
      %v950 = vpop.permute.xlu0 %949
      %953 = vset.pattern.permute.xlu0 0
      %954 = vperm.xlu0 %953, %v803
      %v955 = vpop.permute.xlu0 %954
      %958 = vset.pattern.permute.xlu0 0
      %959 = vperm.xlu0 %958, %v804
      %v960 = vpop.permute.xlu0 %959
      %963 = vset.pattern.permute.xlu0 0
      %964 = vperm.xlu0 %963, %v805
      %v965 = vpop.permute.xlu0 %964
      %968 = vset.pattern.permute.xlu0 0
      %969 = vperm.xlu0 %968, %v806
      %v970 = vpop.permute.xlu0 %969
      %973 = vset.pattern.permute.xlu0 0
      %974 = vperm.xlu0 %973, %v807
      %v975 = vpop.permute.xlu0 %974
      %978 = vset.pattern.permute.xlu0 0
      %979 = vperm.xlu0 %978, %v808
      %v980 = vpop.permute.xlu0 %979
      %983 = vset.pattern.permute.xlu0 0
      %984 = vperm.xlu0 %983, %v809
      %v985 = vpop.permute.xlu0 %984
      %988 = vset.pattern.permute.xlu0 0
      %989 = vperm.xlu0 %988, %v810
      %v990 = vpop.permute.xlu0 %989
      %993 = vset.pattern.permute.xlu0 0
      %994 = vperm.xlu0 %993, %v811
      %v995 = vpop.permute.xlu0 %994
      %998 = vset.pattern.permute.xlu0 0
      %999 = vperm.xlu0 %998, %v812
      %v1000 = vpop.permute.xlu0 %999
      %1003 = vset.pattern.permute.xlu0 0
      %1004 = vperm.xlu0 %1003, %v813
      %v1005 = vpop.permute.xlu0 %1004
      %1008 = vset.pattern.permute.xlu0 0
      %1009 = vperm.xlu0 %1008, %v814
      %v1010 = vpop.permute.xlu0 %1009
      %1013 = vset.pattern.permute.xlu0 0
      %1014 = vperm.xlu0 %1013, %v815
      %v1015 = vpop.permute.xlu0 %1014
      %1018 = vset.pattern.permute.xlu0 0
      %1019 = vperm.xlu0 %1018, %v816
      %v1020 = vpop.permute.xlu0 %1019
      %1023 = vset.pattern.permute.xlu0 0
      %1024 = vperm.xlu0 %1023, %v817
      %v1025 = vpop.permute.xlu0 %1024
      %1028 = vset.pattern.permute.xlu0 0
      %1029 = vperm.xlu0 %1028, %v818
      %v1030 = vpop.permute.xlu0 %1029
      %1033 = vset.pattern.permute.xlu0 0
      %1034 = vperm.xlu0 %1033, %v819
      %v1035 = vpop.permute.xlu0 %1034
      %1038 = vset.pattern.permute.xlu0 0
      %1039 = vperm.xlu0 %1038, %v820
      %v1040 = vpop.permute.xlu0 %1039
      %1043 = vset.pattern.permute.xlu0 0
      %1044 = vperm.xlu0 %1043, %v821
      %v1045 = vpop.permute.xlu0 %1044
      %v1047 = vmul.f32 %v732, %v825
      %v1048 = vmul.f32 %v733, %v830
      %v1049 = vmul.f32 %v734, %v835
      %v1050 = vmul.f32 %v735, %v840
      %v1051 = vmul.f32 %v736, %v845
      %v1052 = vmul.f32 %v737, %v850
      %v1053 = vmul.f32 %v738, %v855
      %v1054 = vmul.f32 %v739, %v860
      %v1055 = vmul.f32 %v740, %v865
      %v1056 = vmul.f32 %v741, %v870
      %v1057 = vmul.f32 %v742, %v875
      %v1058 = vmul.f32 %v743, %v880
      %v1059 = vmul.f32 %v744, %v885
      %v1060 = vmul.f32 %v745, %v890
      %v1061 = vmul.f32 %v746, %v895
      %v1062 = vmul.f32 %v747, %v900
      %v1063 = vmul.f32 %v748, %v905
      %v1064 = vmul.f32 %v749, %v910
      %v1065 = vmul.f32 %v750, %v915
      %v1066 = vmul.f32 %v751, %v920
      %v1067 = vmul.f32 %v752, %v925
      %v1068 = vmul.f32 %v753, %v930
      %v1069 = vmul.f32 %v754, %v935
      %v1070 = vmul.f32 %v755, %v940
      %v1071 = vmul.f32 %v756, %v945
      %v1072 = vmul.f32 %v757, %v950
      %v1073 = vmul.f32 %v758, %v955
      %v1074 = vmul.f32 %v759, %v960
      %v1075 = vmul.f32 %v760, %v965
      %v1076 = vmul.f32 %v761, %v970
      %v1077 = vmul.f32 %v762, %v975
      %v1078 = vmul.f32 %v763, %v980
      %v1079 = vmul.f32 %v764, %v985
      %v1080 = vmul.f32 %v765, %v990
      %v1081 = vmul.f32 %v766, %v995
      %v1082 = vmul.f32 %v767, %v1000
      %v1083 = vmul.f32 %v768, %v1005
      %v1084 = vmul.f32 %v769, %v1010
      %v1085 = vmul.f32 %v770, %v1015
      %v1086 = vmul.f32 %v771, %v1020
      %v1087 = vmul.f32 %v772, %v1025
      %v1088 = vmul.f32 %v773, %v1030
      %v1089 = vmul.f32 %v774, %v1035
      %v1090 = vmul.f32 %v775, %v1040
      %v1091 = vmul.f32 %v776, %v1045
      %vm1092 = vcmask 130048
      %1093 = vst.msk [vmem:[#allocation2] sm:$0xff] %vm1092, %v1047
      %1094 = vst.msk [vmem:[#allocation2 + $0x8] sm:$0xff] %vm1092, %v1048
      %1095 = vst.msk [vmem:[#allocation2 + $0x10] sm:$0xff] %vm1092, %v1049
      %1096 = vst.msk [vmem:[#allocation2 + $0x18] sm:$0xff] %vm1092, %v1050
      %1097 = vst.msk [vmem:[#allocation2 + $0x20] sm:$0xff] %vm1092, %v1051
      %1098 = vst.msk [vmem:[#allocation2 + $0x28] sm:$0xff] %vm1092, %v1052
      %1099 = vst.msk [vmem:[#allocation2 + $0x30] sm:$0xff] %vm1092, %v1053
      %1100 = vst.msk [vmem:[#allocation2 + $0x38] sm:$0xff] %vm1092, %v1054
      %1101 = vst.msk [vmem:[#allocation2 + $0x40] sm:$0xff] %vm1092, %v1055
      %1102 = vst.msk [vmem:[#allocation2 + $0x48] sm:$0xff] %vm1092, %v1056
      %1103 = vst.msk [vmem:[#allocation2 + $0x50] sm:$0xff] %vm1092, %v1057
      %1104 = vst.msk [vmem:[#allocation2 + $0x58] sm:$0xff] %vm1092, %v1058
      %1105 = vst.msk [vmem:[#allocation2 + $0x60] sm:$0xff] %vm1092, %v1059
      %1106 = vst.msk [vmem:[#allocation2 + $0x68] sm:$0xff] %vm1092, %v1060
      %1107 = vst.msk [vmem:[#allocation2 + $0x70] sm:$0xff] %vm1092, %v1061
      %1108 = vst.msk [vmem:[#allocation2 + $0x78] sm:$0xff] %vm1092, %v1062
      %1109 = vst.msk [vmem:[#allocation2 + $0x80] sm:$0xff] %vm1092, %v1063
      %1110 = vst.msk [vmem:[#allocation2 + $0x88] sm:$0xff] %vm1092, %v1064
      %1111 = vst.msk [vmem:[#allocation2 + $0x90] sm:$0xff] %vm1092, %v1065
      %1112 = vst.msk [vmem:[#allocation2 + $0x98] sm:$0xff] %vm1092, %v1066
      %1113 = vst.msk [vmem:[#allocation2 + $0xa0] sm:$0xff] %vm1092, %v1067
      %1114 = vst.msk [vmem:[#allocation2 + $0xa8] sm:$0xff] %vm1092, %v1068
      %1115 = vst.msk [vmem:[#allocation2 + $0xb0] sm:$0xff] %vm1092, %v1069
      %1116 = vst.msk [vmem:[#allocation2 + $0xb8] sm:$0xff] %vm1092, %v1070
      %1117 = vst.msk [vmem:[#allocation2 + $0xc0] sm:$0xff] %vm1092, %v1071
      %1118 = vst.msk [vmem:[#allocation2 + $0xc8] sm:$0xff] %vm1092, %v1072
      %1119 = vst.msk [vmem:[#allocation2 + $0xd0] sm:$0xff] %vm1092, %v1073
      %1120 = vst.msk [vmem:[#allocation2 + $0xd8] sm:$0xff] %vm1092, %v1074
      %1121 = vst.msk [vmem:[#allocation2 + $0xe0] sm:$0xff] %vm1092, %v1075
      %1122 = vst.msk [vmem:[#allocation2 + $0xe8] sm:$0xff] %vm1092, %v1076
      %1123 = vst.msk [vmem:[#allocation2 + $0xf0] sm:$0xff] %vm1092, %v1077
      %1124 = vst.msk [vmem:[#allocation2 + $0xf8] sm:$0xff] %vm1092, %v1078
      %1125 = vst.msk [vmem:[#allocation2 + $0x100] sm:$0xff] %vm1092, %v1079
      %1126 = vst.msk [vmem:[#allocation2 + $0x108] sm:$0xff] %vm1092, %v1080
      %1127 = vst.msk [vmem:[#allocation2 + $0x110] sm:$0xff] %vm1092, %v1081
      %1128 = vst.msk [vmem:[#allocation2 + $0x118] sm:$0xff] %vm1092, %v1082
      %1129 = vst.msk [vmem:[#allocation2 + $0x120] sm:$0xff] %vm1092, %v1083
      %1130 = vst.msk [vmem:[#allocation2 + $0x128] sm:$0xff] %vm1092, %v1084
      %1131 = vst.msk [vmem:[#allocation2 + $0x130] sm:$0xff] %vm1092, %v1085
      %1132 = vst.msk [vmem:[#allocation2 + $0x138] sm:$0xff] %vm1092, %v1086
      %1133 = vst.msk [vmem:[#allocation2 + $0x140] sm:$0xff] %vm1092, %v1087
      %1134 = vst.msk [vmem:[#allocation2 + $0x148] sm:$0xff] %vm1092, %v1088
      %1135 = vst.msk [vmem:[#allocation2 + $0x150] sm:$0xff] %vm1092, %v1089
      %1136 = vst.msk [vmem:[#allocation2 + $0x158] sm:$0xff] %vm1092, %v1090
      %1137 = vst.msk [vmem:[#allocation2 + $0x160] sm:$0xff] %vm1092, %v1091
      %v1138 = vld [vmem:[#allocation2] sm:$0xff]
      %v1139 = vld [vmem:[#allocation2 + $0x8] sm:$0xff]
      %v1140 = vld [vmem:[#allocation2 + $0x10] sm:$0xff]
      %v1141 = vld [vmem:[#allocation2 + $0x18] sm:$0xff]
      %v1142 = vld [vmem:[#allocation2 + $0x20] sm:$0xff]
      %v1143 = vld [vmem:[#allocation2 + $0x28] sm:$0xff]
      %v1144 = vld [vmem:[#allocation2 + $0x30] sm:$0xff]
      %v1145 = vld [vmem:[#allocation2 + $0x38] sm:$0xff]
      %v1146 = vld [vmem:[#allocation2 + $0x40] sm:$0xff]
      %v1147 = vld [vmem:[#allocation2 + $0x48] sm:$0xff]
      %v1148 = vld [vmem:[#allocation2 + $0x50] sm:$0xff]
      %v1149 = vld [vmem:[#allocation2 + $0x58] sm:$0xff]
      %v1150 = vld [vmem:[#allocation2 + $0x60] sm:$0xff]
      %v1151 = vld [vmem:[#allocation2 + $0x68] sm:$0xff]
      %v1152 = vld [vmem:[#allocation2 + $0x70] sm:$0xff]
      %v1153 = vld [vmem:[#allocation2 + $0x78] sm:$0xff]
      %v1154 = vld [vmem:[#allocation2 + $0x80] sm:$0xff]
      %v1155 = vld [vmem:[#allocation2 + $0x88] sm:$0xff]
      %v1156 = vld [vmem:[#allocation2 + $0x90] sm:$0xff]
      %v1157 = vld [vmem:[#allocation2 + $0x98] sm:$0xff]
      %v1158 = vld [vmem:[#allocation2 + $0xa0] sm:$0xff]
      %v1159 = vld [vmem:[#allocation2 + $0xa8] sm:$0xff]
      %v1160 = vld [vmem:[#allocation2 + $0xb0] sm:$0xff]
      %v1161 = vld [vmem:[#allocation2 + $0xb8] sm:$0xff]
      %v1162 = vld [vmem:[#allocation2 + $0xc0] sm:$0xff]
      %v1163 = vld [vmem:[#allocation2 + $0xc8] sm:$0xff]
      %v1164 = vld [vmem:[#allocation2 + $0xd0] sm:$0xff]
      %v1165 = vld [vmem:[#allocation2 + $0xd8] sm:$0xff]
      %v1166 = vld [vmem:[#allocation2 + $0xe0] sm:$0xff]
      %v1167 = vld [vmem:[#allocation2 + $0xe8] sm:$0xff]
      %v1168 = vld [vmem:[#allocation2 + $0xf0] sm:$0xff]
      %v1169 = vld [vmem:[#allocation2 + $0xf8] sm:$0xff]
      %v1170 = vld [vmem:[#allocation2 + $0x100] sm:$0xff]
      %v1171 = vld [vmem:[#allocation2 + $0x108] sm:$0xff]
      %v1172 = vld [vmem:[#allocation2 + $0x110] sm:$0xff]
      %v1173 = vld [vmem:[#allocation2 + $0x118] sm:$0xff]
      %v1174 = vpack.c.bf16 %v1139, %v1138
      %v1175 = vpack.c.bf16 %v1141, %v1140
      %v1176 = vpack.c.bf16 %v1143, %v1142
      %v1177 = vpack.c.bf16 %v1145, %v1144
      %v1178 = vpack.c.bf16 %v1147, %v1146
      %v1179 = vpack.c.bf16 %v1149, %v1148
      %v1180 = vpack.c.bf16 %v1151, %v1150
      %v1181 = vpack.c.bf16 %v1153, %v1152
      %v1182 = vpack.c.bf16 %v1155, %v1154
      %v1183 = vpack.c.bf16 %v1157, %v1156
      %v1184 = vpack.c.bf16 %v1159, %v1158
      %v1185 = vpack.c.bf16 %v1161, %v1160
      %v1186 = vpack.c.bf16 %v1163, %v1162
      %v1187 = vpack.c.bf16 %v1165, %v1164
      %v1188 = vpack.c.bf16 %v1167, %v1166
      %v1189 = vpack.c.bf16 %v1169, %v1168
      %v1190 = vpack.c.bf16 %v1171, %v1170
      %v1191 = vpack.c.bf16 %v1173, %v1172
      %v1192 = vld [vmem:[%s4] sm:$0xf]
      %v1193 = vld [vmem:[%s4 + $0x4] sm:$0xf]
      %v1194 = vld [vmem:[#allocation2 + $0x1] sm:$0xff]
      %v1195 = vld [vmem:[#allocation2 + $0x9] sm:$0xff]
      %v1196 = vld [vmem:[#allocation2 + $0x11] sm:$0xff]
      %v1197 = vld [vmem:[#allocation2 + $0x19] sm:$0xff]
      %v1198 = vld [vmem:[#allocation2 + $0x21] sm:$0xff]
      %v1199 = vld [vmem:[#allocation2 + $0x29] sm:$0xff]
      %v1200 = vld [vmem:[#allocation2 + $0x31] sm:$0xff]
      %v1201 = vld [vmem:[#allocation2 + $0x39] sm:$0xff]
      %v1202 = vld [vmem:[#allocation2 + $0x41] sm:$0xff]
      %v1203 = vld [vmem:[#allocation2 + $0x49] sm:$0xff]
      %v1204 = vld [vmem:[#allocation2 + $0x51] sm:$0xff]
      %v1205 = vld [vmem:[#allocation2 + $0x59] sm:$0xff]
      %v1206 = vld [vmem:[#allocation2 + $0x61] sm:$0xff]
      %v1207 = vld [vmem:[#allocation2 + $0x69] sm:$0xff]
      %v1208 = vld [vmem:[#allocation2 + $0x71] sm:$0xff]
      %v1209 = vld [vmem:[#allocation2 + $0x79] sm:$0xff]
      %v1210 = vld [vmem:[#allocation2 + $0x81] sm:$0xff]
      %v1211 = vld [vmem:[#allocation2 + $0x89] sm:$0xff]
      %v1212 = vld [vmem:[#allocation2 + $0x91] sm:$0xff]
      %v1213 = vld [vmem:[#allocation2 + $0x99] sm:$0xff]
      %v1214 = vld [vmem:[#allocation2 + $0xa1] sm:$0xff]
      %v1215 = vld [vmem:[#allocation2 + $0xa9] sm:$0xff]
      %v1216 = vld [vmem:[#allocation2 + $0xb1] sm:$0xff]
      %v1217 = vld [vmem:[#allocation2 + $0xb9] sm:$0xff]
      %v1218 = vld [vmem:[#allocation2 + $0xc1] sm:$0xff]
      %v1219 = vld [vmem:[#allocation2 + $0xc9] sm:$0xff]
      %v1220 = vld [vmem:[#allocation2 + $0xd1] sm:$0xff]
      %v1221 = vld [vmem:[#allocation2 + $0xd9] sm:$0xff]
      %v1222 = vld [vmem:[#allocation2 + $0xe1] sm:$0xff]
      %v1223 = vld [vmem:[#allocation2 + $0xe9] sm:$0xff]
      %v1224 = vld [vmem:[#allocation2 + $0xf1] sm:$0xff]
      %v1225 = vld [vmem:[#allocation2 + $0xf9] sm:$0xff]
      %v1226 = vld [vmem:[#allocation2 + $0x101] sm:$0xff]
      %v1227 = vld [vmem:[#allocation2 + $0x109] sm:$0xff]
      %v1228 = vld [vmem:[#allocation2 + $0x111] sm:$0xff]
      %v1229 = vld [vmem:[#allocation2 + $0x119] sm:$0xff]
      %v1230 = vpack.c.bf16 %v1195, %v1194
      %v1231 = vpack.c.bf16 %v1197, %v1196
      %v1232 = vpack.c.bf16 %v1199, %v1198
      %v1233 = vpack.c.bf16 %v1201, %v1200
      %v1234 = vpack.c.bf16 %v1203, %v1202
      %v1235 = vpack.c.bf16 %v1205, %v1204
      %v1236 = vpack.c.bf16 %v1207, %v1206
      %v1237 = vpack.c.bf16 %v1209, %v1208
      %v1238 = vpack.c.bf16 %v1211, %v1210
      %v1239 = vpack.c.bf16 %v1213, %v1212
      %v1240 = vpack.c.bf16 %v1215, %v1214
      %v1241 = vpack.c.bf16 %v1217, %v1216
      %v1242 = vpack.c.bf16 %v1219, %v1218
      %v1243 = vpack.c.bf16 %v1221, %v1220
      %v1244 = vpack.c.bf16 %v1223, %v1222
      %v1245 = vpack.c.bf16 %v1225, %v1224
      %v1246 = vpack.c.bf16 %v1227, %v1226
      %v1247 = vpack.c.bf16 %v1229, %v1228
      %s1248 = scalar_lea.vmem %s4, 8
      %v1249 = vld [vmem:[%s1248] sm:$0xf]
      %v1250 = vld [vmem:[%s1248 + $0x4] sm:$0xf]
      %v1253 = vunpack.c.l.b16 %v1249
      %v1254 = vunpack.c.l.b16 %v1250
      %v1255 = vpack.c.b16 %v1254, %v1253
      %v1258 = vsel %vm1092, %v1230, 0
      %v1261 = vsel %vm1092, %v1231, 0
      %v1264 = vsel %vm1092, %v1232, 0
      %v1267 = vsel %vm1092, %v1233, 0
      %v1270 = vsel %vm1092, %v1234, 0
      %v1273 = vsel %vm1092, %v1235, 0
      %v1276 = vsel %vm1092, %v1236, 0
      %v1279 = vsel %vm1092, %v1237, 0
      %v1282 = vsel %vm1092, %v1238, 0
      %v1285 = vsel %vm1092, %v1239, 0
      %v1288 = vsel %vm1092, %v1240, 0
      %v1291 = vsel %vm1092, %v1241, 0
      %v1294 = vsel %vm1092, %v1242, 0
      %v1297 = vsel %vm1092, %v1243, 0
      %v1300 = vsel %vm1092, %v1244, 0
      %v1303 = vsel %vm1092, %v1245, 0
      %v1306 = vsel %vm1092, %v1246, 0
      %v1309 = vsel %vm1092, %v1247, 0
      %1311 = vmatpush.bf16.msra.mxu0 0
      %1312 = vmatpush.bf16.msra.mxu0 0
      %1313 = vmatpush.bf16.msra.mxu0 0
      %1314 = vmatpush.bf16.msra.mxu0 0
      %1315 = vmatpush.bf16.msra.mxu0 0
      %1316 = vmatpush.bf16.msra.mxu0 0
      %1317 = vmatpush.bf16.msra.mxu0 0
      %1318 = vmatpush.bf16.msra.mxu0 %v1255
      %1319 = vmatmul.bf16.gmra.mxu0 %v1258
      %v1320 = vpop.f32.mrf.mxu0
      %v1321 = vadd.f32 0.0, %v1320
      %v1322 = vpop.f32.mrf.mxu0
      %v1323 = vadd.f32 0.0, %v1322
      %1324 = vmatmul.bf16.gmra.mxu0 %v1261
      %v1325 = vpop.f32.mrf.mxu0
      %v1326 = vadd.f32 0.0, %v1325
      %v1327 = vpop.f32.mrf.mxu0
      %v1328 = vadd.f32 0.0, %v1327
      %1329 = vmatmul.bf16.gmra.mxu0 %v1264
      %v1330 = vpop.f32.mrf.mxu0
      %v1331 = vadd.f32 0.0, %v1330
      %v1332 = vpop.f32.mrf.mxu0
      %v1333 = vadd.f32 0.0, %v1332
      %1334 = vmatmul.bf16.gmra.mxu0 %v1267
      %v1335 = vpop.f32.mrf.mxu0
      %v1336 = vadd.f32 0.0, %v1335
      %v1337 = vpop.f32.mrf.mxu0
      %v1338 = vadd.f32 0.0, %v1337
      %1339 = vmatmul.bf16.gmra.mxu0 %v1270
      %v1340 = vpop.f32.mrf.mxu0
      %v1341 = vadd.f32 0.0, %v1340
      %v1342 = vpop.f32.mrf.mxu0
      %v1343 = vadd.f32 0.0, %v1342
      %1344 = vmatmul.bf16.gmra.mxu0 %v1273
      %v1345 = vpop.f32.mrf.mxu0
      %v1346 = vadd.f32 0.0, %v1345
      %v1347 = vpop.f32.mrf.mxu0
      %v1348 = vadd.f32 0.0, %v1347
      %1349 = vmatmul.bf16.gmra.mxu0 %v1276
      %v1350 = vpop.f32.mrf.mxu0
      %v1351 = vadd.f32 0.0, %v1350
      %v1352 = vpop.f32.mrf.mxu0
      %v1353 = vadd.f32 0.0, %v1352
      %1354 = vmatmul.bf16.gmra.mxu0 %v1279
      %v1355 = vpop.f32.mrf.mxu0
      %v1356 = vadd.f32 0.0, %v1355
      %v1357 = vpop.f32.mrf.mxu0
      %v1358 = vadd.f32 0.0, %v1357
      %1359 = vmatmul.bf16.gmra.mxu0 %v1282
      %v1360 = vpop.f32.mrf.mxu0
      %v1361 = vadd.f32 0.0, %v1360
      %v1362 = vpop.f32.mrf.mxu0
      %v1363 = vadd.f32 0.0, %v1362
      %1364 = vmatmul.bf16.gmra.mxu0 %v1285
      %v1365 = vpop.f32.mrf.mxu0
      %v1366 = vadd.f32 0.0, %v1365
      %v1367 = vpop.f32.mrf.mxu0
      %v1368 = vadd.f32 0.0, %v1367
      %1369 = vmatmul.bf16.gmra.mxu0 %v1288
      %v1370 = vpop.f32.mrf.mxu0
      %v1371 = vadd.f32 0.0, %v1370
      %v1372 = vpop.f32.mrf.mxu0
      %v1373 = vadd.f32 0.0, %v1372
      %1374 = vmatmul.bf16.gmra.mxu0 %v1291
      %v1375 = vpop.f32.mrf.mxu0
      %v1376 = vadd.f32 0.0, %v1375
      %v1377 = vpop.f32.mrf.mxu0
      %v1378 = vadd.f32 0.0, %v1377
      %1379 = vmatmul.bf16.gmra.mxu0 %v1294
      %v1380 = vpop.f32.mrf.mxu0
      %v1381 = vadd.f32 0.0, %v1380
      %v1382 = vpop.f32.mrf.mxu0
      %v1383 = vadd.f32 0.0, %v1382
      %1384 = vmatmul.bf16.gmra.mxu0 %v1297
      %v1385 = vpop.f32.mrf.mxu0
      %v1386 = vadd.f32 0.0, %v1385
      %v1387 = vpop.f32.mrf.mxu0
      %v1388 = vadd.f32 0.0, %v1387
      %1389 = vmatmul.bf16.gmra.mxu0 %v1300
      %v1390 = vpop.f32.mrf.mxu0
      %v1391 = vadd.f32 0.0, %v1390
      %v1392 = vpop.f32.mrf.mxu0
      %v1393 = vadd.f32 0.0, %v1392
      %1394 = vmatmul.bf16.gmra.mxu0 %v1303
      %v1395 = vpop.f32.mrf.mxu0
      %v1396 = vadd.f32 0.0, %v1395
      %v1397 = vpop.f32.mrf.mxu0
      %v1398 = vadd.f32 0.0, %v1397
      %1399 = vmatmul.bf16.gmra.mxu0 %v1306
      %v1400 = vpop.f32.mrf.mxu0
      %v1401 = vadd.f32 0.0, %v1400
      %v1402 = vpop.f32.mrf.mxu0
      %v1403 = vadd.f32 0.0, %v1402
      %1404 = vmatmul.bf16.gmra.mxu0 %v1309
      %v1405 = vpop.f32.mrf.mxu0
      %v1406 = vadd.f32 0.0, %v1405
      %v1407 = vpop.f32.mrf.mxu0
      %v1408 = vadd.f32 0.0, %v1407
      %1409 = vdwg.mxu0
      %v1412 = vunpack.c.l.b16 %v1192
      %v1413 = vunpack.c.l.b16 %v1193
      %v1414 = vpack.c.b16 %v1413, %v1412
      %v1417 = vsel %vm1092, %v1174, 0
      %v1420 = vsel %vm1092, %v1175, 0
      %v1423 = vsel %vm1092, %v1176, 0
      %v1426 = vsel %vm1092, %v1177, 0
      %v1429 = vsel %vm1092, %v1178, 0
      %v1432 = vsel %vm1092, %v1179, 0
      %v1435 = vsel %vm1092, %v1180, 0
      %v1438 = vsel %vm1092, %v1181, 0
      %v1441 = vsel %vm1092, %v1182, 0
      %v1444 = vsel %vm1092, %v1183, 0
      %v1447 = vsel %vm1092, %v1184, 0
      %v1450 = vsel %vm1092, %v1185, 0
      %v1453 = vsel %vm1092, %v1186, 0
      %v1456 = vsel %vm1092, %v1187, 0
      %v1459 = vsel %vm1092, %v1188, 0
      %v1462 = vsel %vm1092, %v1189, 0
      %v1465 = vsel %vm1092, %v1190, 0
      %v1468 = vsel %vm1092, %v1191, 0
      %1470 = vmatpush.bf16.msra.mxu0 0
      %1471 = vmatpush.bf16.msra.mxu0 0
      %1472 = vmatpush.bf16.msra.mxu0 0
      %1473 = vmatpush.bf16.msra.mxu0 0
      %1474 = vmatpush.bf16.msra.mxu0 0
      %1475 = vmatpush.bf16.msra.mxu0 0
      %1476 = vmatpush.bf16.msra.mxu0 0
      %1477 = vmatpush.bf16.msra.mxu0 %v1414
      %1478 = vmatmul.bf16.gmra.mxu0 %v1417
      %v1479 = vpop.f32.mrf.mxu0
      %v1480 = vadd.f32 %v1321, %v1479
      %v1481 = vpop.f32.mrf.mxu0
      %v1482 = vadd.f32 %v1323, %v1481
      %1483 = vmatmul.bf16.gmra.mxu0 %v1420
      %v1484 = vpop.f32.mrf.mxu0
      %v1485 = vadd.f32 %v1326, %v1484
      %v1486 = vpop.f32.mrf.mxu0
      %v1487 = vadd.f32 %v1328, %v1486
      %1488 = vmatmul.bf16.gmra.mxu0 %v1423
      %v1489 = vpop.f32.mrf.mxu0
      %v1490 = vadd.f32 %v1331, %v1489
      %v1491 = vpop.f32.mrf.mxu0
      %v1492 = vadd.f32 %v1333, %v1491
      %1493 = vmatmul.bf16.gmra.mxu0 %v1426
      %v1494 = vpop.f32.mrf.mxu0
      %v1495 = vadd.f32 %v1336, %v1494
      %v1496 = vpop.f32.mrf.mxu0
      %v1497 = vadd.f32 %v1338, %v1496
      %1498 = vmatmul.bf16.gmra.mxu0 %v1429
      %v1499 = vpop.f32.mrf.mxu0
      %v1500 = vadd.f32 %v1341, %v1499
      %v1501 = vpop.f32.mrf.mxu0
      %v1502 = vadd.f32 %v1343, %v1501
      %1503 = vmatmul.bf16.gmra.mxu0 %v1432
      %v1504 = vpop.f32.mrf.mxu0
      %v1505 = vadd.f32 %v1346, %v1504
      %v1506 = vpop.f32.mrf.mxu0
      %v1507 = vadd.f32 %v1348, %v1506
      %1508 = vmatmul.bf16.gmra.mxu0 %v1435
      %v1509 = vpop.f32.mrf.mxu0
      %v1510 = vadd.f32 %v1351, %v1509
      %v1511 = vpop.f32.mrf.mxu0
      %v1512 = vadd.f32 %v1353, %v1511
      %1513 = vmatmul.bf16.gmra.mxu0 %v1438
      %v1514 = vpop.f32.mrf.mxu0
      %v1515 = vadd.f32 %v1356, %v1514
      %v1516 = vpop.f32.mrf.mxu0
      %v1517 = vadd.f32 %v1358, %v1516
      %1518 = vmatmul.bf16.gmra.mxu0 %v1441
      %v1519 = vpop.f32.mrf.mxu0
      %v1520 = vadd.f32 %v1361, %v1519
      %v1521 = vpop.f32.mrf.mxu0
      %v1522 = vadd.f32 %v1363, %v1521
      %1523 = vmatmul.bf16.gmra.mxu0 %v1444
      %v1524 = vpop.f32.mrf.mxu0
      %v1525 = vadd.f32 %v1366, %v1524
      %v1526 = vpop.f32.mrf.mxu0
      %v1527 = vadd.f32 %v1368, %v1526
      %1528 = vmatmul.bf16.gmra.mxu0 %v1447
      %v1529 = vpop.f32.mrf.mxu0
      %v1530 = vadd.f32 %v1371, %v1529
      %v1531 = vpop.f32.mrf.mxu0
      %v1532 = vadd.f32 %v1373, %v1531
      %1533 = vmatmul.bf16.gmra.mxu0 %v1450
      %v1534 = vpop.f32.mrf.mxu0
      %v1535 = vadd.f32 %v1376, %v1534
      %v1536 = vpop.f32.mrf.mxu0
      %v1537 = vadd.f32 %v1378, %v1536
      %1538 = vmatmul.bf16.gmra.mxu0 %v1453
      %v1539 = vpop.f32.mrf.mxu0
      %v1540 = vadd.f32 %v1381, %v1539
      %v1541 = vpop.f32.mrf.mxu0
      %v1542 = vadd.f32 %v1383, %v1541
      %1543 = vmatmul.bf16.gmra.mxu0 %v1456
      %v1544 = vpop.f32.mrf.mxu0
      %v1545 = vadd.f32 %v1386, %v1544
      %v1546 = vpop.f32.mrf.mxu0
      %v1547 = vadd.f32 %v1388, %v1546
      %1548 = vmatmul.bf16.gmra.mxu0 %v1459
      %v1549 = vpop.f32.mrf.mxu0
      %v1550 = vadd.f32 %v1391, %v1549
      %v1551 = vpop.f32.mrf.mxu0
      %v1552 = vadd.f32 %v1393, %v1551
      %1553 = vmatmul.bf16.gmra.mxu0 %v1462
      %v1554 = vpop.f32.mrf.mxu0
      %v1555 = vadd.f32 %v1396, %v1554
      %v1556 = vpop.f32.mrf.mxu0
      %v1557 = vadd.f32 %v1398, %v1556
      %1558 = vmatmul.bf16.gmra.mxu0 %v1465
      %v1559 = vpop.f32.mrf.mxu0
      %v1560 = vadd.f32 %v1401, %v1559
      %v1561 = vpop.f32.mrf.mxu0
      %v1562 = vadd.f32 %v1403, %v1561
      %1563 = vmatmul.bf16.gmra.mxu0 %v1468
      %v1564 = vpop.f32.mrf.mxu0
      %v1565 = vadd.f32 %v1406, %v1564
      %v1566 = vpop.f32.mrf.mxu0
      %v1567 = vadd.f32 %v1408, %v1566
      %1568 = vdwg.mxu0
      %v1569 = vld [vmem:[#allocation2 + $0x2] sm:$0xff]
      %v1570 = vld [vmem:[#allocation2 + $0xa] sm:$0xff]
      %v1571 = vld [vmem:[#allocation2 + $0x12] sm:$0xff]
      %v1572 = vld [vmem:[#allocation2 + $0x1a] sm:$0xff]
      %v1573 = vld [vmem:[#allocation2 + $0x22] sm:$0xff]
      %v1574 = vld [vmem:[#allocation2 + $0x2a] sm:$0xff]
      %v1575 = vld [vmem:[#allocation2 + $0x32] sm:$0xff]
      %v1576 = vld [vmem:[#allocation2 + $0x3a] sm:$0xff]
      %v1577 = vld [vmem:[#allocation2 + $0x42] sm:$0xff]
      %v1578 = vld [vmem:[#allocation2 + $0x4a] sm:$0xff]
      %v1579 = vld [vmem:[#allocation2 + $0x52] sm:$0xff]
      %v1580 = vld [vmem:[#allocation2 + $0x5a] sm:$0xff]
      %v1581 = vld [vmem:[#allocation2 + $0x62] sm:$0xff]
      %v1582 = vld [vmem:[#allocation2 + $0x6a] sm:$0xff]
      %v1583 = vld [vmem:[#allocation2 + $0x72] sm:$0xff]
      %v1584 = vld [vmem:[#allocation2 + $0x7a] sm:$0xff]
      %v1585 = vld [vmem:[#allocation2 + $0x82] sm:$0xff]
      %v1586 = vld [vmem:[#allocation2 + $0x8a] sm:$0xff]
      %v1587 = vld [vmem:[#allocation2 + $0x92] sm:$0xff]
      %v1588 = vld [vmem:[#allocation2 + $0x9a] sm:$0xff]
      %v1589 = vld [vmem:[#allocation2 + $0xa2] sm:$0xff]
      %v1590 = vld [vmem:[#allocation2 + $0xaa] sm:$0xff]
      %v1591 = vld [vmem:[#allocation2 + $0xb2] sm:$0xff]
      %v1592 = vld [vmem:[#allocation2 + $0xba] sm:$0xff]
      %v1593 = vld [vmem:[#allocation2 + $0xc2] sm:$0xff]
      %v1594 = vld [vmem:[#allocation2 + $0xca] sm:$0xff]
      %v1595 = vld [vmem:[#allocation2 + $0xd2] sm:$0xff]
      %v1596 = vld [vmem:[#allocation2 + $0xda] sm:$0xff]
      %v1597 = vld [vmem:[#allocation2 + $0xe2] sm:$0xff]
      %v1598 = vld [vmem:[#allocation2 + $0xea] sm:$0xff]
      %v1599 = vld [vmem:[#allocation2 + $0xf2] sm:$0xff]
      %v1600 = vld [vmem:[#allocation2 + $0xfa] sm:$0xff]
      %v1601 = vld [vmem:[#allocation2 + $0x102] sm:$0xff]
      %v1602 = vld [vmem:[#allocation2 + $0x10a] sm:$0xff]
      %v1603 = vld [vmem:[#allocation2 + $0x112] sm:$0xff]
      %v1604 = vld [vmem:[#allocation2 + $0x11a] sm:$0xff]
      %v1605 = vpack.c.bf16 %v1570, %v1569
      %v1606 = vpack.c.bf16 %v1572, %v1571
      %v1607 = vpack.c.bf16 %v1574, %v1573
      %v1608 = vpack.c.bf16 %v1576, %v1575
      %v1609 = vpack.c.bf16 %v1578, %v1577
      %v1610 = vpack.c.bf16 %v1580, %v1579
      %v1611 = vpack.c.bf16 %v1582, %v1581
      %v1612 = vpack.c.bf16 %v1584, %v1583
      %v1613 = vpack.c.bf16 %v1586, %v1585
      %v1614 = vpack.c.bf16 %v1588, %v1587
      %v1615 = vpack.c.bf16 %v1590, %v1589
      %v1616 = vpack.c.bf16 %v1592, %v1591
      %v1617 = vpack.c.bf16 %v1594, %v1593
      %v1618 = vpack.c.bf16 %v1596, %v1595
      %v1619 = vpack.c.bf16 %v1598, %v1597
      %v1620 = vpack.c.bf16 %v1600, %v1599
      %v1621 = vpack.c.bf16 %v1602, %v1601
      %v1622 = vpack.c.bf16 %v1604, %v1603
      %s1623 = scalar_lea.vmem %s4, 16
      %v1624 = vld [vmem:[%s1623] sm:$0xf]
      %v1625 = vld [vmem:[%s1623 + $0x4] sm:$0xf]
      %v1628 = vunpack.c.l.b16 %v1624
      %v1629 = vunpack.c.l.b16 %v1625
      %v1630 = vpack.c.b16 %v1629, %v1628
      %v1633 = vsel %vm1092, %v1605, 0
      %v1636 = vsel %vm1092, %v1606, 0
      %v1639 = vsel %vm1092, %v1607, 0
      %v1642 = vsel %vm1092, %v1608, 0
      %v1645 = vsel %vm1092, %v1609, 0
      %v1648 = vsel %vm1092, %v1610, 0
      %v1651 = vsel %vm1092, %v1611, 0
      %v1654 = vsel %vm1092, %v1612, 0
      %v1657 = vsel %vm1092, %v1613, 0
      %v1660 = vsel %vm1092, %v1614, 0
      %v1663 = vsel %vm1092, %v1615, 0
      %v1666 = vsel %vm1092, %v1616, 0
      %v1669 = vsel %vm1092, %v1617, 0
      %v1672 = vsel %vm1092, %v1618, 0
      %v1675 = vsel %vm1092, %v1619, 0
      %v1678 = vsel %vm1092, %v1620, 0
      %v1681 = vsel %vm1092, %v1621, 0
      %v1684 = vsel %vm1092, %v1622, 0
      %1686 = vmatpush.bf16.msra.mxu0 0
      %1687 = vmatpush.bf16.msra.mxu0 0
      %1688 = vmatpush.bf16.msra.mxu0 0
      %1689 = vmatpush.bf16.msra.mxu0 0
      %1690 = vmatpush.bf16.msra.mxu0 0
      %1691 = vmatpush.bf16.msra.mxu0 0
      %1692 = vmatpush.bf16.msra.mxu0 0
      %1693 = vmatpush.bf16.msra.mxu0 %v1630
      %1694 = vmatmul.bf16.gmra.mxu0 %v1633
      %v1695 = vpop.f32.mrf.mxu0
      %v1696 = vadd.f32 0.0, %v1695
      %v1697 = vpop.f32.mrf.mxu0
      %v1698 = vadd.f32 0.0, %v1697
      %1699 = vmatmul.bf16.gmra.mxu0 %v1636
      %v1700 = vpop.f32.mrf.mxu0
      %v1701 = vadd.f32 0.0, %v1700
      %v1702 = vpop.f32.mrf.mxu0
      %v1703 = vadd.f32 0.0, %v1702
      %1704 = vmatmul.bf16.gmra.mxu0 %v1639
      %v1705 = vpop.f32.mrf.mxu0
      %v1706 = vadd.f32 0.0, %v1705
      %v1707 = vpop.f32.mrf.mxu0
      %v1708 = vadd.f32 0.0, %v1707
      %1709 = vmatmul.bf16.gmra.mxu0 %v1642
      %v1710 = vpop.f32.mrf.mxu0
      %v1711 = vadd.f32 0.0, %v1710
      %v1712 = vpop.f32.mrf.mxu0
      %v1713 = vadd.f32 0.0, %v1712
      %1714 = vmatmul.bf16.gmra.mxu0 %v1645
      %v1715 = vpop.f32.mrf.mxu0
      %v1716 = vadd.f32 0.0, %v1715
      %v1717 = vpop.f32.mrf.mxu0
      %v1718 = vadd.f32 0.0, %v1717
      %1719 = vmatmul.bf16.gmra.mxu0 %v1648
      %v1720 = vpop.f32.mrf.mxu0
      %v1721 = vadd.f32 0.0, %v1720
      %v1722 = vpop.f32.mrf.mxu0
      %v1723 = vadd.f32 0.0, %v1722
      %1724 = vmatmul.bf16.gmra.mxu0 %v1651
      %v1725 = vpop.f32.mrf.mxu0
      %v1726 = vadd.f32 0.0, %v1725
      %v1727 = vpop.f32.mrf.mxu0
      %v1728 = vadd.f32 0.0, %v1727
      %1729 = vmatmul.bf16.gmra.mxu0 %v1654
      %v1730 = vpop.f32.mrf.mxu0
      %v1731 = vadd.f32 0.0, %v1730
      %v1732 = vpop.f32.mrf.mxu0
      %v1733 = vadd.f32 0.0, %v1732
      %1734 = vmatmul.bf16.gmra.mxu0 %v1657
      %v1735 = vpop.f32.mrf.mxu0
      %v1736 = vadd.f32 0.0, %v1735
      %v1737 = vpop.f32.mrf.mxu0
      %v1738 = vadd.f32 0.0, %v1737
      %1739 = vmatmul.bf16.gmra.mxu0 %v1660
      %v1740 = vpop.f32.mrf.mxu0
      %v1741 = vadd.f32 0.0, %v1740
      %v1742 = vpop.f32.mrf.mxu0
      %v1743 = vadd.f32 0.0, %v1742
      %1744 = vmatmul.bf16.gmra.mxu0 %v1663
      %v1745 = vpop.f32.mrf.mxu0
      %v1746 = vadd.f32 0.0, %v1745
      %v1747 = vpop.f32.mrf.mxu0
      %v1748 = vadd.f32 0.0, %v1747
      %1749 = vmatmul.bf16.gmra.mxu0 %v1666
      %v1750 = vpop.f32.mrf.mxu0
      %v1751 = vadd.f32 0.0, %v1750
      %v1752 = vpop.f32.mrf.mxu0
      %v1753 = vadd.f32 0.0, %v1752
      %1754 = vmatmul.bf16.gmra.mxu0 %v1669
      %v1755 = vpop.f32.mrf.mxu0
      %v1756 = vadd.f32 0.0, %v1755
      %v1757 = vpop.f32.mrf.mxu0
      %v1758 = vadd.f32 0.0, %v1757
      %1759 = vmatmul.bf16.gmra.mxu0 %v1672
      %v1760 = vpop.f32.mrf.mxu0
      %v1761 = vadd.f32 0.0, %v1760
      %v1762 = vpop.f32.mrf.mxu0
      %v1763 = vadd.f32 0.0, %v1762
      %1764 = vmatmul.bf16.gmra.mxu0 %v1675
      %v1765 = vpop.f32.mrf.mxu0
      %v1766 = vadd.f32 0.0, %v1765
      %v1767 = vpop.f32.mrf.mxu0
      %v1768 = vadd.f32 0.0, %v1767
      %1769 = vmatmul.bf16.gmra.mxu0 %v1678
      %v1770 = vpop.f32.mrf.mxu0
      %v1771 = vadd.f32 0.0, %v1770
      %v1772 = vpop.f32.mrf.mxu0
      %v1773 = vadd.f32 0.0, %v1772
      %1774 = vmatmul.bf16.gmra.mxu0 %v1681
      %v1775 = vpop.f32.mrf.mxu0
      %v1776 = vadd.f32 0.0, %v1775
      %v1777 = vpop.f32.mrf.mxu0
      %v1778 = vadd.f32 0.0, %v1777
      %1779 = vmatmul.bf16.gmra.mxu0 %v1684
      %v1780 = vpop.f32.mrf.mxu0
      %v1781 = vadd.f32 0.0, %v1780
      %v1782 = vpop.f32.mrf.mxu0
      %v1783 = vadd.f32 0.0, %v1782
      %1784 = vdwg.mxu0
      %v1785 = vadd.f32 %v1480, %v1696
      %v1786 = vadd.f32 %v1482, %v1698
      %v1787 = vadd.f32 %v1485, %v1701
      %v1788 = vadd.f32 %v1487, %v1703
      %v1789 = vadd.f32 %v1490, %v1706
      %v1790 = vadd.f32 %v1492, %v1708
      %v1791 = vadd.f32 %v1495, %v1711
      %v1792 = vadd.f32 %v1497, %v1713
      %v1793 = vadd.f32 %v1500, %v1716
      %v1794 = vadd.f32 %v1502, %v1718
      %v1795 = vadd.f32 %v1505, %v1721
      %v1796 = vadd.f32 %v1507, %v1723
      %v1797 = vadd.f32 %v1510, %v1726
      %v1798 = vadd.f32 %v1512, %v1728
      %v1799 = vadd.f32 %v1515, %v1731
      %v1800 = vadd.f32 %v1517, %v1733
      %v1801 = vadd.f32 %v1520, %v1736
      %v1802 = vadd.f32 %v1522, %v1738
      %v1803 = vadd.f32 %v1525, %v1741
      %v1804 = vadd.f32 %v1527, %v1743
      %v1805 = vadd.f32 %v1530, %v1746
      %v1806 = vadd.f32 %v1532, %v1748
      %v1807 = vadd.f32 %v1535, %v1751
      %v1808 = vadd.f32 %v1537, %v1753
      %v1809 = vadd.f32 %v1540, %v1756
      %v1810 = vadd.f32 %v1542, %v1758
      %v1811 = vadd.f32 %v1545, %v1761
      %v1812 = vadd.f32 %v1547, %v1763
      %v1813 = vadd.f32 %v1550, %v1766
      %v1814 = vadd.f32 %v1552, %v1768
      %v1815 = vadd.f32 %v1555, %v1771
      %v1816 = vadd.f32 %v1557, %v1773
      %v1817 = vadd.f32 %v1560, %v1776
      %v1818 = vadd.f32 %v1562, %v1778
      %v1819 = vadd.f32 %v1565, %v1781
      %v1820 = vadd.f32 %v1567, %v1783
      %v1821 = vld [vmem:[#allocation2 + $0x12] sm:$0xff]
      %v1822 = vld [vmem:[#allocation2 + $0x1a] sm:$0xff]
      %v1823 = vld [vmem:[#allocation2 + $0x22] sm:$0xff]
      %v1824 = vld [vmem:[#allocation2 + $0x2a] sm:$0xff]
      %v1825 = vld [vmem:[#allocation2 + $0x32] sm:$0xff]
      %v1826 = vld [vmem:[#allocation2 + $0x3a] sm:$0xff]
      %v1827 = vld [vmem:[#allocation2 + $0x42] sm:$0xff]
      %v1828 = vld [vmem:[#allocation2 + $0x4a] sm:$0xff]
      %v1829 = vld [vmem:[#allocation2 + $0x52] sm:$0xff]
      %v1830 = vld [vmem:[#allocation2 + $0x5a] sm:$0xff]
      %v1831 = vld [vmem:[#allocation2 + $0x62] sm:$0xff]
      %v1832 = vld [vmem:[#allocation2 + $0x6a] sm:$0xff]
      %v1833 = vld [vmem:[#allocation2 + $0x72] sm:$0xff]
      %v1834 = vld [vmem:[#allocation2 + $0x7a] sm:$0xff]
      %v1835 = vld [vmem:[#allocation2 + $0x82] sm:$0xff]
      %v1836 = vld [vmem:[#allocation2 + $0x8a] sm:$0xff]
      %v1837 = vld [vmem:[#allocation2 + $0x92] sm:$0xff]
      %v1838 = vld [vmem:[#allocation2 + $0x9a] sm:$0xff]
      %v1839 = vld [vmem:[#allocation2 + $0xa2] sm:$0xff]
      %v1840 = vld [vmem:[#allocation2 + $0xaa] sm:$0xff]
      %v1841 = vld [vmem:[#allocation2 + $0xb2] sm:$0xff]
      %v1842 = vld [vmem:[#allocation2 + $0xba] sm:$0xff]
      %v1843 = vld [vmem:[#allocation2 + $0xc2] sm:$0xff]
      %v1844 = vld [vmem:[#allocation2 + $0xca] sm:$0xff]
      %v1845 = vld [vmem:[#allocation2 + $0xd2] sm:$0xff]
      %v1846 = vld [vmem:[#allocation2 + $0xda] sm:$0xff]
      %v1847 = vld [vmem:[#allocation2 + $0xe2] sm:$0xff]
      %v1848 = vld [vmem:[#allocation2 + $0xea] sm:$0xff]
      %v1849 = vld [vmem:[#allocation2 + $0xf2] sm:$0xff]
      %v1850 = vld [vmem:[#allocation2 + $0xfa] sm:$0xff]
      %v1851 = vld [vmem:[#allocation2 + $0x102] sm:$0xff]
      %v1852 = vld [vmem:[#allocation2 + $0x10a] sm:$0xff]
      %v1853 = vld [vmem:[#allocation2 + $0x112] sm:$0xff]
      %v1854 = vld [vmem:[#allocation2 + $0x11a] sm:$0xff]
      %v1855 = vld [vmem:[#allocation2 + $0x122] sm:$0xff]
      %v1856 = vld [vmem:[#allocation2 + $0x12a] sm:$0xff]
      %v1857 = vpack.c.bf16 %v1822, %v1821
      %v1858 = vpack.c.bf16 %v1824, %v1823
      %v1859 = vpack.c.bf16 %v1826, %v1825
      %v1860 = vpack.c.bf16 %v1828, %v1827
      %v1861 = vpack.c.bf16 %v1830, %v1829
      %v1862 = vpack.c.bf16 %v1832, %v1831
      %v1863 = vpack.c.bf16 %v1834, %v1833
      %v1864 = vpack.c.bf16 %v1836, %v1835
      %v1865 = vpack.c.bf16 %v1838, %v1837
      %v1866 = vpack.c.bf16 %v1840, %v1839
      %v1867 = vpack.c.bf16 %v1842, %v1841
      %v1868 = vpack.c.bf16 %v1844, %v1843
      %v1869 = vpack.c.bf16 %v1846, %v1845
      %v1870 = vpack.c.bf16 %v1848, %v1847
      %v1871 = vpack.c.bf16 %v1850, %v1849
      %v1872 = vpack.c.bf16 %v1852, %v1851
      %v1873 = vpack.c.bf16 %v1854, %v1853
      %v1874 = vpack.c.bf16 %v1856, %v1855
      %s1875 = scalar_lea.vmem %s4, 24
      %v1876 = vld [vmem:[%s1875] sm:$0xf]
      %v1877 = vld [vmem:[%s1875 + $0x4] sm:$0xf]
      %v1880 = vunpack.c.l.b16 %v1876
      %v1881 = vunpack.c.l.b16 %v1877
      %v1882 = vpack.c.b16 %v1881, %v1880
      %v1885 = vsel %vm1092, %v1857, 0
      %v1888 = vsel %vm1092, %v1858, 0
      %v1891 = vsel %vm1092, %v1859, 0
      %v1894 = vsel %vm1092, %v1860, 0
      %v1897 = vsel %vm1092, %v1861, 0
      %v1900 = vsel %vm1092, %v1862, 0
      %v1903 = vsel %vm1092, %v1863, 0
      %v1906 = vsel %vm1092, %v1864, 0
      %v1909 = vsel %vm1092, %v1865, 0
      %v1912 = vsel %vm1092, %v1866, 0
      %v1915 = vsel %vm1092, %v1867, 0
      %v1918 = vsel %vm1092, %v1868, 0
      %v1921 = vsel %vm1092, %v1869, 0
      %v1924 = vsel %vm1092, %v1870, 0
      %v1927 = vsel %vm1092, %v1871, 0
      %v1930 = vsel %vm1092, %v1872, 0
      %v1933 = vsel %vm1092, %v1873, 0
      %v1936 = vsel %vm1092, %v1874, 0
      %1938 = vmatpush.bf16.msra.mxu0 0
      %1939 = vmatpush.bf16.msra.mxu0 0
      %1940 = vmatpush.bf16.msra.mxu0 0
      %1941 = vmatpush.bf16.msra.mxu0 0
      %1942 = vmatpush.bf16.msra.mxu0 0
      %1943 = vmatpush.bf16.msra.mxu0 0
      %1944 = vmatpush.bf16.msra.mxu0 0
      %1945 = vmatpush.bf16.msra.mxu0 %v1882
      %1946 = vmatmul.bf16.gmra.mxu0 %v1885
      %v1947 = vpop.f32.mrf.mxu0
      %v1948 = vadd.f32 0.0, %v1947
      %v1949 = vpop.f32.mrf.mxu0
      %v1950 = vadd.f32 0.0, %v1949
      %1951 = vmatmul.bf16.gmra.mxu0 %v1888
      %v1952 = vpop.f32.mrf.mxu0
      %v1953 = vadd.f32 0.0, %v1952
      %v1954 = vpop.f32.mrf.mxu0
      %v1955 = vadd.f32 0.0, %v1954
      %1956 = vmatmul.bf16.gmra.mxu0 %v1891
      %v1957 = vpop.f32.mrf.mxu0
      %v1958 = vadd.f32 0.0, %v1957
      %v1959 = vpop.f32.mrf.mxu0
      %v1960 = vadd.f32 0.0, %v1959
      %1961 = vmatmul.bf16.gmra.mxu0 %v1894
      %v1962 = vpop.f32.mrf.mxu0
      %v1963 = vadd.f32 0.0, %v1962
      %v1964 = vpop.f32.mrf.mxu0
      %v1965 = vadd.f32 0.0, %v1964
      %1966 = vmatmul.bf16.gmra.mxu0 %v1897
      %v1967 = vpop.f32.mrf.mxu0
      %v1968 = vadd.f32 0.0, %v1967
      %v1969 = vpop.f32.mrf.mxu0
      %v1970 = vadd.f32 0.0, %v1969
      %1971 = vmatmul.bf16.gmra.mxu0 %v1900
      %v1972 = vpop.f32.mrf.mxu0
      %v1973 = vadd.f32 0.0, %v1972
      %v1974 = vpop.f32.mrf.mxu0
      %v1975 = vadd.f32 0.0, %v1974
      %1976 = vmatmul.bf16.gmra.mxu0 %v1903
      %v1977 = vpop.f32.mrf.mxu0
      %v1978 = vadd.f32 0.0, %v1977
      %v1979 = vpop.f32.mrf.mxu0
      %v1980 = vadd.f32 0.0, %v1979
      %1981 = vmatmul.bf16.gmra.mxu0 %v1906
      %v1982 = vpop.f32.mrf.mxu0
      %v1983 = vadd.f32 0.0, %v1982
      %v1984 = vpop.f32.mrf.mxu0
      %v1985 = vadd.f32 0.0, %v1984
      %1986 = vmatmul.bf16.gmra.mxu0 %v1909
      %v1987 = vpop.f32.mrf.mxu0
      %v1988 = vadd.f32 0.0, %v1987
      %v1989 = vpop.f32.mrf.mxu0
      %v1990 = vadd.f32 0.0, %v1989
      %1991 = vmatmul.bf16.gmra.mxu0 %v1912
      %v1992 = vpop.f32.mrf.mxu0
      %v1993 = vadd.f32 0.0, %v1992
      %v1994 = vpop.f32.mrf.mxu0
      %v1995 = vadd.f32 0.0, %v1994
      %1996 = vmatmul.bf16.gmra.mxu0 %v1915
      %v1997 = vpop.f32.mrf.mxu0
      %v1998 = vadd.f32 0.0, %v1997
      %v1999 = vpop.f32.mrf.mxu0
      %v2000 = vadd.f32 0.0, %v1999
      %2001 = vmatmul.bf16.gmra.mxu0 %v1918
      %v2002 = vpop.f32.mrf.mxu0
      %v2003 = vadd.f32 0.0, %v2002
      %v2004 = vpop.f32.mrf.mxu0
      %v2005 = vadd.f32 0.0, %v2004
      %2006 = vmatmul.bf16.gmra.mxu0 %v1921
      %v2007 = vpop.f32.mrf.mxu0
      %v2008 = vadd.f32 0.0, %v2007
      %v2009 = vpop.f32.mrf.mxu0
      %v2010 = vadd.f32 0.0, %v2009
      %2011 = vmatmul.bf16.gmra.mxu0 %v1924
      %v2012 = vpop.f32.mrf.mxu0
      %v2013 = vadd.f32 0.0, %v2012
      %v2014 = vpop.f32.mrf.mxu0
      %v2015 = vadd.f32 0.0, %v2014
      %2016 = vmatmul.bf16.gmra.mxu0 %v1927
      %v2017 = vpop.f32.mrf.mxu0
      %v2018 = vadd.f32 0.0, %v2017
      %v2019 = vpop.f32.mrf.mxu0
      %v2020 = vadd.f32 0.0, %v2019
      %2021 = vmatmul.bf16.gmra.mxu0 %v1930
      %v2022 = vpop.f32.mrf.mxu0
      %v2023 = vadd.f32 0.0, %v2022
      %v2024 = vpop.f32.mrf.mxu0
      %v2025 = vadd.f32 0.0, %v2024
      %2026 = vmatmul.bf16.gmra.mxu0 %v1933
      %v2027 = vpop.f32.mrf.mxu0
      %v2028 = vadd.f32 0.0, %v2027
      %v2029 = vpop.f32.mrf.mxu0
      %v2030 = vadd.f32 0.0, %v2029
      %2031 = vmatmul.bf16.gmra.mxu0 %v1936
      %v2032 = vpop.f32.mrf.mxu0
      %v2033 = vadd.f32 0.0, %v2032
      %v2034 = vpop.f32.mrf.mxu0
      %v2035 = vadd.f32 0.0, %v2034
      %2036 = vdwg.mxu0
      %v2037 = vadd.f32 %v1785, %v1948
      %v2038 = vadd.f32 %v1786, %v1950
      %v2039 = vadd.f32 %v1787, %v1953
      %v2040 = vadd.f32 %v1788, %v1955
      %v2041 = vadd.f32 %v1789, %v1958
      %v2042 = vadd.f32 %v1790, %v1960
      %v2043 = vadd.f32 %v1791, %v1963
      %v2044 = vadd.f32 %v1792, %v1965
      %v2045 = vadd.f32 %v1793, %v1968
      %v2046 = vadd.f32 %v1794, %v1970
      %v2047 = vadd.f32 %v1795, %v1973
      %v2048 = vadd.f32 %v1796, %v1975
      %v2049 = vadd.f32 %v1797, %v1978
      %v2050 = vadd.f32 %v1798, %v1980
      %v2051 = vadd.f32 %v1799, %v1983
      %v2052 = vadd.f32 %v1800, %v1985
      %v2053 = vadd.f32 %v1801, %v1988
      %v2054 = vadd.f32 %v1802, %v1990
      %v2055 = vadd.f32 %v1803, %v1993
      %v2056 = vadd.f32 %v1804, %v1995
      %v2057 = vadd.f32 %v1805, %v1998
      %v2058 = vadd.f32 %v1806, %v2000
      %v2059 = vadd.f32 %v1807, %v2003
      %v2060 = vadd.f32 %v1808, %v2005
      %v2061 = vadd.f32 %v1809, %v2008
      %v2062 = vadd.f32 %v1810, %v2010
      %v2063 = vadd.f32 %v1811, %v2013
      %v2064 = vadd.f32 %v1812, %v2015
      %v2065 = vadd.f32 %v1813, %v2018
      %v2066 = vadd.f32 %v1814, %v2020
      %v2067 = vadd.f32 %v1815, %v2023
      %v2068 = vadd.f32 %v1816, %v2025
      %v2069 = vadd.f32 %v1817, %v2028
      %v2070 = vadd.f32 %v1818, %v2030
      %v2071 = vadd.f32 %v1819, %v2033
      %v2072 = vadd.f32 %v1820, %v2035
      %v2073 = vld [vmem:[#allocation2 + $0x13] sm:$0xff]
      %v2074 = vld [vmem:[#allocation2 + $0x1b] sm:$0xff]
      %v2075 = vld [vmem:[#allocation2 + $0x23] sm:$0xff]
      %v2076 = vld [vmem:[#allocation2 + $0x2b] sm:$0xff]
      %v2077 = vld [vmem:[#allocation2 + $0x33] sm:$0xff]
      %v2078 = vld [vmem:[#allocation2 + $0x3b] sm:$0xff]
      %v2079 = vld [vmem:[#allocation2 + $0x43] sm:$0xff]
      %v2080 = vld [vmem:[#allocation2 + $0x4b] sm:$0xff]
      %v2081 = vld [vmem:[#allocation2 + $0x53] sm:$0xff]
      %v2082 = vld [vmem:[#allocation2 + $0x5b] sm:$0xff]
      %v2083 = vld [vmem:[#allocation2 + $0x63] sm:$0xff]
      %v2084 = vld [vmem:[#allocation2 + $0x6b] sm:$0xff]
      %v2085 = vld [vmem:[#allocation2 + $0x73] sm:$0xff]
      %v2086 = vld [vmem:[#allocation2 + $0x7b] sm:$0xff]
      %v2087 = vld [vmem:[#allocation2 + $0x83] sm:$0xff]
      %v2088 = vld [vmem:[#allocation2 + $0x8b] sm:$0xff]
      %v2089 = vld [vmem:[#allocation2 + $0x93] sm:$0xff]
      %v2090 = vld [vmem:[#allocation2 + $0x9b] sm:$0xff]
      %v2091 = vld [vmem:[#allocation2 + $0xa3] sm:$0xff]
      %v2092 = vld [vmem:[#allocation2 + $0xab] sm:$0xff]
      %v2093 = vld [vmem:[#allocation2 + $0xb3] sm:$0xff]
      %v2094 = vld [vmem:[#allocation2 + $0xbb] sm:$0xff]
      %v2095 = vld [vmem:[#allocation2 + $0xc3] sm:$0xff]
      %v2096 = vld [vmem:[#allocation2 + $0xcb] sm:$0xff]
      %v2097 = vld [vmem:[#allocation2 + $0xd3] sm:$0xff]
      %v2098 = vld [vmem:[#allocation2 + $0xdb] sm:$0xff]
      %v2099 = vld [vmem:[#allocation2 + $0xe3] sm:$0xff]
      %v2100 = vld [vmem:[#allocation2 + $0xeb] sm:$0xff]
      %v2101 = vld [vmem:[#allocation2 + $0xf3] sm:$0xff]
      %v2102 = vld [vmem:[#allocation2 + $0xfb] sm:$0xff]
      %v2103 = vld [vmem:[#allocation2 + $0x103] sm:$0xff]
      %v2104 = vld [vmem:[#allocation2 + $0x10b] sm:$0xff]
      %v2105 = vld [vmem:[#allocation2 + $0x113] sm:$0xff]
      %v2106 = vld [vmem:[#allocation2 + $0x11b] sm:$0xff]
      %v2107 = vld [vmem:[#allocation2 + $0x123] sm:$0xff]
      %v2108 = vld [vmem:[#allocation2 + $0x12b] sm:$0xff]
      %v2109 = vpack.c.bf16 %v2074, %v2073
      %v2110 = vpack.c.bf16 %v2076, %v2075
      %v2111 = vpack.c.bf16 %v2078, %v2077
      %v2112 = vpack.c.bf16 %v2080, %v2079
      %v2113 = vpack.c.bf16 %v2082, %v2081
      %v2114 = vpack.c.bf16 %v2084, %v2083
      %v2115 = vpack.c.bf16 %v2086, %v2085
      %v2116 = vpack.c.bf16 %v2088, %v2087
      %v2117 = vpack.c.bf16 %v2090, %v2089
      %v2118 = vpack.c.bf16 %v2092, %v2091
      %v2119 = vpack.c.bf16 %v2094, %v2093
      %v2120 = vpack.c.bf16 %v2096, %v2095
      %v2121 = vpack.c.bf16 %v2098, %v2097
      %v2122 = vpack.c.bf16 %v2100, %v2099
      %v2123 = vpack.c.bf16 %v2102, %v2101
      %v2124 = vpack.c.bf16 %v2104, %v2103
      %v2125 = vpack.c.bf16 %v2106, %v2105
      %v2126 = vpack.c.bf16 %v2108, %v2107
      %s2127 = scalar_lea.vmem %s4, 32
      %v2128 = vld [vmem:[%s2127] sm:$0xf]
      %v2129 = vld [vmem:[%s2127 + $0x4] sm:$0xf]
      %v2132 = vunpack.c.l.b16 %v2128
      %v2133 = vunpack.c.l.b16 %v2129
      %v2134 = vpack.c.b16 %v2133, %v2132
      %v2137 = vsel %vm1092, %v2109, 0
      %v2140 = vsel %vm1092, %v2110, 0
      %v2143 = vsel %vm1092, %v2111, 0
      %v2146 = vsel %vm1092, %v2112, 0
      %v2149 = vsel %vm1092, %v2113, 0
      %v2152 = vsel %vm1092, %v2114, 0
      %v2155 = vsel %vm1092, %v2115, 0
      %v2158 = vsel %vm1092, %v2116, 0
      %v2161 = vsel %vm1092, %v2117, 0
      %v2164 = vsel %vm1092, %v2118, 0
      %v2167 = vsel %vm1092, %v2119, 0
      %v2170 = vsel %vm1092, %v2120, 0
      %v2173 = vsel %vm1092, %v2121, 0
      %v2176 = vsel %vm1092, %v2122, 0
      %v2179 = vsel %vm1092, %v2123, 0
      %v2182 = vsel %vm1092, %v2124, 0
      %v2185 = vsel %vm1092, %v2125, 0
      %v2188 = vsel %vm1092, %v2126, 0
      %2190 = vmatpush.bf16.msra.mxu0 0
      %2191 = vmatpush.bf16.msra.mxu0 0
      %2192 = vmatpush.bf16.msra.mxu0 0
      %2193 = vmatpush.bf16.msra.mxu0 0
      %2194 = vmatpush.bf16.msra.mxu0 0
      %2195 = vmatpush.bf16.msra.mxu0 0
      %2196 = vmatpush.bf16.msra.mxu0 0
      %2197 = vmatpush.bf16.msra.mxu0 %v2134
      %2198 = vmatmul.bf16.gmra.mxu0 %v2137
      %v2199 = vpop.f32.mrf.mxu0
      %v2200 = vadd.f32 0.0, %v2199
      %v2201 = vpop.f32.mrf.mxu0
      %v2202 = vadd.f32 0.0, %v2201
      %2203 = vmatmul.bf16.gmra.mxu0 %v2140
      %v2204 = vpop.f32.mrf.mxu0
      %v2205 = vadd.f32 0.0, %v2204
      %v2206 = vpop.f32.mrf.mxu0
      %v2207 = vadd.f32 0.0, %v2206
      %2208 = vmatmul.bf16.gmra.mxu0 %v2143
      %v2209 = vpop.f32.mrf.mxu0
      %v2210 = vadd.f32 0.0, %v2209
      %v2211 = vpop.f32.mrf.mxu0
      %v2212 = vadd.f32 0.0, %v2211
      %2213 = vmatmul.bf16.gmra.mxu0 %v2146
      %v2214 = vpop.f32.mrf.mxu0
      %v2215 = vadd.f32 0.0, %v2214
      %v2216 = vpop.f32.mrf.mxu0
      %v2217 = vadd.f32 0.0, %v2216
      %2218 = vmatmul.bf16.gmra.mxu0 %v2149
      %v2219 = vpop.f32.mrf.mxu0
      %v2220 = vadd.f32 0.0, %v2219
      %v2221 = vpop.f32.mrf.mxu0
      %v2222 = vadd.f32 0.0, %v2221
      %2223 = vmatmul.bf16.gmra.mxu0 %v2152
      %v2224 = vpop.f32.mrf.mxu0
      %v2225 = vadd.f32 0.0, %v2224
      %v2226 = vpop.f32.mrf.mxu0
      %v2227 = vadd.f32 0.0, %v2226
      %2228 = vmatmul.bf16.gmra.mxu0 %v2155
      %v2229 = vpop.f32.mrf.mxu0
      %v2230 = vadd.f32 0.0, %v2229
      %v2231 = vpop.f32.mrf.mxu0
      %v2232 = vadd.f32 0.0, %v2231
      %2233 = vmatmul.bf16.gmra.mxu0 %v2158
      %v2234 = vpop.f32.mrf.mxu0
      %v2235 = vadd.f32 0.0, %v2234
      %v2236 = vpop.f32.mrf.mxu0
      %v2237 = vadd.f32 0.0, %v2236
      %2238 = vmatmul.bf16.gmra.mxu0 %v2161
      %v2239 = vpop.f32.mrf.mxu0
      %v2240 = vadd.f32 0.0, %v2239
      %v2241 = vpop.f32.mrf.mxu0
      %v2242 = vadd.f32 0.0, %v2241
      %2243 = vmatmul.bf16.gmra.mxu0 %v2164
      %v2244 = vpop.f32.mrf.mxu0
      %v2245 = vadd.f32 0.0, %v2244
      %v2246 = vpop.f32.mrf.mxu0
      %v2247 = vadd.f32 0.0, %v2246
      %2248 = vmatmul.bf16.gmra.mxu0 %v2167
      %v2249 = vpop.f32.mrf.mxu0
      %v2250 = vadd.f32 0.0, %v2249
      %v2251 = vpop.f32.mrf.mxu0
      %v2252 = vadd.f32 0.0, %v2251
      %2253 = vmatmul.bf16.gmra.mxu0 %v2170
      %v2254 = vpop.f32.mrf.mxu0
      %v2255 = vadd.f32 0.0, %v2254
      %v2256 = vpop.f32.mrf.mxu0
      %v2257 = vadd.f32 0.0, %v2256
      %2258 = vmatmul.bf16.gmra.mxu0 %v2173
      %v2259 = vpop.f32.mrf.mxu0
      %v2260 = vadd.f32 0.0, %v2259
      %v2261 = vpop.f32.mrf.mxu0
      %v2262 = vadd.f32 0.0, %v2261
      %2263 = vmatmul.bf16.gmra.mxu0 %v2176
      %v2264 = vpop.f32.mrf.mxu0
      %v2265 = vadd.f32 0.0, %v2264
      %v2266 = vpop.f32.mrf.mxu0
      %v2267 = vadd.f32 0.0, %v2266
      %2268 = vmatmul.bf16.gmra.mxu0 %v2179
      %v2269 = vpop.f32.mrf.mxu0
      %v2270 = vadd.f32 0.0, %v2269
      %v2271 = vpop.f32.mrf.mxu0
      %v2272 = vadd.f32 0.0, %v2271
      %2273 = vmatmul.bf16.gmra.mxu0 %v2182
      %v2274 = vpop.f32.mrf.mxu0
      %v2275 = vadd.f32 0.0, %v2274
      %v2276 = vpop.f32.mrf.mxu0
      %v2277 = vadd.f32 0.0, %v2276
      %2278 = vmatmul.bf16.gmra.mxu0 %v2185
      %v2279 = vpop.f32.mrf.mxu0
      %v2280 = vadd.f32 0.0, %v2279
      %v2281 = vpop.f32.mrf.mxu0
      %v2282 = vadd.f32 0.0, %v2281
      %2283 = vmatmul.bf16.gmra.mxu0 %v2188
      %v2284 = vpop.f32.mrf.mxu0
      %v2285 = vadd.f32 0.0, %v2284
      %v2286 = vpop.f32.mrf.mxu0
      %v2287 = vadd.f32 0.0, %v2286
      %2288 = vdwg.mxu0
      %v2289 = vadd.f32 %v2037, %v2200
      %v2290 = vadd.f32 %v2038, %v2202
      %v2291 = vadd.f32 %v2039, %v2205
      %v2292 = vadd.f32 %v2040, %v2207
      %v2293 = vadd.f32 %v2041, %v2210
      %v2294 = vadd.f32 %v2042, %v2212
      %v2295 = vadd.f32 %v2043, %v2215
      %v2296 = vadd.f32 %v2044, %v2217
      %v2297 = vadd.f32 %v2045, %v2220
      %v2298 = vadd.f32 %v2046, %v2222
      %v2299 = vadd.f32 %v2047, %v2225
      %v2300 = vadd.f32 %v2048, %v2227
      %v2301 = vadd.f32 %v2049, %v2230
      %v2302 = vadd.f32 %v2050, %v2232
      %v2303 = vadd.f32 %v2051, %v2235
      %v2304 = vadd.f32 %v2052, %v2237
      %v2305 = vadd.f32 %v2053, %v2240
      %v2306 = vadd.f32 %v2054, %v2242
      %v2307 = vadd.f32 %v2055, %v2245
      %v2308 = vadd.f32 %v2056, %v2247
      %v2309 = vadd.f32 %v2057, %v2250
      %v2310 = vadd.f32 %v2058, %v2252
      %v2311 = vadd.f32 %v2059, %v2255
      %v2312 = vadd.f32 %v2060, %v2257
      %v2313 = vadd.f32 %v2061, %v2260
      %v2314 = vadd.f32 %v2062, %v2262
      %v2315 = vadd.f32 %v2063, %v2265
      %v2316 = vadd.f32 %v2064, %v2267
      %v2317 = vadd.f32 %v2065, %v2270
      %v2318 = vadd.f32 %v2066, %v2272
      %v2319 = vadd.f32 %v2067, %v2275
      %v2320 = vadd.f32 %v2068, %v2277
      %v2321 = vadd.f32 %v2069, %v2280
      %v2322 = vadd.f32 %v2070, %v2282
      %v2323 = vadd.f32 %v2071, %v2285
      %v2324 = vadd.f32 %v2072, %v2287
      %v2325 = vld [vmem:[#allocation2 + $0x14] sm:$0xff]
      %v2326 = vld [vmem:[#allocation2 + $0x1c] sm:$0xff]
      %v2327 = vld [vmem:[#allocation2 + $0x24] sm:$0xff]
      %v2328 = vld [vmem:[#allocation2 + $0x2c] sm:$0xff]
      %v2329 = vld [vmem:[#allocation2 + $0x34] sm:$0xff]
      %v2330 = vld [vmem:[#allocation2 + $0x3c] sm:$0xff]
      %v2331 = vld [vmem:[#allocation2 + $0x44] sm:$0xff]
      %v2332 = vld [vmem:[#allocation2 + $0x4c] sm:$0xff]
      %v2333 = vld [vmem:[#allocation2 + $0x54] sm:$0xff]
      %v2334 = vld [vmem:[#allocation2 + $0x5c] sm:$0xff]
      %v2335 = vld [vmem:[#allocation2 + $0x64] sm:$0xff]
      %v2336 = vld [vmem:[#allocation2 + $0x6c] sm:$0xff]
      %v2337 = vld [vmem:[#allocation2 + $0x74] sm:$0xff]
      %v2338 = vld [vmem:[#allocation2 + $0x7c] sm:$0xff]
      %v2339 = vld [vmem:[#allocation2 + $0x84] sm:$0xff]
      %v2340 = vld [vmem:[#allocation2 + $0x8c] sm:$0xff]
      %v2341 = vld [vmem:[#allocation2 + $0x94] sm:$0xff]
      %v2342 = vld [vmem:[#allocation2 + $0x9c] sm:$0xff]
      %v2343 = vld [vmem:[#allocation2 + $0xa4] sm:$0xff]
      %v2344 = vld [vmem:[#allocation2 + $0xac] sm:$0xff]
      %v2345 = vld [vmem:[#allocation2 + $0xb4] sm:$0xff]
      %v2346 = vld [vmem:[#allocation2 + $0xbc] sm:$0xff]
      %v2347 = vld [vmem:[#allocation2 + $0xc4] sm:$0xff]
      %v2348 = vld [vmem:[#allocation2 + $0xcc] sm:$0xff]
      %v2349 = vld [vmem:[#allocation2 + $0xd4] sm:$0xff]
      %v2350 = vld [vmem:[#allocation2 + $0xdc] sm:$0xff]
      %v2351 = vld [vmem:[#allocation2 + $0xe4] sm:$0xff]
      %v2352 = vld [vmem:[#allocation2 + $0xec] sm:$0xff]
      %v2353 = vld [vmem:[#allocation2 + $0xf4] sm:$0xff]
      %v2354 = vld [vmem:[#allocation2 + $0xfc] sm:$0xff]
      %v2355 = vld [vmem:[#allocation2 + $0x104] sm:$0xff]
      %v2356 = vld [vmem:[#allocation2 + $0x10c] sm:$0xff]
      %v2357 = vld [vmem:[#allocation2 + $0x114] sm:$0xff]
      %v2358 = vld [vmem:[#allocation2 + $0x11c] sm:$0xff]
      %v2359 = vld [vmem:[#allocation2 + $0x124] sm:$0xff]
      %v2360 = vld [vmem:[#allocation2 + $0x12c] sm:$0xff]
      %v2361 = vpack.c.bf16 %v2326, %v2325
      %v2362 = vpack.c.bf16 %v2328, %v2327
      %v2363 = vpack.c.bf16 %v2330, %v2329
      %v2364 = vpack.c.bf16 %v2332, %v2331
      %v2365 = vpack.c.bf16 %v2334, %v2333
      %v2366 = vpack.c.bf16 %v2336, %v2335
      %v2367 = vpack.c.bf16 %v2338, %v2337
      %v2368 = vpack.c.bf16 %v2340, %v2339
      %v2369 = vpack.c.bf16 %v2342, %v2341
      %v2370 = vpack.c.bf16 %v2344, %v2343
      %v2371 = vpack.c.bf16 %v2346, %v2345
      %v2372 = vpack.c.bf16 %v2348, %v2347
      %v2373 = vpack.c.bf16 %v2350, %v2349
      %v2374 = vpack.c.bf16 %v2352, %v2351
      %v2375 = vpack.c.bf16 %v2354, %v2353
      %v2376 = vpack.c.bf16 %v2356, %v2355
      %v2377 = vpack.c.bf16 %v2358, %v2357
      %v2378 = vpack.c.bf16 %v2360, %v2359
      %s2379 = scalar_lea.vmem %s4, 40
      %v2380 = vld [vmem:[%s2379] sm:$0xf]
      %v2381 = vld [vmem:[%s2379 + $0x4] sm:$0xf]
      %v2384 = vunpack.c.l.b16 %v2380
      %v2385 = vunpack.c.l.b16 %v2381
      %v2386 = vpack.c.b16 %v2385, %v2384
      %v2389 = vsel %vm1092, %v2361, 0
      %v2392 = vsel %vm1092, %v2362, 0
      %v2395 = vsel %vm1092, %v2363, 0
      %v2398 = vsel %vm1092, %v2364, 0
      %v2401 = vsel %vm1092, %v2365, 0
      %v2404 = vsel %vm1092, %v2366, 0
      %v2407 = vsel %vm1092, %v2367, 0
      %v2410 = vsel %vm1092, %v2368, 0
      %v2413 = vsel %vm1092, %v2369, 0
      %v2416 = vsel %vm1092, %v2370, 0
      %v2419 = vsel %vm1092, %v2371, 0
      %v2422 = vsel %vm1092, %v2372, 0
      %v2425 = vsel %vm1092, %v2373, 0
      %v2428 = vsel %vm1092, %v2374, 0
      %v2431 = vsel %vm1092, %v2375, 0
      %v2434 = vsel %vm1092, %v2376, 0
      %v2437 = vsel %vm1092, %v2377, 0
      %v2440 = vsel %vm1092, %v2378, 0
      %2442 = vmatpush.bf16.msra.mxu0 0
      %2443 = vmatpush.bf16.msra.mxu0 0
      %2444 = vmatpush.bf16.msra.mxu0 0
      %2445 = vmatpush.bf16.msra.mxu0 0
      %2446 = vmatpush.bf16.msra.mxu0 0
      %2447 = vmatpush.bf16.msra.mxu0 0
      %2448 = vmatpush.bf16.msra.mxu0 0
      %2449 = vmatpush.bf16.msra.mxu0 %v2386
      %2450 = vmatmul.bf16.gmra.mxu0 %v2389
      %v2451 = vpop.f32.mrf.mxu0
      %v2452 = vadd.f32 0.0, %v2451
      %v2453 = vpop.f32.mrf.mxu0
      %v2454 = vadd.f32 0.0, %v2453
      %2455 = vmatmul.bf16.gmra.mxu0 %v2392
      %v2456 = vpop.f32.mrf.mxu0
      %v2457 = vadd.f32 0.0, %v2456
      %v2458 = vpop.f32.mrf.mxu0
      %v2459 = vadd.f32 0.0, %v2458
      %2460 = vmatmul.bf16.gmra.mxu0 %v2395
      %v2461 = vpop.f32.mrf.mxu0
      %v2462 = vadd.f32 0.0, %v2461
      %v2463 = vpop.f32.mrf.mxu0
      %v2464 = vadd.f32 0.0, %v2463
      %2465 = vmatmul.bf16.gmra.mxu0 %v2398
      %v2466 = vpop.f32.mrf.mxu0
      %v2467 = vadd.f32 0.0, %v2466
      %v2468 = vpop.f32.mrf.mxu0
      %v2469 = vadd.f32 0.0, %v2468
      %2470 = vmatmul.bf16.gmra.mxu0 %v2401
      %v2471 = vpop.f32.mrf.mxu0
      %v2472 = vadd.f32 0.0, %v2471
      %v2473 = vpop.f32.mrf.mxu0
      %v2474 = vadd.f32 0.0, %v2473
      %2475 = vmatmul.bf16.gmra.mxu0 %v2404
      %v2476 = vpop.f32.mrf.mxu0
      %v2477 = vadd.f32 0.0, %v2476
      %v2478 = vpop.f32.mrf.mxu0
      %v2479 = vadd.f32 0.0, %v2478
      %2480 = vmatmul.bf16.gmra.mxu0 %v2407
      %v2481 = vpop.f32.mrf.mxu0
      %v2482 = vadd.f32 0.0, %v2481
      %v2483 = vpop.f32.mrf.mxu0
      %v2484 = vadd.f32 0.0, %v2483
      %2485 = vmatmul.bf16.gmra.mxu0 %v2410
      %v2486 = vpop.f32.mrf.mxu0
      %v2487 = vadd.f32 0.0, %v2486
      %v2488 = vpop.f32.mrf.mxu0
      %v2489 = vadd.f32 0.0, %v2488
      %2490 = vmatmul.bf16.gmra.mxu0 %v2413
      %v2491 = vpop.f32.mrf.mxu0
      %v2492 = vadd.f32 0.0, %v2491
      %v2493 = vpop.f32.mrf.mxu0
      %v2494 = vadd.f32 0.0, %v2493
      %2495 = vmatmul.bf16.gmra.mxu0 %v2416
      %v2496 = vpop.f32.mrf.mxu0
      %v2497 = vadd.f32 0.0, %v2496
      %v2498 = vpop.f32.mrf.mxu0
      %v2499 = vadd.f32 0.0, %v2498
      %2500 = vmatmul.bf16.gmra.mxu0 %v2419
      %v2501 = vpop.f32.mrf.mxu0
      %v2502 = vadd.f32 0.0, %v2501
      %v2503 = vpop.f32.mrf.mxu0
      %v2504 = vadd.f32 0.0, %v2503
      %2505 = vmatmul.bf16.gmra.mxu0 %v2422
      %v2506 = vpop.f32.mrf.mxu0
      %v2507 = vadd.f32 0.0, %v2506
      %v2508 = vpop.f32.mrf.mxu0
      %v2509 = vadd.f32 0.0, %v2508
      %2510 = vmatmul.bf16.gmra.mxu0 %v2425
      %v2511 = vpop.f32.mrf.mxu0
      %v2512 = vadd.f32 0.0, %v2511
      %v2513 = vpop.f32.mrf.mxu0
      %v2514 = vadd.f32 0.0, %v2513
      %2515 = vmatmul.bf16.gmra.mxu0 %v2428
      %v2516 = vpop.f32.mrf.mxu0
      %v2517 = vadd.f32 0.0, %v2516
      %v2518 = vpop.f32.mrf.mxu0
      %v2519 = vadd.f32 0.0, %v2518
      %2520 = vmatmul.bf16.gmra.mxu0 %v2431
      %v2521 = vpop.f32.mrf.mxu0
      %v2522 = vadd.f32 0.0, %v2521
      %v2523 = vpop.f32.mrf.mxu0
      %v2524 = vadd.f32 0.0, %v2523
      %2525 = vmatmul.bf16.gmra.mxu0 %v2434
      %v2526 = vpop.f32.mrf.mxu0
      %v2527 = vadd.f32 0.0, %v2526
      %v2528 = vpop.f32.mrf.mxu0
      %v2529 = vadd.f32 0.0, %v2528
      %2530 = vmatmul.bf16.gmra.mxu0 %v2437
      %v2531 = vpop.f32.mrf.mxu0
      %v2532 = vadd.f32 0.0, %v2531
      %v2533 = vpop.f32.mrf.mxu0
      %v2534 = vadd.f32 0.0, %v2533
      %2535 = vmatmul.bf16.gmra.mxu0 %v2440
      %v2536 = vpop.f32.mrf.mxu0
      %v2537 = vadd.f32 0.0, %v2536
      %v2538 = vpop.f32.mrf.mxu0
      %v2539 = vadd.f32 0.0, %v2538
      %2540 = vdwg.mxu0
      %v2541 = vadd.f32 %v2289, %v2452
      %v2542 = vadd.f32 %v2290, %v2454
      %v2543 = vadd.f32 %v2291, %v2457
      %v2544 = vadd.f32 %v2292, %v2459
      %v2545 = vadd.f32 %v2293, %v2462
      %v2546 = vadd.f32 %v2294, %v2464
      %v2547 = vadd.f32 %v2295, %v2467
      %v2548 = vadd.f32 %v2296, %v2469
      %v2549 = vadd.f32 %v2297, %v2472
      %v2550 = vadd.f32 %v2298, %v2474
      %v2551 = vadd.f32 %v2299, %v2477
      %v2552 = vadd.f32 %v2300, %v2479
      %v2553 = vadd.f32 %v2301, %v2482
      %v2554 = vadd.f32 %v2302, %v2484
      %v2555 = vadd.f32 %v2303, %v2487
      %v2556 = vadd.f32 %v2304, %v2489
      %v2557 = vadd.f32 %v2305, %v2492
      %v2558 = vadd.f32 %v2306, %v2494
      %v2559 = vadd.f32 %v2307, %v2497
      %v2560 = vadd.f32 %v2308, %v2499
      %v2561 = vadd.f32 %v2309, %v2502
      %v2562 = vadd.f32 %v2310, %v2504
      %v2563 = vadd.f32 %v2311, %v2507
      %v2564 = vadd.f32 %v2312, %v2509
      %v2565 = vadd.f32 %v2313, %v2512
      %v2566 = vadd.f32 %v2314, %v2514
      %v2567 = vadd.f32 %v2315, %v2517
      %v2568 = vadd.f32 %v2316, %v2519
      %v2569 = vadd.f32 %v2317, %v2522
      %v2570 = vadd.f32 %v2318, %v2524
      %v2571 = vadd.f32 %v2319, %v2527
      %v2572 = vadd.f32 %v2320, %v2529
      %v2573 = vadd.f32 %v2321, %v2532
      %v2574 = vadd.f32 %v2322, %v2534
      %v2575 = vadd.f32 %v2323, %v2537
      %v2576 = vadd.f32 %v2324, %v2539
      %v2577 = vld [vmem:[#allocation2 + $0x24] sm:$0xff]
      %v2578 = vld [vmem:[#allocation2 + $0x2c] sm:$0xff]
      %v2579 = vld [vmem:[#allocation2 + $0x34] sm:$0xff]
      %v2580 = vld [vmem:[#allocation2 + $0x3c] sm:$0xff]
      %v2581 = vld [vmem:[#allocation2 + $0x44] sm:$0xff]
      %v2582 = vld [vmem:[#allocation2 + $0x4c] sm:$0xff]
      %v2583 = vld [vmem:[#allocation2 + $0x54] sm:$0xff]
      %v2584 = vld [vmem:[#allocation2 + $0x5c] sm:$0xff]
      %v2585 = vld [vmem:[#allocation2 + $0x64] sm:$0xff]
      %v2586 = vld [vmem:[#allocation2 + $0x6c] sm:$0xff]
      %v2587 = vld [vmem:[#allocation2 + $0x74] sm:$0xff]
      %v2588 = vld [vmem:[#allocation2 + $0x7c] sm:$0xff]
      %v2589 = vld [vmem:[#allocation2 + $0x84] sm:$0xff]
      %v2590 = vld [vmem:[#allocation2 + $0x8c] sm:$0xff]
      %v2591 = vld [vmem:[#allocation2 + $0x94] sm:$0xff]
      %v2592 = vld [vmem:[#allocation2 + $0x9c] sm:$0xff]
      %v2593 = vld [vmem:[#allocation2 + $0xa4] sm:$0xff]
      %v2594 = vld [vmem:[#allocation2 + $0xac] sm:$0xff]
      %v2595 = vld [vmem:[#allocation2 + $0xb4] sm:$0xff]
      %v2596 = vld [vmem:[#allocation2 + $0xbc] sm:$0xff]
      %v2597 = vld [vmem:[#allocation2 + $0xc4] sm:$0xff]
      %v2598 = vld [vmem:[#allocation2 + $0xcc] sm:$0xff]
      %v2599 = vld [vmem:[#allocation2 + $0xd4] sm:$0xff]
      %v2600 = vld [vmem:[#allocation2 + $0xdc] sm:$0xff]
      %v2601 = vld [vmem:[#allocation2 + $0xe4] sm:$0xff]
      %v2602 = vld [vmem:[#allocation2 + $0xec] sm:$0xff]
      %v2603 = vld [vmem:[#allocation2 + $0xf4] sm:$0xff]
      %v2604 = vld [vmem:[#allocation2 + $0xfc] sm:$0xff]
      %v2605 = vld [vmem:[#allocation2 + $0x104] sm:$0xff]
      %v2606 = vld [vmem:[#allocation2 + $0x10c] sm:$0xff]
      %v2607 = vld [vmem:[#allocation2 + $0x114] sm:$0xff]
      %v2608 = vld [vmem:[#allocation2 + $0x11c] sm:$0xff]
      %v2609 = vld [vmem:[#allocation2 + $0x124] sm:$0xff]
      %v2610 = vld [vmem:[#allocation2 + $0x12c] sm:$0xff]
      %v2611 = vld [vmem:[#allocation2 + $0x134] sm:$0xff]
      %v2612 = vld [vmem:[#allocation2 + $0x13c] sm:$0xff]
      %v2613 = vpack.c.bf16 %v2578, %v2577
      %v2614 = vpack.c.bf16 %v2580, %v2579
      %v2615 = vpack.c.bf16 %v2582, %v2581
      %v2616 = vpack.c.bf16 %v2584, %v2583
      %v2617 = vpack.c.bf16 %v2586, %v2585
      %v2618 = vpack.c.bf16 %v2588, %v2587
      %v2619 = vpack.c.bf16 %v2590, %v2589
      %v2620 = vpack.c.bf16 %v2592, %v2591
      %v2621 = vpack.c.bf16 %v2594, %v2593
      %v2622 = vpack.c.bf16 %v2596, %v2595
      %v2623 = vpack.c.bf16 %v2598, %v2597
      %v2624 = vpack.c.bf16 %v2600, %v2599
      %v2625 = vpack.c.bf16 %v2602, %v2601
      %v2626 = vpack.c.bf16 %v2604, %v2603
      %v2627 = vpack.c.bf16 %v2606, %v2605
      %v2628 = vpack.c.bf16 %v2608, %v2607
      %v2629 = vpack.c.bf16 %v2610, %v2609
      %v2630 = vpack.c.bf16 %v2612, %v2611
      %s2631 = scalar_lea.vmem %s4, 48
      %v2632 = vld [vmem:[%s2631] sm:$0xf]
      %v2633 = vld [vmem:[%s2631 + $0x4] sm:$0xf]
      %v2636 = vunpack.c.l.b16 %v2632
      %v2637 = vunpack.c.l.b16 %v2633
      %v2638 = vpack.c.b16 %v2637, %v2636
      %v2641 = vsel %vm1092, %v2613, 0
      %v2644 = vsel %vm1092, %v2614, 0
      %v2647 = vsel %vm1092, %v2615, 0
      %v2650 = vsel %vm1092, %v2616, 0
      %v2653 = vsel %vm1092, %v2617, 0
      %v2656 = vsel %vm1092, %v2618, 0
      %v2659 = vsel %vm1092, %v2619, 0
      %v2662 = vsel %vm1092, %v2620, 0
      %v2665 = vsel %vm1092, %v2621, 0
      %v2668 = vsel %vm1092, %v2622, 0
      %v2671 = vsel %vm1092, %v2623, 0
      %v2674 = vsel %vm1092, %v2624, 0
      %v2677 = vsel %vm1092, %v2625, 0
      %v2680 = vsel %vm1092, %v2626, 0
      %v2683 = vsel %vm1092, %v2627, 0
      %v2686 = vsel %vm1092, %v2628, 0
      %v2689 = vsel %vm1092, %v2629, 0
      %v2692 = vsel %vm1092, %v2630, 0
      %2694 = vmatpush.bf16.msra.mxu0 0
      %2695 = vmatpush.bf16.msra.mxu0 0
      %2696 = vmatpush.bf16.msra.mxu0 0
      %2697 = vmatpush.bf16.msra.mxu0 0
      %2698 = vmatpush.bf16.msra.mxu0 0
      %2699 = vmatpush.bf16.msra.mxu0 0
      %2700 = vmatpush.bf16.msra.mxu0 0
      %2701 = vmatpush.bf16.msra.mxu0 %v2638
      %2702 = vmatmul.bf16.gmra.mxu0 %v2641
      %v2703 = vpop.f32.mrf.mxu0
      %v2704 = vadd.f32 0.0, %v2703
      %v2705 = vpop.f32.mrf.mxu0
      %v2706 = vadd.f32 0.0, %v2705
      %2707 = vmatmul.bf16.gmra.mxu0 %v2644
      %v2708 = vpop.f32.mrf.mxu0
      %v2709 = vadd.f32 0.0, %v2708
      %v2710 = vpop.f32.mrf.mxu0
      %v2711 = vadd.f32 0.0, %v2710
      %2712 = vmatmul.bf16.gmra.mxu0 %v2647
      %v2713 = vpop.f32.mrf.mxu0
      %v2714 = vadd.f32 0.0, %v2713
      %v2715 = vpop.f32.mrf.mxu0
      %v2716 = vadd.f32 0.0, %v2715
      %2717 = vmatmul.bf16.gmra.mxu0 %v2650
      %v2718 = vpop.f32.mrf.mxu0
      %v2719 = vadd.f32 0.0, %v2718
      %v2720 = vpop.f32.mrf.mxu0
      %v2721 = vadd.f32 0.0, %v2720
      %2722 = vmatmul.bf16.gmra.mxu0 %v2653
      %v2723 = vpop.f32.mrf.mxu0
      %v2724 = vadd.f32 0.0, %v2723
      %v2725 = vpop.f32.mrf.mxu0
      %v2726 = vadd.f32 0.0, %v2725
      %2727 = vmatmul.bf16.gmra.mxu0 %v2656
      %v2728 = vpop.f32.mrf.mxu0
      %v2729 = vadd.f32 0.0, %v2728
      %v2730 = vpop.f32.mrf.mxu0
      %v2731 = vadd.f32 0.0, %v2730
      %2732 = vmatmul.bf16.gmra.mxu0 %v2659
      %v2733 = vpop.f32.mrf.mxu0
      %v2734 = vadd.f32 0.0, %v2733
      %v2735 = vpop.f32.mrf.mxu0
      %v2736 = vadd.f32 0.0, %v2735
      %2737 = vmatmul.bf16.gmra.mxu0 %v2662
      %v2738 = vpop.f32.mrf.mxu0
      %v2739 = vadd.f32 0.0, %v2738
      %v2740 = vpop.f32.mrf.mxu0
      %v2741 = vadd.f32 0.0, %v2740
      %2742 = vmatmul.bf16.gmra.mxu0 %v2665
      %v2743 = vpop.f32.mrf.mxu0
      %v2744 = vadd.f32 0.0, %v2743
      %v2745 = vpop.f32.mrf.mxu0
      %v2746 = vadd.f32 0.0, %v2745
      %2747 = vmatmul.bf16.gmra.mxu0 %v2668
      %v2748 = vpop.f32.mrf.mxu0
      %v2749 = vadd.f32 0.0, %v2748
      %v2750 = vpop.f32.mrf.mxu0
      %v2751 = vadd.f32 0.0, %v2750
      %2752 = vmatmul.bf16.gmra.mxu0 %v2671
      %v2753 = vpop.f32.mrf.mxu0
      %v2754 = vadd.f32 0.0, %v2753
      %v2755 = vpop.f32.mrf.mxu0
      %v2756 = vadd.f32 0.0, %v2755
      %2757 = vmatmul.bf16.gmra.mxu0 %v2674
      %v2758 = vpop.f32.mrf.mxu0
      %v2759 = vadd.f32 0.0, %v2758
      %v2760 = vpop.f32.mrf.mxu0
      %v2761 = vadd.f32 0.0, %v2760
      %2762 = vmatmul.bf16.gmra.mxu0 %v2677
      %v2763 = vpop.f32.mrf.mxu0
      %v2764 = vadd.f32 0.0, %v2763
      %v2765 = vpop.f32.mrf.mxu0
      %v2766 = vadd.f32 0.0, %v2765
      %2767 = vmatmul.bf16.gmra.mxu0 %v2680
      %v2768 = vpop.f32.mrf.mxu0
      %v2769 = vadd.f32 0.0, %v2768
      %v2770 = vpop.f32.mrf.mxu0
      %v2771 = vadd.f32 0.0, %v2770
      %2772 = vmatmul.bf16.gmra.mxu0 %v2683
      %v2773 = vpop.f32.mrf.mxu0
      %v2774 = vadd.f32 0.0, %v2773
      %v2775 = vpop.f32.mrf.mxu0
      %v2776 = vadd.f32 0.0, %v2775
      %2777 = vmatmul.bf16.gmra.mxu0 %v2686
      %v2778 = vpop.f32.mrf.mxu0
      %v2779 = vadd.f32 0.0, %v2778
      %v2780 = vpop.f32.mrf.mxu0
      %v2781 = vadd.f32 0.0, %v2780
      %2782 = vmatmul.bf16.gmra.mxu0 %v2689
      %v2783 = vpop.f32.mrf.mxu0
      %v2784 = vadd.f32 0.0, %v2783
      %v2785 = vpop.f32.mrf.mxu0
      %v2786 = vadd.f32 0.0, %v2785
      %2787 = vmatmul.bf16.gmra.mxu0 %v2692
      %v2788 = vpop.f32.mrf.mxu0
      %v2789 = vadd.f32 0.0, %v2788
      %v2790 = vpop.f32.mrf.mxu0
      %v2791 = vadd.f32 0.0, %v2790
      %2792 = vdwg.mxu0
      %v2793 = vadd.f32 %v2541, %v2704
      %v2794 = vadd.f32 %v2542, %v2706
      %v2795 = vadd.f32 %v2543, %v2709
      %v2796 = vadd.f32 %v2544, %v2711
      %v2797 = vadd.f32 %v2545, %v2714
      %v2798 = vadd.f32 %v2546, %v2716
      %v2799 = vadd.f32 %v2547, %v2719
      %v2800 = vadd.f32 %v2548, %v2721
      %v2801 = vadd.f32 %v2549, %v2724
      %v2802 = vadd.f32 %v2550, %v2726
      %v2803 = vadd.f32 %v2551, %v2729
      %v2804 = vadd.f32 %v2552, %v2731
      %v2805 = vadd.f32 %v2553, %v2734
      %v2806 = vadd.f32 %v2554, %v2736
      %v2807 = vadd.f32 %v2555, %v2739
      %v2808 = vadd.f32 %v2556, %v2741
      %v2809 = vadd.f32 %v2557, %v2744
      %v2810 = vadd.f32 %v2558, %v2746
      %v2811 = vadd.f32 %v2559, %v2749
      %v2812 = vadd.f32 %v2560, %v2751
      %v2813 = vadd.f32 %v2561, %v2754
      %v2814 = vadd.f32 %v2562, %v2756
      %v2815 = vadd.f32 %v2563, %v2759
      %v2816 = vadd.f32 %v2564, %v2761
      %v2817 = vadd.f32 %v2565, %v2764
      %v2818 = vadd.f32 %v2566, %v2766
      %v2819 = vadd.f32 %v2567, %v2769
      %v2820 = vadd.f32 %v2568, %v2771
      %v2821 = vadd.f32 %v2569, %v2774
      %v2822 = vadd.f32 %v2570, %v2776
      %v2823 = vadd.f32 %v2571, %v2779
      %v2824 = vadd.f32 %v2572, %v2781
      %v2825 = vadd.f32 %v2573, %v2784
      %v2826 = vadd.f32 %v2574, %v2786
      %v2827 = vadd.f32 %v2575, %v2789
      %v2828 = vadd.f32 %v2576, %v2791
      %v2829 = vld [vmem:[#allocation2 + $0x25] sm:$0xff]
      %v2830 = vld [vmem:[#allocation2 + $0x2d] sm:$0xff]
      %v2831 = vld [vmem:[#allocation2 + $0x35] sm:$0xff]
      %v2832 = vld [vmem:[#allocation2 + $0x3d] sm:$0xff]
      %v2833 = vld [vmem:[#allocation2 + $0x45] sm:$0xff]
      %v2834 = vld [vmem:[#allocation2 + $0x4d] sm:$0xff]
      %v2835 = vld [vmem:[#allocation2 + $0x55] sm:$0xff]
      %v2836 = vld [vmem:[#allocation2 + $0x5d] sm:$0xff]
      %v2837 = vld [vmem:[#allocation2 + $0x65] sm:$0xff]
      %v2838 = vld [vmem:[#allocation2 + $0x6d] sm:$0xff]
      %v2839 = vld [vmem:[#allocation2 + $0x75] sm:$0xff]
      %v2840 = vld [vmem:[#allocation2 + $0x7d] sm:$0xff]
      %v2841 = vld [vmem:[#allocation2 + $0x85] sm:$0xff]
      %v2842 = vld [vmem:[#allocation2 + $0x8d] sm:$0xff]
      %v2843 = vld [vmem:[#allocation2 + $0x95] sm:$0xff]
      %v2844 = vld [vmem:[#allocation2 + $0x9d] sm:$0xff]
      %v2845 = vld [vmem:[#allocation2 + $0xa5] sm:$0xff]
      %v2846 = vld [vmem:[#allocation2 + $0xad] sm:$0xff]
      %v2847 = vld [vmem:[#allocation2 + $0xb5] sm:$0xff]
      %v2848 = vld [vmem:[#allocation2 + $0xbd] sm:$0xff]
      %v2849 = vld [vmem:[#allocation2 + $0xc5] sm:$0xff]
      %v2850 = vld [vmem:[#allocation2 + $0xcd] sm:$0xff]
      %v2851 = vld [vmem:[#allocation2 + $0xd5] sm:$0xff]
      %v2852 = vld [vmem:[#allocation2 + $0xdd] sm:$0xff]
      %v2853 = vld [vmem:[#allocation2 + $0xe5] sm:$0xff]
      %v2854 = vld [vmem:[#allocation2 + $0xed] sm:$0xff]
      %v2855 = vld [vmem:[#allocation2 + $0xf5] sm:$0xff]
      %v2856 = vld [vmem:[#allocation2 + $0xfd] sm:$0xff]
      %v2857 = vld [vmem:[#allocation2 + $0x105] sm:$0xff]
      %v2858 = vld [vmem:[#allocation2 + $0x10d] sm:$0xff]
      %v2859 = vld [vmem:[#allocation2 + $0x115] sm:$0xff]
      %v2860 = vld [vmem:[#allocation2 + $0x11d] sm:$0xff]
      %v2861 = vld [vmem:[#allocation2 + $0x125] sm:$0xff]
      %v2862 = vld [vmem:[#allocation2 + $0x12d] sm:$0xff]
      %v2863 = vld [vmem:[#allocation2 + $0x135] sm:$0xff]
      %v2864 = vld [vmem:[#allocation2 + $0x13d] sm:$0xff]
      %v2865 = vpack.c.bf16 %v2830, %v2829
      %v2866 = vpack.c.bf16 %v2832, %v2831
      %v2867 = vpack.c.bf16 %v2834, %v2833
      %v2868 = vpack.c.bf16 %v2836, %v2835
      %v2869 = vpack.c.bf16 %v2838, %v2837
      %v2870 = vpack.c.bf16 %v2840, %v2839
      %v2871 = vpack.c.bf16 %v2842, %v2841
      %v2872 = vpack.c.bf16 %v2844, %v2843
      %v2873 = vpack.c.bf16 %v2846, %v2845
      %v2874 = vpack.c.bf16 %v2848, %v2847
      %v2875 = vpack.c.bf16 %v2850, %v2849
      %v2876 = vpack.c.bf16 %v2852, %v2851
      %v2877 = vpack.c.bf16 %v2854, %v2853
      %v2878 = vpack.c.bf16 %v2856, %v2855
      %v2879 = vpack.c.bf16 %v2858, %v2857
      %v2880 = vpack.c.bf16 %v2860, %v2859
      %v2881 = vpack.c.bf16 %v2862, %v2861
      %v2882 = vpack.c.bf16 %v2864, %v2863
      %s2883 = scalar_lea.vmem %s4, 56
      %v2884 = vld [vmem:[%s2883] sm:$0xf]
      %v2885 = vld [vmem:[%s2883 + $0x4] sm:$0xf]
      %v2888 = vunpack.c.l.b16 %v2884
      %v2889 = vunpack.c.l.b16 %v2885
      %v2890 = vpack.c.b16 %v2889, %v2888
      %v2893 = vsel %vm1092, %v2865, 0
      %v2896 = vsel %vm1092, %v2866, 0
      %v2899 = vsel %vm1092, %v2867, 0
      %v2902 = vsel %vm1092, %v2868, 0
      %v2905 = vsel %vm1092, %v2869, 0
      %v2908 = vsel %vm1092, %v2870, 0
      %v2911 = vsel %vm1092, %v2871, 0
      %v2914 = vsel %vm1092, %v2872, 0
      %v2917 = vsel %vm1092, %v2873, 0
      %v2920 = vsel %vm1092, %v2874, 0
      %v2923 = vsel %vm1092, %v2875, 0
      %v2926 = vsel %vm1092, %v2876, 0
      %v2929 = vsel %vm1092, %v2877, 0
      %v2932 = vsel %vm1092, %v2878, 0
      %v2935 = vsel %vm1092, %v2879, 0
      %v2938 = vsel %vm1092, %v2880, 0
      %v2941 = vsel %vm1092, %v2881, 0
      %v2944 = vsel %vm1092, %v2882, 0
      %2946 = vmatpush.bf16.msra.mxu0 0
      %2947 = vmatpush.bf16.msra.mxu0 0
      %2948 = vmatpush.bf16.msra.mxu0 0
      %2949 = vmatpush.bf16.msra.mxu0 0
      %2950 = vmatpush.bf16.msra.mxu0 0
      %2951 = vmatpush.bf16.msra.mxu0 0
      %2952 = vmatpush.bf16.msra.mxu0 0
      %2953 = vmatpush.bf16.msra.mxu0 %v2890
      %2954 = vmatmul.bf16.gmra.mxu0 %v2893
      %v2955 = vpop.f32.mrf.mxu0
      %v2956 = vadd.f32 0.0, %v2955
      %v2957 = vpop.f32.mrf.mxu0
      %v2958 = vadd.f32 0.0, %v2957
      %2959 = vmatmul.bf16.gmra.mxu0 %v2896
      %v2960 = vpop.f32.mrf.mxu0
      %v2961 = vadd.f32 0.0, %v2960
      %v2962 = vpop.f32.mrf.mxu0
      %v2963 = vadd.f32 0.0, %v2962
      %2964 = vmatmul.bf16.gmra.mxu0 %v2899
      %v2965 = vpop.f32.mrf.mxu0
      %v2966 = vadd.f32 0.0, %v2965
      %v2967 = vpop.f32.mrf.mxu0
      %v2968 = vadd.f32 0.0, %v2967
      %2969 = vmatmul.bf16.gmra.mxu0 %v2902
      %v2970 = vpop.f32.mrf.mxu0
      %v2971 = vadd.f32 0.0, %v2970
      %v2972 = vpop.f32.mrf.mxu0
      %v2973 = vadd.f32 0.0, %v2972
      %2974 = vmatmul.bf16.gmra.mxu0 %v2905
      %v2975 = vpop.f32.mrf.mxu0
      %v2976 = vadd.f32 0.0, %v2975
      %v2977 = vpop.f32.mrf.mxu0
      %v2978 = vadd.f32 0.0, %v2977
      %2979 = vmatmul.bf16.gmra.mxu0 %v2908
      %v2980 = vpop.f32.mrf.mxu0
      %v2981 = vadd.f32 0.0, %v2980
      %v2982 = vpop.f32.mrf.mxu0
      %v2983 = vadd.f32 0.0, %v2982
      %2984 = vmatmul.bf16.gmra.mxu0 %v2911
      %v2985 = vpop.f32.mrf.mxu0
      %v2986 = vadd.f32 0.0, %v2985
      %v2987 = vpop.f32.mrf.mxu0
      %v2988 = vadd.f32 0.0, %v2987
      %2989 = vmatmul.bf16.gmra.mxu0 %v2914
      %v2990 = vpop.f32.mrf.mxu0
      %v2991 = vadd.f32 0.0, %v2990
      %v2992 = vpop.f32.mrf.mxu0
      %v2993 = vadd.f32 0.0, %v2992
      %2994 = vmatmul.bf16.gmra.mxu0 %v2917
      %v2995 = vpop.f32.mrf.mxu0
      %v2996 = vadd.f32 0.0, %v2995
      %v2997 = vpop.f32.mrf.mxu0
      %v2998 = vadd.f32 0.0, %v2997
      %2999 = vmatmul.bf16.gmra.mxu0 %v2920
      %v3000 = vpop.f32.mrf.mxu0
      %v3001 = vadd.f32 0.0, %v3000
      %v3002 = vpop.f32.mrf.mxu0
      %v3003 = vadd.f32 0.0, %v3002
      %3004 = vmatmul.bf16.gmra.mxu0 %v2923
      %v3005 = vpop.f32.mrf.mxu0
      %v3006 = vadd.f32 0.0, %v3005
      %v3007 = vpop.f32.mrf.mxu0
      %v3008 = vadd.f32 0.0, %v3007
      %3009 = vmatmul.bf16.gmra.mxu0 %v2926
      %v3010 = vpop.f32.mrf.mxu0
      %v3011 = vadd.f32 0.0, %v3010
      %v3012 = vpop.f32.mrf.mxu0
      %v3013 = vadd.f32 0.0, %v3012
      %3014 = vmatmul.bf16.gmra.mxu0 %v2929
      %v3015 = vpop.f32.mrf.mxu0
      %v3016 = vadd.f32 0.0, %v3015
      %v3017 = vpop.f32.mrf.mxu0
      %v3018 = vadd.f32 0.0, %v3017
      %3019 = vmatmul.bf16.gmra.mxu0 %v2932
      %v3020 = vpop.f32.mrf.mxu0
      %v3021 = vadd.f32 0.0, %v3020
      %v3022 = vpop.f32.mrf.mxu0
      %v3023 = vadd.f32 0.0, %v3022
      %3024 = vmatmul.bf16.gmra.mxu0 %v2935
      %v3025 = vpop.f32.mrf.mxu0
      %v3026 = vadd.f32 0.0, %v3025
      %v3027 = vpop.f32.mrf.mxu0
      %v3028 = vadd.f32 0.0, %v3027
      %3029 = vmatmul.bf16.gmra.mxu0 %v2938
      %v3030 = vpop.f32.mrf.mxu0
      %v3031 = vadd.f32 0.0, %v3030
      %v3032 = vpop.f32.mrf.mxu0
      %v3033 = vadd.f32 0.0, %v3032
      %3034 = vmatmul.bf16.gmra.mxu0 %v2941
      %v3035 = vpop.f32.mrf.mxu0
      %v3036 = vadd.f32 0.0, %v3035
      %v3037 = vpop.f32.mrf.mxu0
      %v3038 = vadd.f32 0.0, %v3037
      %3039 = vmatmul.bf16.gmra.mxu0 %v2944
      %v3040 = vpop.f32.mrf.mxu0
      %v3041 = vadd.f32 0.0, %v3040
      %v3042 = vpop.f32.mrf.mxu0
      %v3043 = vadd.f32 0.0, %v3042
      %3044 = vdwg.mxu0
      %v3045 = vadd.f32 %v2793, %v2956
      %v3046 = vadd.f32 %v2794, %v2958
      %v3047 = vadd.f32 %v2795, %v2961
      %v3048 = vadd.f32 %v2796, %v2963
      %v3049 = vadd.f32 %v2797, %v2966
      %v3050 = vadd.f32 %v2798, %v2968
      %v3051 = vadd.f32 %v2799, %v2971
      %v3052 = vadd.f32 %v2800, %v2973
      %v3053 = vadd.f32 %v2801, %v2976
      %v3054 = vadd.f32 %v2802, %v2978
      %v3055 = vadd.f32 %v2803, %v2981
      %v3056 = vadd.f32 %v2804, %v2983
      %v3057 = vadd.f32 %v2805, %v2986
      %v3058 = vadd.f32 %v2806, %v2988
      %v3059 = vadd.f32 %v2807, %v2991
      %v3060 = vadd.f32 %v2808, %v2993
      %v3061 = vadd.f32 %v2809, %v2996
      %v3062 = vadd.f32 %v2810, %v2998
      %v3063 = vadd.f32 %v2811, %v3001
      %v3064 = vadd.f32 %v2812, %v3003
      %v3065 = vadd.f32 %v2813, %v3006
      %v3066 = vadd.f32 %v2814, %v3008
      %v3067 = vadd.f32 %v2815, %v3011
      %v3068 = vadd.f32 %v2816, %v3013
      %v3069 = vadd.f32 %v2817, %v3016
      %v3070 = vadd.f32 %v2818, %v3018
      %v3071 = vadd.f32 %v2819, %v3021
      %v3072 = vadd.f32 %v2820, %v3023
      %v3073 = vadd.f32 %v2821, %v3026
      %v3074 = vadd.f32 %v2822, %v3028
      %v3075 = vadd.f32 %v2823, %v3031
      %v3076 = vadd.f32 %v2824, %v3033
      %v3077 = vadd.f32 %v2825, %v3036
      %v3078 = vadd.f32 %v2826, %v3038
      %v3079 = vadd.f32 %v2827, %v3041
      %v3080 = vadd.f32 %v2828, %v3043
      %v3081 = vld [vmem:[#allocation2 + $0x26] sm:$0xff]
      %v3082 = vld [vmem:[#allocation2 + $0x2e] sm:$0xff]
      %v3083 = vld [vmem:[#allocation2 + $0x36] sm:$0xff]
      %v3084 = vld [vmem:[#allocation2 + $0x3e] sm:$0xff]
      %v3085 = vld [vmem:[#allocation2 + $0x46] sm:$0xff]
      %v3086 = vld [vmem:[#allocation2 + $0x4e] sm:$0xff]
      %v3087 = vld [vmem:[#allocation2 + $0x56] sm:$0xff]
      %v3088 = vld [vmem:[#allocation2 + $0x5e] sm:$0xff]
      %v3089 = vld [vmem:[#allocation2 + $0x66] sm:$0xff]
      %v3090 = vld [vmem:[#allocation2 + $0x6e] sm:$0xff]
      %v3091 = vld [vmem:[#allocation2 + $0x76] sm:$0xff]
      %v3092 = vld [vmem:[#allocation2 + $0x7e] sm:$0xff]
      %v3093 = vld [vmem:[#allocation2 + $0x86] sm:$0xff]
      %v3094 = vld [vmem:[#allocation2 + $0x8e] sm:$0xff]
      %v3095 = vld [vmem:[#allocation2 + $0x96] sm:$0xff]
      %v3096 = vld [vmem:[#allocation2 + $0x9e] sm:$0xff]
      %v3097 = vld [vmem:[#allocation2 + $0xa6] sm:$0xff]
      %v3098 = vld [vmem:[#allocation2 + $0xae] sm:$0xff]
      %v3099 = vld [vmem:[#allocation2 + $0xb6] sm:$0xff]
      %v3100 = vld [vmem:[#allocation2 + $0xbe] sm:$0xff]
      %v3101 = vld [vmem:[#allocation2 + $0xc6] sm:$0xff]
      %v3102 = vld [vmem:[#allocation2 + $0xce] sm:$0xff]
      %v3103 = vld [vmem:[#allocation2 + $0xd6] sm:$0xff]
      %v3104 = vld [vmem:[#allocation2 + $0xde] sm:$0xff]
      %v3105 = vld [vmem:[#allocation2 + $0xe6] sm:$0xff]
      %v3106 = vld [vmem:[#allocation2 + $0xee] sm:$0xff]
      %v3107 = vld [vmem:[#allocation2 + $0xf6] sm:$0xff]
      %v3108 = vld [vmem:[#allocation2 + $0xfe] sm:$0xff]
      %v3109 = vld [vmem:[#allocation2 + $0x106] sm:$0xff]
      %v3110 = vld [vmem:[#allocation2 + $0x10e] sm:$0xff]
      %v3111 = vld [vmem:[#allocation2 + $0x116] sm:$0xff]
      %v3112 = vld [vmem:[#allocation2 + $0x11e] sm:$0xff]
      %v3113 = vld [vmem:[#allocation2 + $0x126] sm:$0xff]
      %v3114 = vld [vmem:[#allocation2 + $0x12e] sm:$0xff]
      %v3115 = vld [vmem:[#allocation2 + $0x136] sm:$0xff]
      %v3116 = vld [vmem:[#allocation2 + $0x13e] sm:$0xff]
      %v3117 = vpack.c.bf16 %v3082, %v3081
      %v3118 = vpack.c.bf16 %v3084, %v3083
      %v3119 = vpack.c.bf16 %v3086, %v3085
      %v3120 = vpack.c.bf16 %v3088, %v3087
      %v3121 = vpack.c.bf16 %v3090, %v3089
      %v3122 = vpack.c.bf16 %v3092, %v3091
      %v3123 = vpack.c.bf16 %v3094, %v3093
      %v3124 = vpack.c.bf16 %v3096, %v3095
      %v3125 = vpack.c.bf16 %v3098, %v3097
      %v3126 = vpack.c.bf16 %v3100, %v3099
      %v3127 = vpack.c.bf16 %v3102, %v3101
      %v3128 = vpack.c.bf16 %v3104, %v3103
      %v3129 = vpack.c.bf16 %v3106, %v3105
      %v3130 = vpack.c.bf16 %v3108, %v3107
      %v3131 = vpack.c.bf16 %v3110, %v3109
      %v3132 = vpack.c.bf16 %v3112, %v3111
      %v3133 = vpack.c.bf16 %v3114, %v3113
      %v3134 = vpack.c.bf16 %v3116, %v3115
      %s3135 = scalar_lea.vmem %s4, 64
      %v3136 = vld [vmem:[%s3135] sm:$0xf]
      %v3137 = vld [vmem:[%s3135 + $0x4] sm:$0xf]
      %v3140 = vunpack.c.l.b16 %v3136
      %v3141 = vunpack.c.l.b16 %v3137
      %v3142 = vpack.c.b16 %v3141, %v3140
      %v3145 = vsel %vm1092, %v3117, 0
      %v3148 = vsel %vm1092, %v3118, 0
      %v3151 = vsel %vm1092, %v3119, 0
      %v3154 = vsel %vm1092, %v3120, 0
      %v3157 = vsel %vm1092, %v3121, 0
      %v3160 = vsel %vm1092, %v3122, 0
      %v3163 = vsel %vm1092, %v3123, 0
      %v3166 = vsel %vm1092, %v3124, 0
      %v3169 = vsel %vm1092, %v3125, 0
      %v3172 = vsel %vm1092, %v3126, 0
      %v3175 = vsel %vm1092, %v3127, 0
      %v3178 = vsel %vm1092, %v3128, 0
      %v3181 = vsel %vm1092, %v3129, 0
      %v3184 = vsel %vm1092, %v3130, 0
      %v3187 = vsel %vm1092, %v3131, 0
      %v3190 = vsel %vm1092, %v3132, 0
      %v3193 = vsel %vm1092, %v3133, 0
      %v3196 = vsel %vm1092, %v3134, 0
      %3198 = vmatpush.bf16.msra.mxu0 0
      %3199 = vmatpush.bf16.msra.mxu0 0
      %3200 = vmatpush.bf16.msra.mxu0 0
      %3201 = vmatpush.bf16.msra.mxu0 0
      %3202 = vmatpush.bf16.msra.mxu0 0
      %3203 = vmatpush.bf16.msra.mxu0 0
      %3204 = vmatpush.bf16.msra.mxu0 0
      %3205 = vmatpush.bf16.msra.mxu0 %v3142
      %3206 = vmatmul.bf16.gmra.mxu0 %v3145
      %v3207 = vpop.f32.mrf.mxu0
      %v3208 = vadd.f32 0.0, %v3207
      %v3209 = vpop.f32.mrf.mxu0
      %v3210 = vadd.f32 0.0, %v3209
      %3211 = vmatmul.bf16.gmra.mxu0 %v3148
      %v3212 = vpop.f32.mrf.mxu0
      %v3213 = vadd.f32 0.0, %v3212
      %v3214 = vpop.f32.mrf.mxu0
      %v3215 = vadd.f32 0.0, %v3214
      %3216 = vmatmul.bf16.gmra.mxu0 %v3151
      %v3217 = vpop.f32.mrf.mxu0
      %v3218 = vadd.f32 0.0, %v3217
      %v3219 = vpop.f32.mrf.mxu0
      %v3220 = vadd.f32 0.0, %v3219
      %3221 = vmatmul.bf16.gmra.mxu0 %v3154
      %v3222 = vpop.f32.mrf.mxu0
      %v3223 = vadd.f32 0.0, %v3222
      %v3224 = vpop.f32.mrf.mxu0
      %v3225 = vadd.f32 0.0, %v3224
      %3226 = vmatmul.bf16.gmra.mxu0 %v3157
      %v3227 = vpop.f32.mrf.mxu0
      %v3228 = vadd.f32 0.0, %v3227
      %v3229 = vpop.f32.mrf.mxu0
      %v3230 = vadd.f32 0.0, %v3229
      %3231 = vmatmul.bf16.gmra.mxu0 %v3160
      %v3232 = vpop.f32.mrf.mxu0
      %v3233 = vadd.f32 0.0, %v3232
      %v3234 = vpop.f32.mrf.mxu0
      %v3235 = vadd.f32 0.0, %v3234
      %3236 = vmatmul.bf16.gmra.mxu0 %v3163
      %v3237 = vpop.f32.mrf.mxu0
      %v3238 = vadd.f32 0.0, %v3237
      %v3239 = vpop.f32.mrf.mxu0
      %v3240 = vadd.f32 0.0, %v3239
      %3241 = vmatmul.bf16.gmra.mxu0 %v3166
      %v3242 = vpop.f32.mrf.mxu0
      %v3243 = vadd.f32 0.0, %v3242
      %v3244 = vpop.f32.mrf.mxu0
      %v3245 = vadd.f32 0.0, %v3244
      %3246 = vmatmul.bf16.gmra.mxu0 %v3169
      %v3247 = vpop.f32.mrf.mxu0
      %v3248 = vadd.f32 0.0, %v3247
      %v3249 = vpop.f32.mrf.mxu0
      %v3250 = vadd.f32 0.0, %v3249
      %3251 = vmatmul.bf16.gmra.mxu0 %v3172
      %v3252 = vpop.f32.mrf.mxu0
      %v3253 = vadd.f32 0.0, %v3252
      %v3254 = vpop.f32.mrf.mxu0
      %v3255 = vadd.f32 0.0, %v3254
      %3256 = vmatmul.bf16.gmra.mxu0 %v3175
      %v3257 = vpop.f32.mrf.mxu0
      %v3258 = vadd.f32 0.0, %v3257
      %v3259 = vpop.f32.mrf.mxu0
      %v3260 = vadd.f32 0.0, %v3259
      %3261 = vmatmul.bf16.gmra.mxu0 %v3178
      %v3262 = vpop.f32.mrf.mxu0
      %v3263 = vadd.f32 0.0, %v3262
      %v3264 = vpop.f32.mrf.mxu0
      %v3265 = vadd.f32 0.0, %v3264
      %3266 = vmatmul.bf16.gmra.mxu0 %v3181
      %v3267 = vpop.f32.mrf.mxu0
      %v3268 = vadd.f32 0.0, %v3267
      %v3269 = vpop.f32.mrf.mxu0
      %v3270 = vadd.f32 0.0, %v3269
      %3271 = vmatmul.bf16.gmra.mxu0 %v3184
      %v3272 = vpop.f32.mrf.mxu0
      %v3273 = vadd.f32 0.0, %v3272
      %v3274 = vpop.f32.mrf.mxu0
      %v3275 = vadd.f32 0.0, %v3274
      %3276 = vmatmul.bf16.gmra.mxu0 %v3187
      %v3277 = vpop.f32.mrf.mxu0
      %v3278 = vadd.f32 0.0, %v3277
      %v3279 = vpop.f32.mrf.mxu0
      %v3280 = vadd.f32 0.0, %v3279
      %3281 = vmatmul.bf16.gmra.mxu0 %v3190
      %v3282 = vpop.f32.mrf.mxu0
      %v3283 = vadd.f32 0.0, %v3282
      %v3284 = vpop.f32.mrf.mxu0
      %v3285 = vadd.f32 0.0, %v3284
      %3286 = vmatmul.bf16.gmra.mxu0 %v3193
      %v3287 = vpop.f32.mrf.mxu0
      %v3288 = vadd.f32 0.0, %v3287
      %v3289 = vpop.f32.mrf.mxu0
      %v3290 = vadd.f32 0.0, %v3289
      %3291 = vmatmul.bf16.gmra.mxu0 %v3196
      %v3292 = vpop.f32.mrf.mxu0
      %v3293 = vadd.f32 0.0, %v3292
      %v3294 = vpop.f32.mrf.mxu0
      %v3295 = vadd.f32 0.0, %v3294
      %3296 = vdwg.mxu0
      %v3297 = vadd.f32 %v3045, %v3208
      %v3298 = vadd.f32 %v3046, %v3210
      %v3299 = vadd.f32 %v3047, %v3213
      %v3300 = vadd.f32 %v3048, %v3215
      %v3301 = vadd.f32 %v3049, %v3218
      %v3302 = vadd.f32 %v3050, %v3220
      %v3303 = vadd.f32 %v3051, %v3223
      %v3304 = vadd.f32 %v3052, %v3225
      %v3305 = vadd.f32 %v3053, %v3228
      %v3306 = vadd.f32 %v3054, %v3230
      %v3307 = vadd.f32 %v3055, %v3233
      %v3308 = vadd.f32 %v3056, %v3235
      %v3309 = vadd.f32 %v3057, %v3238
      %v3310 = vadd.f32 %v3058, %v3240
      %v3311 = vadd.f32 %v3059, %v3243
      %v3312 = vadd.f32 %v3060, %v3245
      %v3313 = vadd.f32 %v3061, %v3248
      %v3314 = vadd.f32 %v3062, %v3250
      %v3315 = vadd.f32 %v3063, %v3253
      %v3316 = vadd.f32 %v3064, %v3255
      %v3317 = vadd.f32 %v3065, %v3258
      %v3318 = vadd.f32 %v3066, %v3260
      %v3319 = vadd.f32 %v3067, %v3263
      %v3320 = vadd.f32 %v3068, %v3265
      %v3321 = vadd.f32 %v3069, %v3268
      %v3322 = vadd.f32 %v3070, %v3270
      %v3323 = vadd.f32 %v3071, %v3273
      %v3324 = vadd.f32 %v3072, %v3275
      %v3325 = vadd.f32 %v3073, %v3278
      %v3326 = vadd.f32 %v3074, %v3280
      %v3327 = vadd.f32 %v3075, %v3283
      %v3328 = vadd.f32 %v3076, %v3285
      %v3329 = vadd.f32 %v3077, %v3288
      %v3330 = vadd.f32 %v3078, %v3290
      %v3331 = vadd.f32 %v3079, %v3293
      %v3332 = vadd.f32 %v3080, %v3295
      %v3333 = vld [vmem:[%s5] sm:$0x1]
      %v3335 = vperm.slane %v3333, 0
      %v3337 = vadd.f32 %v3297, %v3335
      %v3338 = vadd.f32 %v3298, %v3335
      %v3339 = vadd.f32 %v3299, %v3335
      %v3340 = vadd.f32 %v3300, %v3335
      %v3341 = vadd.f32 %v3301, %v3335
      %v3342 = vadd.f32 %v3302, %v3335
      %v3343 = vadd.f32 %v3303, %v3335
      %v3344 = vadd.f32 %v3304, %v3335
      %v3345 = vadd.f32 %v3305, %v3335
      %v3346 = vadd.f32 %v3306, %v3335
      %v3347 = vadd.f32 %v3307, %v3335
      %v3348 = vadd.f32 %v3308, %v3335
      %v3349 = vadd.f32 %v3309, %v3335
      %v3350 = vadd.f32 %v3310, %v3335
      %v3351 = vadd.f32 %v3311, %v3335
      %v3352 = vadd.f32 %v3312, %v3335
      %v3353 = vadd.f32 %v3313, %v3335
      %v3354 = vadd.f32 %v3314, %v3335
      %v3355 = vadd.f32 %v3315, %v3335
      %v3356 = vadd.f32 %v3316, %v3335
      %v3357 = vadd.f32 %v3317, %v3335
      %v3358 = vadd.f32 %v3318, %v3335
      %v3359 = vadd.f32 %v3319, %v3335
      %v3360 = vadd.f32 %v3320, %v3335
      %v3361 = vadd.f32 %v3321, %v3335
      %v3362 = vadd.f32 %v3322, %v3335
      %v3363 = vadd.f32 %v3323, %v3335
      %v3364 = vadd.f32 %v3324, %v3335
      %v3365 = vadd.f32 %v3325, %v3335
      %v3366 = vadd.f32 %v3326, %v3335
      %v3367 = vadd.f32 %v3327, %v3335
      %v3368 = vadd.f32 %v3328, %v3335
      %v3369 = vadd.f32 %v3329, %v3335
      %v3370 = vadd.f32 %v3330, %v3335
      %v3371 = vadd.f32 %v3331, %v3335
      %v3372 = vadd.f32 %v3332, %v3335
      %v3373 = vmax.f32 %v3337, 0.0
      %v3374 = vmax.f32 %v3338, 0.0
      %v3375 = vmax.f32 %v3339, 0.0
      %v3376 = vmax.f32 %v3340, 0.0
      %v3377 = vmax.f32 %v3341, 0.0
      %v3378 = vmax.f32 %v3342, 0.0
      %v3379 = vmax.f32 %v3343, 0.0
      %v3380 = vmax.f32 %v3344, 0.0
      %v3381 = vmax.f32 %v3345, 0.0
      %v3382 = vmax.f32 %v3346, 0.0
      %v3383 = vmax.f32 %v3347, 0.0
      %v3384 = vmax.f32 %v3348, 0.0
      %v3385 = vmax.f32 %v3349, 0.0
      %v3386 = vmax.f32 %v3350, 0.0
      %v3387 = vmax.f32 %v3351, 0.0
      %v3388 = vmax.f32 %v3352, 0.0
      %v3389 = vmax.f32 %v3353, 0.0
      %v3390 = vmax.f32 %v3354, 0.0
      %v3391 = vmax.f32 %v3355, 0.0
      %v3392 = vmax.f32 %v3356, 0.0
      %v3393 = vmax.f32 %v3357, 0.0
      %v3394 = vmax.f32 %v3358, 0.0
      %v3395 = vmax.f32 %v3359, 0.0
      %v3396 = vmax.f32 %v3360, 0.0
      %v3397 = vmax.f32 %v3361, 0.0
      %v3398 = vmax.f32 %v3362, 0.0
      %v3399 = vmax.f32 %v3363, 0.0
      %v3400 = vmax.f32 %v3364, 0.0
      %v3401 = vmax.f32 %v3365, 0.0
      %v3402 = vmax.f32 %v3366, 0.0
      %v3403 = vmax.f32 %v3367, 0.0
      %v3404 = vmax.f32 %v3368, 0.0
      %v3405 = vmax.f32 %v3369, 0.0
      %v3406 = vmax.f32 %v3370, 0.0
      %v3407 = vmax.f32 %v3371, 0.0
      %v3408 = vmax.f32 %v3372, 0.0
      %v3409 = vpack.c.bf16 %v3374, %v3373
      %v3410 = vpack.c.bf16 %v3376, %v3375
      %v3411 = vpack.c.bf16 %v3378, %v3377
      %v3412 = vpack.c.bf16 %v3380, %v3379
      %v3413 = vpack.c.bf16 %v3382, %v3381
      %v3414 = vpack.c.bf16 %v3384, %v3383
      %v3415 = vpack.c.bf16 %v3386, %v3385
      %v3416 = vpack.c.bf16 %v3388, %v3387
      %v3417 = vpack.c.bf16 %v3390, %v3389
      %v3418 = vpack.c.bf16 %v3392, %v3391
      %v3419 = vpack.c.bf16 %v3394, %v3393
      %v3420 = vpack.c.bf16 %v3396, %v3395
      %v3421 = vpack.c.bf16 %v3398, %v3397
      %v3422 = vpack.c.bf16 %v3400, %v3399
      %v3423 = vpack.c.bf16 %v3402, %v3401
      %v3424 = vpack.c.bf16 %v3404, %v3403
      %v3425 = vpack.c.bf16 %v3406, %v3405
      %v3426 = vpack.c.bf16 %v3408, %v3407
      %v3427 = vld [vmem:[%s6] sm:$0xf]
      %v3428 = vld [vmem:[%s6 + $0x4] sm:$0xf]
      %v3429 = vld [vmem:[%s7] sm:$0x1]
      %v3431 = vperm.slane %v3429, 0
      %v3435 = vunpack.c.l.b16 %v3427
      %v3436 = vunpack.c.l.b16 %v3428
      %v3437 = vpack.c.b16 %v3436, %v3435
      %v3440 = vsel %vm1092, %v3409, 0
      %v3443 = vsel %vm1092, %v3410, 0
      %v3446 = vsel %vm1092, %v3411, 0
      %v3449 = vsel %vm1092, %v3412, 0
      %v3452 = vsel %vm1092, %v3413, 0
      %v3455 = vsel %vm1092, %v3414, 0
      %v3458 = vsel %vm1092, %v3415, 0
      %v3461 = vsel %vm1092, %v3416, 0
      %v3464 = vsel %vm1092, %v3417, 0
      %v3467 = vsel %vm1092, %v3418, 0
      %v3470 = vsel %vm1092, %v3419, 0
      %v3473 = vsel %vm1092, %v3420, 0
      %v3476 = vsel %vm1092, %v3421, 0
      %v3479 = vsel %vm1092, %v3422, 0
      %v3482 = vsel %vm1092, %v3423, 0
      %v3485 = vsel %vm1092, %v3424, 0
      %v3488 = vsel %vm1092, %v3425, 0
      %v3491 = vsel %vm1092, %v3426, 0
      %3493 = vmatpush.bf16.msra.mxu0 0
      %3494 = vmatpush.bf16.msra.mxu0 0
      %3495 = vmatpush.bf16.msra.mxu0 0
      %3496 = vmatpush.bf16.msra.mxu0 0
      %3497 = vmatpush.bf16.msra.mxu0 0
      %3498 = vmatpush.bf16.msra.mxu0 0
      %3499 = vmatpush.bf16.msra.mxu0 0
      %3500 = vmatpush.bf16.msra.mxu0 %v3437
      %3501 = vmatmul.bf16.gmra.mxu0 %v3440
      %v3502 = vpop.f32.mrf.mxu0
      %v3503 = vadd.f32 %v3431, %v3502
      %v3504 = vpop.f32.mrf.mxu0
      %v3505 = vadd.f32 %v3431, %v3504
      %3506 = vmatmul.bf16.gmra.mxu0 %v3443
      %v3507 = vpop.f32.mrf.mxu0
      %v3508 = vadd.f32 %v3431, %v3507
      %v3509 = vpop.f32.mrf.mxu0
      %v3510 = vadd.f32 %v3431, %v3509
      %3511 = vmatmul.bf16.gmra.mxu0 %v3446
      %v3512 = vpop.f32.mrf.mxu0
      %v3513 = vadd.f32 %v3431, %v3512
      %v3514 = vpop.f32.mrf.mxu0
      %v3515 = vadd.f32 %v3431, %v3514
      %3516 = vmatmul.bf16.gmra.mxu0 %v3449
      %v3517 = vpop.f32.mrf.mxu0
      %v3518 = vadd.f32 %v3431, %v3517
      %v3519 = vpop.f32.mrf.mxu0
      %v3520 = vadd.f32 %v3431, %v3519
      %3521 = vmatmul.bf16.gmra.mxu0 %v3452
      %v3522 = vpop.f32.mrf.mxu0
      %v3523 = vadd.f32 %v3431, %v3522
      %v3524 = vpop.f32.mrf.mxu0
      %v3525 = vadd.f32 %v3431, %v3524
      %3526 = vmatmul.bf16.gmra.mxu0 %v3455
      %v3527 = vpop.f32.mrf.mxu0
      %v3528 = vadd.f32 %v3431, %v3527
      %v3529 = vpop.f32.mrf.mxu0
      %v3530 = vadd.f32 %v3431, %v3529
      %3531 = vmatmul.bf16.gmra.mxu0 %v3458
      %v3532 = vpop.f32.mrf.mxu0
      %v3533 = vadd.f32 %v3431, %v3532
      %v3534 = vpop.f32.mrf.mxu0
      %v3535 = vadd.f32 %v3431, %v3534
      %3536 = vmatmul.bf16.gmra.mxu0 %v3461
      %v3537 = vpop.f32.mrf.mxu0
      %v3538 = vadd.f32 %v3431, %v3537
      %v3539 = vpop.f32.mrf.mxu0
      %v3540 = vadd.f32 %v3431, %v3539
      %3541 = vmatmul.bf16.gmra.mxu0 %v3464
      %v3542 = vpop.f32.mrf.mxu0
      %v3543 = vadd.f32 %v3431, %v3542
      %v3544 = vpop.f32.mrf.mxu0
      %v3545 = vadd.f32 %v3431, %v3544
      %3546 = vmatmul.bf16.gmra.mxu0 %v3467
      %v3547 = vpop.f32.mrf.mxu0
      %v3548 = vadd.f32 %v3431, %v3547
      %v3549 = vpop.f32.mrf.mxu0
      %v3550 = vadd.f32 %v3431, %v3549
      %3551 = vmatmul.bf16.gmra.mxu0 %v3470
      %v3552 = vpop.f32.mrf.mxu0
      %v3553 = vadd.f32 %v3431, %v3552
      %v3554 = vpop.f32.mrf.mxu0
      %v3555 = vadd.f32 %v3431, %v3554
      %3556 = vmatmul.bf16.gmra.mxu0 %v3473
      %v3557 = vpop.f32.mrf.mxu0
      %v3558 = vadd.f32 %v3431, %v3557
      %v3559 = vpop.f32.mrf.mxu0
      %v3560 = vadd.f32 %v3431, %v3559
      %3561 = vmatmul.bf16.gmra.mxu0 %v3476
      %v3562 = vpop.f32.mrf.mxu0
      %v3563 = vadd.f32 %v3431, %v3562
      %v3564 = vpop.f32.mrf.mxu0
      %v3565 = vadd.f32 %v3431, %v3564
      %3566 = vmatmul.bf16.gmra.mxu0 %v3479
      %v3567 = vpop.f32.mrf.mxu0
      %v3568 = vadd.f32 %v3431, %v3567
      %v3569 = vpop.f32.mrf.mxu0
      %v3570 = vadd.f32 %v3431, %v3569
      %3571 = vmatmul.bf16.gmra.mxu0 %v3482
      %v3572 = vpop.f32.mrf.mxu0
      %v3573 = vadd.f32 %v3431, %v3572
      %v3574 = vpop.f32.mrf.mxu0
      %v3575 = vadd.f32 %v3431, %v3574
      %3576 = vmatmul.bf16.gmra.mxu0 %v3485
      %v3577 = vpop.f32.mrf.mxu0
      %v3578 = vadd.f32 %v3431, %v3577
      %v3579 = vpop.f32.mrf.mxu0
      %v3580 = vadd.f32 %v3431, %v3579
      %3581 = vmatmul.bf16.gmra.mxu0 %v3488
      %v3582 = vpop.f32.mrf.mxu0
      %v3583 = vadd.f32 %v3431, %v3582
      %v3584 = vpop.f32.mrf.mxu0
      %v3585 = vadd.f32 %v3431, %v3584
      %3586 = vmatmul.bf16.gmra.mxu0 %v3491
      %v3587 = vpop.f32.mrf.mxu0
      %v3588 = vadd.f32 %v3431, %v3587
      %v3589 = vpop.f32.mrf.mxu0
      %v3590 = vadd.f32 %v3431, %v3589
      %3591 = vdwg.mxu0
      %v3592 = vunpack.c.l.bf16 %v363
      %v3593 = vunpack.c.l.bf16 %v364
      %v3594 = vunpack.c.l.bf16 %v365
      %v3595 = vunpack.c.l.bf16 %v366
      %v3596 = vunpack.c.l.bf16 %v367
      %v3597 = vunpack.c.l.bf16 %v368
      %v3598 = vunpack.c.l.bf16 %v369
      %v3599 = vunpack.c.l.bf16 %v370
      %v3600 = vunpack.c.l.bf16 %v371
      %v3601 = vunpack.c.l.bf16 %v372
      %v3602 = vunpack.c.l.bf16 %v373
      %v3603 = vunpack.c.l.bf16 %v374
      %v3604 = vunpack.c.l.bf16 %v375
      %v3605 = vunpack.c.l.bf16 %v376
      %v3606 = vunpack.c.l.bf16 %v377
      %v3607 = vunpack.c.l.bf16 %v378
      %v3608 = vunpack.c.l.bf16 %v379
      %v3609 = vunpack.c.l.bf16 %v380
      %v3610 = vunpack.c.l.bf16 %v381
      %v3611 = vunpack.c.l.bf16 %v382
      %v3612 = vunpack.c.l.bf16 %v383
      %v3613 = vunpack.c.l.bf16 %v384
      %v3614 = vunpack.c.l.bf16 %v385
      %v3615 = vunpack.c.l.bf16 %v386
      %v3616 = vunpack.c.l.bf16 %v387
      %v3617 = vunpack.c.l.bf16 %v388
      %v3618 = vunpack.c.l.bf16 %v389
      %v3619 = vunpack.c.l.bf16 %v390
      %v3620 = vunpack.c.l.bf16 %v391
      %v3621 = vunpack.c.l.bf16 %v392
      %v3622 = vunpack.c.l.bf16 %v393
      %v3623 = vunpack.c.l.bf16 %v394
      %v3624 = vunpack.c.l.bf16 %v395
      %v3625 = vunpack.c.l.bf16 %v396
      %v3626 = vunpack.c.l.bf16 %v397
      %v3627 = vunpack.c.l.bf16 %v398
      %v3628 = vunpack.c.l.bf16 %v399
      %v3629 = vpack.c.bf16 %v3593, %v3592
      %v3630 = vpack.c.bf16 %v3595, %v3594
      %v3631 = vpack.c.bf16 %v3597, %v3596
      %v3632 = vpack.c.bf16 %v3599, %v3598
      %v3633 = vpack.c.bf16 %v3601, %v3600
      %v3634 = vpack.c.bf16 %v3603, %v3602
      %v3635 = vpack.c.bf16 %v3605, %v3604
      %v3636 = vpack.c.bf16 %v3607, %v3606
      %v3637 = vpack.c.bf16 %v3609, %v3608
      %v3638 = vpack.c.bf16 %v3611, %v3610
      %v3639 = vpack.c.bf16 %v3613, %v3612
      %v3640 = vpack.c.bf16 %v3615, %v3614
      %v3641 = vpack.c.bf16 %v3617, %v3616
      %v3642 = vpack.c.bf16 %v3619, %v3618
      %v3643 = vpack.c.bf16 %v3621, %v3620
      %v3644 = vpack.c.bf16 %v3623, %v3622
      %v3645 = vpack.c.bf16 %v3625, %v3624
      %v3646 = vpack.c.bf16 %v3627, %v3626
      %v3647 = vpack.c.bf16 %v3628, %v3628
      %v3648 = vld [vmem:[%s8] sm:$0xf]
      %v3649 = vld [vmem:[%s8 + $0x4] sm:$0xf]
      %v3650 = vld [vmem:[%s8 + $0x8] sm:$0xf]
      %v3651 = vld [vmem:[%s8 + $0xc] sm:$0xf]
      %vm3652 = vsmask.f32 6400
      %v3654 = vshrl.u32 %v3629, 16
      %v3656 = vrot.slane %v3654, 1
      %v3657 = vshll.u32 %v3629, 16
      %v3659 = vrot.slane %v3657, 2
      %v3660 = vor.u32 %v3656, %v3659
      %v3662 = vshrl.u32 %v3630, 16
      %v3664 = vrot.slane %v3662, 1
      %v3665 = vshll.u32 %v3630, 16
      %v3667 = vrot.slane %v3665, 2
      %v3668 = vor.u32 %v3664, %v3667
      %v3669 = vsel %vm3652, %v3660, %v3668
      %v3671 = vshrl.u32 %v3631, 16
      %v3673 = vrot.slane %v3671, 1
      %v3674 = vshll.u32 %v3631, 16
      %v3676 = vrot.slane %v3674, 2
      %v3677 = vor.u32 %v3673, %v3676
      %v3678 = vsel %vm3652, %v3668, %v3677
      %v3680 = vshrl.u32 %v3632, 16
      %v3682 = vrot.slane %v3680, 1
      %v3683 = vshll.u32 %v3632, 16
      %v3685 = vrot.slane %v3683, 2
      %v3686 = vor.u32 %v3682, %v3685
      %v3687 = vsel %vm3652, %v3677, %v3686
      %v3689 = vshrl.u32 %v3633, 16
      %v3691 = vrot.slane %v3689, 1
      %v3692 = vshll.u32 %v3633, 16
      %v3694 = vrot.slane %v3692, 2
      %v3695 = vor.u32 %v3691, %v3694
      %v3696 = vsel %vm3652, %v3686, %v3695
      %v3698 = vshrl.u32 %v3634, 16
      %v3700 = vrot.slane %v3698, 1
      %v3701 = vshll.u32 %v3634, 16
      %v3703 = vrot.slane %v3701, 2
      %v3704 = vor.u32 %v3700, %v3703
      %v3705 = vsel %vm3652, %v3695, %v3704
      %v3707 = vshrl.u32 %v3635, 16
      %v3709 = vrot.slane %v3707, 1
      %v3710 = vshll.u32 %v3635, 16
      %v3712 = vrot.slane %v3710, 2
      %v3713 = vor.u32 %v3709, %v3712
      %v3714 = vsel %vm3652, %v3704, %v3713
      %v3716 = vshrl.u32 %v3636, 16
      %v3718 = vrot.slane %v3716, 1
      %v3719 = vshll.u32 %v3636, 16
      %v3721 = vrot.slane %v3719, 2
      %v3722 = vor.u32 %v3718, %v3721
      %v3723 = vsel %vm3652, %v3713, %v3722
      %v3725 = vshrl.u32 %v3637, 16
      %v3727 = vrot.slane %v3725, 1
      %v3728 = vshll.u32 %v3637, 16
      %v3730 = vrot.slane %v3728, 2
      %v3731 = vor.u32 %v3727, %v3730
      %v3732 = vsel %vm3652, %v3722, %v3731
      %v3734 = vshrl.u32 %v3638, 16
      %v3736 = vrot.slane %v3734, 1
      %v3737 = vshll.u32 %v3638, 16
      %v3739 = vrot.slane %v3737, 2
      %v3740 = vor.u32 %v3736, %v3739
      %v3741 = vsel %vm3652, %v3731, %v3740
      %v3743 = vshrl.u32 %v3639, 16
      %v3745 = vrot.slane %v3743, 1
      %v3746 = vshll.u32 %v3639, 16
      %v3748 = vrot.slane %v3746, 2
      %v3749 = vor.u32 %v3745, %v3748
      %v3750 = vsel %vm3652, %v3740, %v3749
      %v3752 = vshrl.u32 %v3640, 16
      %v3754 = vrot.slane %v3752, 1
      %v3755 = vshll.u32 %v3640, 16
      %v3757 = vrot.slane %v3755, 2
      %v3758 = vor.u32 %v3754, %v3757
      %v3759 = vsel %vm3652, %v3749, %v3758
      %v3761 = vshrl.u32 %v3641, 16
      %v3763 = vrot.slane %v3761, 1
      %v3764 = vshll.u32 %v3641, 16
      %v3766 = vrot.slane %v3764, 2
      %v3767 = vor.u32 %v3763, %v3766
      %v3768 = vsel %vm3652, %v3758, %v3767
      %v3770 = vshrl.u32 %v3642, 16
      %v3772 = vrot.slane %v3770, 1
      %v3773 = vshll.u32 %v3642, 16
      %v3775 = vrot.slane %v3773, 2
      %v3776 = vor.u32 %v3772, %v3775
      %v3777 = vsel %vm3652, %v3767, %v3776
      %v3779 = vshrl.u32 %v3643, 16
      %v3781 = vrot.slane %v3779, 1
      %v3782 = vshll.u32 %v3643, 16
      %v3784 = vrot.slane %v3782, 2
      %v3785 = vor.u32 %v3781, %v3784
      %v3786 = vsel %vm3652, %v3776, %v3785
      %v3788 = vshrl.u32 %v3644, 16
      %v3790 = vrot.slane %v3788, 1
      %v3791 = vshll.u32 %v3644, 16
      %v3793 = vrot.slane %v3791, 2
      %v3794 = vor.u32 %v3790, %v3793
      %v3795 = vsel %vm3652, %v3785, %v3794
      %v3797 = vshrl.u32 %v3645, 16
      %v3799 = vrot.slane %v3797, 1
      %v3800 = vshll.u32 %v3645, 16
      %v3802 = vrot.slane %v3800, 2
      %v3803 = vor.u32 %v3799, %v3802
      %v3804 = vsel %vm3652, %v3794, %v3803
      %v3806 = vshrl.u32 %v3646, 16
      %v3808 = vrot.slane %v3806, 1
      %v3809 = vshll.u32 %v3646, 16
      %v3811 = vrot.slane %v3809, 2
      %v3812 = vor.u32 %v3808, %v3811
      %v3813 = vsel %vm3652, %v3803, %v3812
      %v3815 = vshrl.u32 %v3647, 16
      %v3817 = vrot.slane %v3815, 1
      %v3818 = vshll.u32 %v3647, 16
      %v3820 = vrot.slane %v3818, 2
      %v3821 = vor.u32 %v3817, %v3820
      %v3822 = vsel %vm3652, %v3812, %v3821
      %v3827 = vunpack.c.l.b16 %v3648
      %v3828 = vunpack.c.l.b16 %v3649
      %v3829 = vunpack.c.l.b16 %v3650
      %v3830 = vunpack.c.l.b16 %v3651
      %v3831 = vpack.c.b16 %v3828, %v3827
      %v3832 = vpack.c.b16 %v3830, %v3829
      %v3836 = vsel %vm539, %v3669, 0
      %v3839 = vsel %vm539, %v3678, 0
      %v3842 = vsel %vm539, %v3687, 0
      %v3845 = vsel %vm539, %v3696, 0
      %v3848 = vsel %vm539, %v3705, 0
      %v3851 = vsel %vm539, %v3714, 0
      %v3854 = vsel %vm539, %v3723, 0
      %v3857 = vsel %vm539, %v3732, 0
      %v3860 = vsel %vm539, %v3741, 0
      %v3863 = vsel %vm539, %v3750, 0
      %v3866 = vsel %vm539, %v3759, 0
      %v3869 = vsel %vm539, %v3768, 0
      %v3872 = vsel %vm539, %v3777, 0
      %v3875 = vsel %vm539, %v3786, 0
      %v3878 = vsel %vm539, %v3795, 0
      %v3881 = vsel %vm539, %v3804, 0
      %v3884 = vsel %vm539, %v3813, 0
      %v3887 = vsel %vm539, %v3822, 0
      %3889 = vmatpush.bf16.msra.mxu0 0
      %3890 = vmatpush.bf16.msra.mxu0 0
      %3891 = vmatpush.bf16.msra.mxu0 0
      %3892 = vmatpush.bf16.msra.mxu0 0
      %3893 = vmatpush.bf16.msra.mxu0 0
      %3894 = vmatpush.bf16.msra.mxu0 0
      %3895 = vmatpush.bf16.msra.mxu0 %v3832
      %3896 = vmatpush.bf16.msra.mxu0 %v3831
      %3897 = vmatmul.bf16.gmra.mxu0 %v3836
      %v3898 = vpop.f32.mrf.mxu0
      %v3899 = vadd.f32 0.0, %v3898
      %v3900 = vpop.f32.mrf.mxu0
      %v3901 = vadd.f32 0.0, %v3900
      %3902 = vmatmul.bf16.gmra.mxu0 %v3839
      %v3903 = vpop.f32.mrf.mxu0
      %v3904 = vadd.f32 0.0, %v3903
      %v3905 = vpop.f32.mrf.mxu0
      %v3906 = vadd.f32 0.0, %v3905
      %3907 = vmatmul.bf16.gmra.mxu0 %v3842
      %v3908 = vpop.f32.mrf.mxu0
      %v3909 = vadd.f32 0.0, %v3908
      %v3910 = vpop.f32.mrf.mxu0
      %v3911 = vadd.f32 0.0, %v3910
      %3912 = vmatmul.bf16.gmra.mxu0 %v3845
      %v3913 = vpop.f32.mrf.mxu0
      %v3914 = vadd.f32 0.0, %v3913
      %v3915 = vpop.f32.mrf.mxu0
      %v3916 = vadd.f32 0.0, %v3915
      %3917 = vmatmul.bf16.gmra.mxu0 %v3848
      %v3918 = vpop.f32.mrf.mxu0
      %v3919 = vadd.f32 0.0, %v3918
      %v3920 = vpop.f32.mrf.mxu0
      %v3921 = vadd.f32 0.0, %v3920
      %3922 = vmatmul.bf16.gmra.mxu0 %v3851
      %v3923 = vpop.f32.mrf.mxu0
      %v3924 = vadd.f32 0.0, %v3923
      %v3925 = vpop.f32.mrf.mxu0
      %v3926 = vadd.f32 0.0, %v3925
      %3927 = vmatmul.bf16.gmra.mxu0 %v3854
      %v3928 = vpop.f32.mrf.mxu0
      %v3929 = vadd.f32 0.0, %v3928
      %v3930 = vpop.f32.mrf.mxu0
      %v3931 = vadd.f32 0.0, %v3930
      %3932 = vmatmul.bf16.gmra.mxu0 %v3857
      %v3933 = vpop.f32.mrf.mxu0
      %v3934 = vadd.f32 0.0, %v3933
      %v3935 = vpop.f32.mrf.mxu0
      %v3936 = vadd.f32 0.0, %v3935
      %3937 = vmatmul.bf16.gmra.mxu0 %v3860
      %v3938 = vpop.f32.mrf.mxu0
      %v3939 = vadd.f32 0.0, %v3938
      %v3940 = vpop.f32.mrf.mxu0
      %v3941 = vadd.f32 0.0, %v3940
      %3942 = vmatmul.bf16.gmra.mxu0 %v3863
      %v3943 = vpop.f32.mrf.mxu0
      %v3944 = vadd.f32 0.0, %v3943
      %v3945 = vpop.f32.mrf.mxu0
      %v3946 = vadd.f32 0.0, %v3945
      %3947 = vmatmul.bf16.gmra.mxu0 %v3866
      %v3948 = vpop.f32.mrf.mxu0
      %v3949 = vadd.f32 0.0, %v3948
      %v3950 = vpop.f32.mrf.mxu0
      %v3951 = vadd.f32 0.0, %v3950
      %3952 = vmatmul.bf16.gmra.mxu0 %v3869
      %v3953 = vpop.f32.mrf.mxu0
      %v3954 = vadd.f32 0.0, %v3953
      %v3955 = vpop.f32.mrf.mxu0
      %v3956 = vadd.f32 0.0, %v3955
      %3957 = vmatmul.bf16.gmra.mxu0 %v3872
      %v3958 = vpop.f32.mrf.mxu0
      %v3959 = vadd.f32 0.0, %v3958
      %v3960 = vpop.f32.mrf.mxu0
      %v3961 = vadd.f32 0.0, %v3960
      %3962 = vmatmul.bf16.gmra.mxu0 %v3875
      %v3963 = vpop.f32.mrf.mxu0
      %v3964 = vadd.f32 0.0, %v3963
      %v3965 = vpop.f32.mrf.mxu0
      %v3966 = vadd.f32 0.0, %v3965
      %3967 = vmatmul.bf16.gmra.mxu0 %v3878
      %v3968 = vpop.f32.mrf.mxu0
      %v3969 = vadd.f32 0.0, %v3968
      %v3970 = vpop.f32.mrf.mxu0
      %v3971 = vadd.f32 0.0, %v3970
      %3972 = vmatmul.bf16.gmra.mxu0 %v3881
      %v3973 = vpop.f32.mrf.mxu0
      %v3974 = vadd.f32 0.0, %v3973
      %v3975 = vpop.f32.mrf.mxu0
      %v3976 = vadd.f32 0.0, %v3975
      %3977 = vmatmul.bf16.gmra.mxu0 %v3884
      %v3978 = vpop.f32.mrf.mxu0
      %v3979 = vadd.f32 0.0, %v3978
      %v3980 = vpop.f32.mrf.mxu0
      %v3981 = vadd.f32 0.0, %v3980
      %3982 = vmatmul.bf16.gmra.mxu0 %v3887
      %v3983 = vpop.f32.mrf.mxu0
      %v3984 = vadd.f32 0.0, %v3983
      %v3985 = vpop.f32.mrf.mxu0
      %v3986 = vadd.f32 0.0, %v3985
      %3987 = vdwg.mxu0
      %v3988 = vadd.f32 %v3503, %v3899
      %v3989 = vadd.f32 %v3505, %v3901
      %v3990 = vadd.f32 %v3508, %v3904
      %v3991 = vadd.f32 %v3510, %v3906
      %v3992 = vadd.f32 %v3513, %v3909
      %v3993 = vadd.f32 %v3515, %v3911
      %v3994 = vadd.f32 %v3518, %v3914
      %v3995 = vadd.f32 %v3520, %v3916
      %v3996 = vadd.f32 %v3523, %v3919
      %v3997 = vadd.f32 %v3525, %v3921
      %v3998 = vadd.f32 %v3528, %v3924
      %v3999 = vadd.f32 %v3530, %v3926
      %v4000 = vadd.f32 %v3533, %v3929
      %v4001 = vadd.f32 %v3535, %v3931
      %v4002 = vadd.f32 %v3538, %v3934
      %v4003 = vadd.f32 %v3540, %v3936
      %v4004 = vadd.f32 %v3543, %v3939
      %v4005 = vadd.f32 %v3545, %v3941
      %v4006 = vadd.f32 %v3548, %v3944
      %v4007 = vadd.f32 %v3550, %v3946
      %v4008 = vadd.f32 %v3553, %v3949
      %v4009 = vadd.f32 %v3555, %v3951
      %v4010 = vadd.f32 %v3558, %v3954
      %v4011 = vadd.f32 %v3560, %v3956
      %v4012 = vadd.f32 %v3563, %v3959
      %v4013 = vadd.f32 %v3565, %v3961
      %v4014 = vadd.f32 %v3568, %v3964
      %v4015 = vadd.f32 %v3570, %v3966
      %v4016 = vadd.f32 %v3573, %v3969
      %v4017 = vadd.f32 %v3575, %v3971
      %v4018 = vadd.f32 %v3578, %v3974
      %v4019 = vadd.f32 %v3580, %v3976
      %v4020 = vadd.f32 %v3583, %v3979
      %v4021 = vadd.f32 %v3585, %v3981
      %v4022 = vadd.f32 %v3588, %v3984
      %v4023 = vadd.f32 %v3590, %v3986
      %v4024 = vld [vmem:[%s9] sm:$0x1]
      %v4026 = vperm.slane %v4024, 0
      %v4028 = vadd.f32 %v3988, %v4026
      %v4029 = vadd.f32 %v3989, %v4026
      %v4030 = vadd.f32 %v3990, %v4026
      %v4031 = vadd.f32 %v3991, %v4026
      %v4032 = vadd.f32 %v3992, %v4026
      %v4033 = vadd.f32 %v3993, %v4026
      %v4034 = vadd.f32 %v3994, %v4026
      %v4035 = vadd.f32 %v3995, %v4026
      %v4036 = vadd.f32 %v3996, %v4026
      %v4037 = vadd.f32 %v3997, %v4026
      %v4038 = vadd.f32 %v3998, %v4026
      %v4039 = vadd.f32 %v3999, %v4026
      %v4040 = vadd.f32 %v4000, %v4026
      %v4041 = vadd.f32 %v4001, %v4026
      %v4042 = vadd.f32 %v4002, %v4026
      %v4043 = vadd.f32 %v4003, %v4026
      %v4044 = vadd.f32 %v4004, %v4026
      %v4045 = vadd.f32 %v4005, %v4026
      %v4046 = vadd.f32 %v4006, %v4026
      %v4047 = vadd.f32 %v4007, %v4026
      %v4048 = vadd.f32 %v4008, %v4026
      %v4049 = vadd.f32 %v4009, %v4026
      %v4050 = vadd.f32 %v4010, %v4026
      %v4051 = vadd.f32 %v4011, %v4026
      %v4052 = vadd.f32 %v4012, %v4026
      %v4053 = vadd.f32 %v4013, %v4026
      %v4054 = vadd.f32 %v4014, %v4026
      %v4055 = vadd.f32 %v4015, %v4026
      %v4056 = vadd.f32 %v4016, %v4026
      %v4057 = vadd.f32 %v4017, %v4026
      %v4058 = vadd.f32 %v4018, %v4026
      %v4059 = vadd.f32 %v4019, %v4026
      %v4060 = vadd.f32 %v4020, %v4026
      %v4061 = vadd.f32 %v4021, %v4026
      %v4062 = vadd.f32 %v4022, %v4026
      %v4063 = vadd.f32 %v4023, %v4026
      %v4064 = vmax.f32 %v4028, 0.0
      %v4065 = vmax.f32 %v4029, 0.0
      %v4066 = vmax.f32 %v4030, 0.0
      %v4067 = vmax.f32 %v4031, 0.0
      %v4068 = vmax.f32 %v4032, 0.0
      %v4069 = vmax.f32 %v4033, 0.0
      %v4070 = vmax.f32 %v4034, 0.0
      %v4071 = vmax.f32 %v4035, 0.0
      %v4072 = vmax.f32 %v4036, 0.0
      %v4073 = vmax.f32 %v4037, 0.0
      %v4074 = vmax.f32 %v4038, 0.0
      %v4075 = vmax.f32 %v4039, 0.0
      %v4076 = vmax.f32 %v4040, 0.0
      %v4077 = vmax.f32 %v4041, 0.0
      %v4078 = vmax.f32 %v4042, 0.0
      %v4079 = vmax.f32 %v4043, 0.0
      %v4080 = vmax.f32 %v4044, 0.0
      %v4081 = vmax.f32 %v4045, 0.0
      %v4082 = vmax.f32 %v4046, 0.0
      %v4083 = vmax.f32 %v4047, 0.0
      %v4084 = vmax.f32 %v4048, 0.0
      %v4085 = vmax.f32 %v4049, 0.0
      %v4086 = vmax.f32 %v4050, 0.0
      %v4087 = vmax.f32 %v4051, 0.0
      %v4088 = vmax.f32 %v4052, 0.0
      %v4089 = vmax.f32 %v4053, 0.0
      %v4090 = vmax.f32 %v4054, 0.0
      %v4091 = vmax.f32 %v4055, 0.0
      %v4092 = vmax.f32 %v4056, 0.0
      %v4093 = vmax.f32 %v4057, 0.0
      %v4094 = vmax.f32 %v4058, 0.0
      %v4095 = vmax.f32 %v4059, 0.0
      %v4096 = vmax.f32 %v4060, 0.0
      %v4097 = vmax.f32 %v4061, 0.0
      %v4098 = vmax.f32 %v4062, 0.0
      %v4099 = vmax.f32 %v4063, 0.0
      %vm4100 = vcmask 523264
      %4101 = vst.msk [vmem:[%s359] sm:$0xff] %vm4100, %v4064
      %4102 = vst.msk [vmem:[%s359 + $0x8] sm:$0xff] %vm4100, %v4065
      %4103 = vst.msk [vmem:[%s359 + $0x10] sm:$0xff] %vm4100, %v4066
      %4104 = vst.msk [vmem:[%s359 + $0x18] sm:$0xff] %vm4100, %v4067
      %4105 = vst.msk [vmem:[%s359 + $0x20] sm:$0xff] %vm4100, %v4068
      %4106 = vst.msk [vmem:[%s359 + $0x28] sm:$0xff] %vm4100, %v4069
      %4107 = vst.msk [vmem:[%s359 + $0x30] sm:$0xff] %vm4100, %v4070
      %4108 = vst.msk [vmem:[%s359 + $0x38] sm:$0xff] %vm4100, %v4071
      %4109 = vst.msk [vmem:[%s359 + $0x40] sm:$0xff] %vm4100, %v4072
      %4110 = vst.msk [vmem:[%s359 + $0x48] sm:$0xff] %vm4100, %v4073
      %4111 = vst.msk [vmem:[%s359 + $0x50] sm:$0xff] %vm4100, %v4074
      %4112 = vst.msk [vmem:[%s359 + $0x58] sm:$0xff] %vm4100, %v4075
      %4113 = vst.msk [vmem:[%s359 + $0x60] sm:$0xff] %vm4100, %v4076
      %4114 = vst.msk [vmem:[%s359 + $0x68] sm:$0xff] %vm4100, %v4077
      %4115 = vst.msk [vmem:[%s359 + $0x70] sm:$0xff] %vm4100, %v4078
      %4116 = vst.msk [vmem:[%s359 + $0x78] sm:$0xff] %vm4100, %v4079
      %4117 = vst.msk [vmem:[%s359 + $0x80] sm:$0xff] %vm4100, %v4080
      %4118 = vst.msk [vmem:[%s359 + $0x88] sm:$0xff] %vm4100, %v4081
      %4119 = vst.msk [vmem:[%s359 + $0x90] sm:$0xff] %vm4100, %v4082
      %4120 = vst.msk [vmem:[%s359 + $0x98] sm:$0xff] %vm4100, %v4083
      %4121 = vst.msk [vmem:[%s359 + $0xa0] sm:$0xff] %vm4100, %v4084
      %4122 = vst.msk [vmem:[%s359 + $0xa8] sm:$0xff] %vm4100, %v4085
      %4123 = vst.msk [vmem:[%s359 + $0xb0] sm:$0xff] %vm4100, %v4086
      %4124 = vst.msk [vmem:[%s359 + $0xb8] sm:$0xff] %vm4100, %v4087
      %4125 = vst.msk [vmem:[%s359 + $0xc0] sm:$0xff] %vm4100, %v4088
      %4126 = vst.msk [vmem:[%s359 + $0xc8] sm:$0xff] %vm4100, %v4089
      %4127 = vst.msk [vmem:[%s359 + $0xd0] sm:$0xff] %vm4100, %v4090
      %4128 = vst.msk [vmem:[%s359 + $0xd8] sm:$0xff] %vm4100, %v4091
      %4129 = vst.msk [vmem:[%s359 + $0xe0] sm:$0xff] %vm4100, %v4092
      %4130 = vst.msk [vmem:[%s359 + $0xe8] sm:$0xff] %vm4100, %v4093
      %4131 = vst.msk [vmem:[%s359 + $0xf0] sm:$0xff] %vm4100, %v4094
      %4132 = vst.msk [vmem:[%s359 + $0xf8] sm:$0xff] %vm4100, %v4095
      %4133 = vst.msk [vmem:[%s359 + $0x100] sm:$0xff] %vm4100, %v4096
      %4134 = vst.msk [vmem:[%s359 + $0x108] sm:$0xff] %vm4100, %v4097
      %4135 = vst.msk [vmem:[%s359 + $0x110] sm:$0xff] %vm4100, %v4098
      %4136 = vst.msk [vmem:[%s359 + $0x118] sm:$0xff] %vm4100, %v4099
      %p4137 = scmp.lt.s32.totalorder %s21, 1
      %s4138 = scalar_select %p4137, %s21, 1
      %s4139 = smul.addr %s4138, 36
      %s4140 = smul.addr %s4139, 8
      %s4141 = scalar_lea.vmem %s10, %s4140
      // Predicated region
      $region61: #{bottleneck_forward.1} parent=59 // pred_check
        %p4142 = pneg %p254
      $region62: #{bottleneck_forward.1} parent=59 // pred_check_branch
        %4144 = sbr.rel (%p4142) target = $region64
      $region63: #{bottleneck_forward.1} parent=59 // pred_region
        _
      $region64: #{bottleneck_forward.1} parent=59 // pred_fallthru
        _
    $region60: #{bottleneck_forward.1} parent=5 // pred_fallthru
      _
    %p4145 = scmp.le.s32.totalorder 2, %s16
    // Predicated region
    $region65: #{bottleneck_forward.1} parent=5 // pred_check
      %p4146 = pneg %p4145
    $region66: #{bottleneck_forward.1} parent=5 // pred_check_branch
      %4148 = sbr.rel (%p4146) target = $region68
    $region67: #{bottleneck_forward.1} parent=5 // pred_region
      %s4149 = ssub.s32 %s16, 2
      // Predicated region
      $region69: #{bottleneck_forward.1} parent=67 // pred_check
        %p4150 = pneg %p260
      $region70: #{bottleneck_forward.1} parent=67 // pred_check_branch
        %4152 = sbr.rel (%p4150) target = $region72
      $region71: #{bottleneck_forward.1} parent=67 // pred_region
        %p4153 = scmp.lt.s32.totalorder %s22, 1
        %s4154 = scalar_select %p4153, %s22, 1
        %s4155 = smul.addr %s4154, 36
        %s4156 = smul.addr %s4155, 8
        %s4157 = scalar_lea.vmem %s10, %s4156
      $region72: #{bottleneck_forward.1} parent=67 // pred_fallthru
        _
    $region68: #{bottleneck_forward.1} parent=5 // pred_fallthru
      _
  $region6: #{bottleneck_forward.1} parent=0 // loop_footer
    %s20 = sadd.s32 1, %s16
  $region7: #{bottleneck_forward.1} parent=0 // loop_footer_branch
    %15 = sbr.rel target = $region3
  $region8: #{bottleneck_forward.1} parent=0 // loop_exit
    _

</llo_original>
